<compile_context>
chip_gen: v5e
topology: v5e:2x2
jax: 0.10.0
libtpu: 0.0.40
codegen_flags: <defaults>
</compile_context>

<pallas_src>
import jax
import jax.numpy as jnp
from jax.experimental import pallas as pl
from jax.experimental.pallas import tpu as pltpu

EPS_NORM = 1e-12        # F.normalize eps
NEG_FILL = -1e30        # "no edge" sentinel for padding slots
NEG_THRESH = -1e29      # rows whose running max stays below this have no edges


def _round_up(x, m):
    return ((x + m - 1) // m) * m


# --------------------------------------------------------------------------- #
# Fused per-layer kernel: edge logits + per-row online softmax + aggregation.
#   grid = (row_block b, edge_chunk j); chunk table in SMEM via scalar prefetch.
#   escal  : (TE, 8)  f32  [bias, <rn,a_n>, <tn,b_n>, local_row, 0...] per edge
#   selfs  : (TE, Dp) bf16 feats[row]      neighs : (TE, Dp) bf16 feats[col]
#   rn/tn  : (TE, Dp) bf16 normalized relation / time rows per edge
#   wsn    : (8, Dp)  f32  rows [a_s+b_s, a_n+b_n, 0...]
#   out    : (Dp, TN) f32  (feature-major, lane-dense stores)
# --------------------------------------------------------------------------- #
def _teagnn_layer_kernel(cstart_ref, ccnt_ref,                # scalar prefetch
                         escal_ref, selfs_ref, neighs_ref, rn_ref, tn_ref,
                         wsn_ref, out_ref, m_sc, l_sc, acc_sc):
    b = pl.program_id(0)          # row block
    j = pl.program_id(1)          # edge chunk within the block
    te = escal_ref.shape[0]
    tnr = m_sc.shape[1]

    @pl.when(j == 0)
    def _():
        m_sc[...] = jnp.full_like(m_sc, NEG_FILL)
        l_sc[...] = jnp.zeros_like(l_sc)
        acc_sc[...] = jnp.zeros_like(acc_sc)

    @pl.when(j < ccnt_ref[b])
    def _():
        # ---- per-edge attention logits (f32 VPU math, 3 cross-lane reduces) --
        neighs_bf = neighs_ref[...]                       # bf16, reused on MXU
        selfs = selfs_ref[...].astype(jnp.float32)        # (TE, Dp)
        neighs = neighs_bf.astype(jnp.float32)
        rels_n = rn_ref[...].astype(jnp.float32)
        times_n = tn_ref[...].astype(jnp.float32)
        w_self = wsn_ref[0:1, :]                          # (1, Dp)
        w_neigh = wsn_ref[1:2, :]

        esc = escal_ref[...]                              # (TE, 8)
        bias = esc[:, 0:1]                                # sgn*(<rn,a_r>+<tn,b_t>)
        g_r = esc[:, 1:2]                                 # <rn, a_n>
        g_t = esc[:, 2:3]                                 # <tn, b_n>
        lrow = esc[:, 3:4]                                # local row id (exact)

        s_lin = jnp.sum(selfs * w_self + neighs * w_neigh, axis=1, keepdims=True)
        dot_r = jnp.sum(neighs * rels_n, axis=1, keepdims=True)
        dot_t = jnp.sum(neighs * times_n, axis=1, keepdims=True)
        att = s_lin - 2.0 * dot_r * g_r - 2.0 * dot_t * g_t + bias    # (TE, 1)

        # ---- per-source-row online softmax within this row block ----
        col_ids = jax.lax.broadcasted_iota(jnp.int32, (te, tnr), 1)
        match = lrow == col_ids.astype(jnp.float32)        # (TE, TN), one-hot/edge
        s_mat = jnp.where(match, att, -jnp.inf)
        m_prev = m_sc[...]                                 # (1, TN)
        m_new = jnp.maximum(m_prev, jnp.max(s_mat, axis=0, keepdims=True))
        alpha = jnp.exp(m_prev - m_new)                    # (1, TN)
        # gather the new max back per edge through the one-hot matrix so exp()
        # only runs on the TE real edges, not the TE x TN scatter matrix (EUP).
        m_edge = jnp.sum(jnp.where(match, m_new, 0.0), axis=1, keepdims=True)
        p_edge = jnp.exp(att - m_edge)                     # (TE, 1)
        p_mat = jnp.where(match, p_edge, 0.0)              # (TE, TN)

        l_sc[...] = alpha * l_sc[...] + jnp.sum(p_mat, axis=0, keepdims=True)
        # aggregation: acc[d, r] += sum_e neighs[e, d] * p[e, r]  (bf16 MXU,
        # f32 accumulation; contraction over the shared edge axis).
        acc_sc[...] = alpha * acc_sc[...] + jax.lax.dot_general(
            neighs_bf, p_mat.astype(jnp.bfloat16),
            dimension_numbers=(((0,), (0,)), ((), ())),
            preferred_element_type=jnp.float32)            # (Dp, TN)
        m_sc[...] = m_new

    @pl.when(j == pl.num_programs(1) - 1)
    def _():
        inv = pl.reciprocal(jnp.maximum(l_sc[...], 1e-30), approx=True)
        keep = m_sc[...] > NEG_THRESH                      # rows with >=1 edge
        agg = jnp.where(keep, acc_sc[...] * inv, 0.0)      # (Dp, TN)
        out_ref[...] = jnp.maximum(agg, 0.0)               # ReLU activation


def _run_layer(escal, selfs, neighs, rn_e, tn_e, wsn, chunk_start, chunk_cnt,
               *, nb, mc, tn_rows, te, dp):
    def edge_map(i, j, cs_ref, cc_ref):
        # clamp to the block's last real chunk so skipped steps re-use the
        # previously fetched block (no extra DMA) and stay in bounds.
        last = jnp.maximum(cc_ref[i], 1) - 1
        jj = jnp.minimum(j, last)
        return (cs_ref[i] + jj, 0)

    return pl.pallas_call(
        _teagnn_layer_kernel,
        out_shape=jax.ShapeDtypeStruct((dp, nb * tn_rows), jnp.float32),
        grid_spec=pltpu.PrefetchScalarGridSpec(
            num_scalar_prefetch=2,
            grid=(nb, mc),
            in_specs=[
                pl.BlockSpec((te, 8), edge_map),           # per-edge scalars
                pl.BlockSpec((te, dp), edge_map),          # selfs  (bf16)
                pl.BlockSpec((te, dp), edge_map),          # neighs (bf16)
                pl.BlockSpec((te, dp), edge_map),          # rel normals (bf16)
                pl.BlockSpec((te, dp), edge_map),          # time normals (bf16)
                pl.BlockSpec((8, dp), lambda i, j, cs, cc: (0, 0)),   # weights
            ],
            out_specs=pl.BlockSpec((dp, tn_rows), lambda i, j, cs, cc: (0, i)),
            scratch_shapes=[pltpu.VMEM((1, tn_rows), jnp.float32),    # m
                            pltpu.VMEM((1, tn_rows), jnp.float32),    # l
                            pltpu.VMEM((dp, tn_rows), jnp.float32)],  # acc
        ),
        compiler_params=pltpu.CompilerParams(
            dimension_semantics=("parallel", "arbitrary")),
    )(chunk_start, chunk_cnt, escal, selfs, neighs, rn_e, tn_e, wsn)


# --------------------------------------------------------------------------- #
# TEAGNNLayer forward (wrapper: CSR bucketing, small-table precompute, gathers).
# NOTE: the bucketing metadata (grid extents) is computed host-side, so this
#       setup is eager / not jit-traceable as written.
# --------------------------------------------------------------------------- #
def teagnn_forward(features, rel_emb, time_emb, row, col, rel_idx, time_idx,
                   sparse_val, attn_params, *, depth=2, tile_rows=256,
                   tile_edges=512):
    N, D = features.shape
    E = int(row.shape[0])

    dp = _round_up(D, 128)                                  # lane-dense features
    tn_rows = _round_up(min(tile_rows, _round_up(N, 128)), 128)
    te = _round_up(min(tile_edges, _round_up(max(E, 1), 128)), 128)
    nb = pl.cdiv(N, tn_rows)

    # ---- CSR bucketing: sort edges by source row; pad every row block's edge
    #      segment to a multiple of `te` so chunk starts are whole block ids ----
    order = jnp.argsort(row)
    row_s = row[order].astype(jnp.int32)
    col_s = col[order].astype(jnp.int32)
    rel_s = rel_idx[order].astype(jnp.int32)
    time_s = time_idx[order].astype(jnp.int32)
    sgn_s = jnp.sign(sparse_val[order].astype(jnp.float32))

    blk = row_s // tn_rows
    deg = jnp.bincount(blk, length=nb).astype(jnp.int32)    # edges per block
    cnt = (deg + te - 1) // te                              # chunks per block
    deg_start = jnp.cumsum(deg) - deg                       # exclusive cumsum
    chunk_start = (jnp.cumsum(cnt) - cnt).astype(jnp.int32)
    rank = jnp.arange(E, dtype=jnp.int32) - deg_start[blk]
    dest = chunk_start[blk] * te + rank                     # slot per sorted edge

    used_chunks = int(jnp.sum(cnt))                         # host-side metadata
    mc = max(int(jnp.max(cnt)), 1)
    e_cap = (used_chunks + 1) * te                          # +1 slack chunk

    def scatter(vals, fill, dtype):
        return jnp.full((e_cap,), fill, dtype).at[dest].set(vals.astype(dtype))

    row_slot = scatter(row_s, 0, jnp.int32)
    col_slot = scatter(col_s, 0, jnp.int32)
    rel_slot = scatter(rel_s, 0, jnp.int32)
    time_slot = scatter(time_s, 0, jnp.int32)
    sgn_slot = scatter(sgn_s, 0.0, jnp.float32)
    valid_slot = scatter(jnp.ones((E,), jnp.float32), 0.0, jnp.float32)
    lrow_slot = scatter(row_s - blk * tn_rows, 0, jnp.int32).astype(jnp.float32)

    # ---- normalize the small relation/time tables once; gather per edge ----
    def l2norm(x):
        nrm = jnp.sqrt(jnp.sum(x * x, axis=1, keepdims=True))
        return x / jnp.maximum(nrm, EPS_NORM)

    rn_tab = l2norm(rel_emb.astype(jnp.float32))            # (R, D)
    tn_tab = l2norm(time_emb.astype(jnp.float32))           # (T, D)
    rn_e = jnp.pad(rn_tab, ((0, 0), (0, dp - D)))[rel_slot].astype(jnp.bfloat16)
    tn_e = jnp.pad(tn_tab, ((0, 0), (0, dp - D)))[time_slot].astype(jnp.bfloat16)

    # per-layer attention-kernel contractions against the normalized tables
    layer_params = []
    for a, b in attn_params:
        a3 = jnp.reshape(a.astype(jnp.float32), (3, D))     # a_s, a_n, a_r
        b3 = jnp.reshape(b.astype(jnp.float32), (3, D))     # b_s, b_n, b_t
        wsn = jnp.zeros((8, dp), jnp.float32)
        wsn = wsn.at[0, :D].set(a3[0] + b3[0]).at[1, :D].set(a3[1] + b3[1])
        layer_params.append((wsn, rn_tab @ a3[1], rn_tab @ a3[2],
                             tn_tab @ b3[1], tn_tab @ b3[2]))

    outputs = [features]
    feats_p = jnp.pad(jnp.maximum(features.astype(jnp.float32), 0.0),
                      ((0, 0), (0, dp - D)))                # activation pre-loop

    for l in range(depth):
        wsn, g_r, c_r, g_t, c_t = layer_params[l]
        selfs_e = feats_p[row_slot].astype(jnp.bfloat16)    # (E_cap, Dp)
        neighs_e = feats_p[col_slot].astype(jnp.bfloat16)

        bias = jnp.where(valid_slot > 0.0,
                         sgn_slot * (c_r[rel_slot] + c_t[time_slot]), NEG_FILL)
        s2 = sgn_slot * sgn_slot * valid_slot
        zero = jnp.zeros_like(bias)
        escal = jnp.stack([bias, s2 * g_r[rel_slot], s2 * g_t[time_slot],
                           lrow_slot, zero, zero, zero, zero], axis=1)

        out_t = _run_layer(escal, selfs_e, neighs_e, rn_e, tn_e, wsn,
                           chunk_start, cnt.astype(jnp.int32),
                           nb=nb, mc=mc, tn_rows=tn_rows, te=te, dp=dp)
        feats_p = out_t.T[:N]                               # ReLU'd, pad dims = 0
        outputs.append(feats_p[:, :D])
    return outputs


if __name__ == "__main__":
    # Small deterministic synthetic problem: exercises >=2 row blocks (both v7x
    # TensorCores), multi-chunk online accumulation and padded/skipped chunks.
    N, D, R, T, E, depth = 256, 32, 16, 16, 1024, 2

    key = jax.random.PRNGKey(0)
    keys = jax.random.split(key, 8)

    features = jax.random.normal(keys[0], (N, D), jnp.float32)
    rel_emb = jax.random.normal(keys[1], (R, D), jnp.float32)
    time_emb = jax.random.normal(keys[2], (T, D), jnp.float32)

    pair_ids = jax.random.choice(keys[3], N * N, shape=(E,), replace=False)
    row = (pair_ids // N).astype(jnp.int32)
    col = (pair_ids % N).astype(jnp.int32)
    rel_idx = jax.random.randint(keys[4], (E,), 0, R)
    time_idx = jax.random.randint(keys[5], (E,), 0, T)
    sparse_val = jax.random.uniform(keys[6], (E,), jnp.float32, 0.5, 1.5)

    # xavier_uniform_ for the (3*ent_size, 1) attention kernels, per layer.
    bound = (6.0 / (3 * D + 1)) ** 0.5
    akeys = jax.random.split(keys[7], depth * 2)
    attn_params = []
    for l in range(depth):
        a = jax.random.uniform(akeys[2 * l], (3 * D, 1), jnp.float32, -bound, bound)
        b = jax.random.uniform(akeys[2 * l + 1], (3 * D, 1), jnp.float32, -bound, bound)
        attn_params.append((a, b))

    outs = teagnn_forward(features, rel_emb, time_emb, row, col, rel_idx,
                          time_idx, sparse_val, attn_params, depth=depth,
                          tile_rows=128, tile_edges=256)
    outs = jax.block_until_ready(outs)

    assert len(outs) == depth + 1
    for o in outs:
        assert o.shape == (N, D)
        assert bool(jnp.all(jnp.isfinite(o)))
    print("KERNEL_OK")
</pallas_src>

<mosaic_0001>
module attributes {stable_mosaic.version = 11 : i64} {
  func.func @_teagnn_layer_kernel(%arg0: i32, %arg1: i32, %arg2: memref<2xi32, #tpu.memory_space<smem>>, %arg3: memref<2xi32, #tpu.memory_space<smem>>, %arg4: memref<256x8xf32, #tpu.memory_space<vmem>>, %arg5: memref<256x128xbf16, #tpu.memory_space<vmem>>, %arg6: memref<256x128xbf16, #tpu.memory_space<vmem>>, %arg7: memref<256x128xbf16, #tpu.memory_space<vmem>>, %arg8: memref<256x128xbf16, #tpu.memory_space<vmem>>, %arg9: memref<8x128xf32, #tpu.memory_space<vmem>>, %arg10: memref<128x128xf32, #tpu.memory_space<vmem>>, %arg11: memref<1x128xf32, #tpu.memory_space<vmem>>, %arg12: memref<1x128xf32, #tpu.memory_space<vmem>>, %arg13: memref<128x128xf32, #tpu.memory_space<vmem>>) attributes {dimension_semantics = [#tpu.dimension_semantics<parallel>, #tpu.dimension_semantics<arbitrary>], iteration_bounds = array<i64: 2, 3>, scalar_prefetch = 2 : i64, scratch_operands = 3 : i64, tpu.core_type = #tpu.core_type<tc>, window_params = [{transform_indices = @transform_0, window_bounds = array<i64: 256, 8>}, {transform_indices = @transform_1, window_bounds = array<i64: 256, 128>}, {transform_indices = @transform_2, window_bounds = array<i64: 256, 128>}, {transform_indices = @transform_3, window_bounds = array<i64: 256, 128>}, {transform_indices = @transform_4, window_bounds = array<i64: 256, 128>}, {pipeline_mode = #tpu.pipeline_mode<synchronous>, transform_indices = @transform_5, window_bounds = array<i64: 8, 128>}, {transform_indices = @transform_6, window_bounds = array<i64: 128, 128>}]} {
    %c0_i32 = arith.constant 0 : i32
    %0 = arith.cmpi eq, %arg1, %c0_i32 : i32
    %1 = arith.extui %0 : i1 to i32
    %c0_i32_0 = arith.constant 0 : i32
    %2 = arith.cmpi ne, %1, %c0_i32_0 : i32
    scf.if %2 {
      %cst = arith.constant -1.000000e+30 : f32
      %11 = vector.broadcast %cst : f32 to vector<1x128xf32>
      %c0 = arith.constant 0 : index
      %c0_3 = arith.constant 0 : index
      %12 = vector.load %arg11[%c0, %c0_3] : memref<1x128xf32, #tpu.memory_space<vmem>>, vector<1x128xf32>
      tpu.vector_store %arg11[%c0, %c0_3], %11 {strides = array<i32>} : memref<1x128xf32, #tpu.memory_space<vmem>>, vector<1x128xf32>,
      %cst_4 = arith.constant 0.000000e+00 : f32
      %13 = vector.broadcast %cst_4 : f32 to vector<1x128xf32>
      %c0_5 = arith.constant 0 : index
      %c0_6 = arith.constant 0 : index
      %14 = vector.load %arg12[%c0_5, %c0_6] : memref<1x128xf32, #tpu.memory_space<vmem>>, vector<1x128xf32>
      tpu.vector_store %arg12[%c0_5, %c0_6], %13 {strides = array<i32>} : memref<1x128xf32, #tpu.memory_space<vmem>>, vector<1x128xf32>,
      %cst_7 = arith.constant 0.000000e+00 : f32
      %15 = vector.broadcast %cst_7 : f32 to vector<128x128xf32>
      %c0_8 = arith.constant 0 : index
      %c0_9 = arith.constant 0 : index
      %16 = vector.load %arg13[%c0_8, %c0_9] : memref<128x128xf32, #tpu.memory_space<vmem>>, vector<128x128xf32>
      tpu.vector_store %arg13[%c0_8, %c0_9], %15 {strides = array<i32>} : memref<128x128xf32, #tpu.memory_space<vmem>>, vector<128x128xf32>,
    } else {
    }
    %3 = arith.index_cast %arg0 : i32 to index
    %4 = memref.load %arg3[%3] : memref<2xi32, #tpu.memory_space<smem>>
    %5 = arith.cmpi slt, %arg1, %4 : i32
    %6 = arith.extui %5 : i1 to i32
    %c0_i32_1 = arith.constant 0 : i32
    %7 = arith.cmpi ne, %6, %c0_i32_1 : i32
    scf.if %7 {
      %c0 = arith.constant 0 : index
      %c0_3 = arith.constant 0 : index
      %11 = vector.load %arg6[%c0, %c0_3] : memref<256x128xbf16, #tpu.memory_space<vmem>>, vector<256x128xbf16>
      %c0_4 = arith.constant 0 : index
      %c0_5 = arith.constant 0 : index
      %12 = vector.load %arg5[%c0_4, %c0_5] : memref<256x128xbf16, #tpu.memory_space<vmem>>, vector<256x128xbf16>
      %13 = arith.extf %12 : vector<256x128xbf16> to vector<256x128xf32>
      %14 = arith.extf %11 : vector<256x128xbf16> to vector<256x128xf32>
      %c0_6 = arith.constant 0 : index
      %c0_7 = arith.constant 0 : index
      %15 = vector.load %arg7[%c0_6, %c0_7] : memref<256x128xbf16, #tpu.memory_space<vmem>>, vector<256x128xbf16>
      %16 = arith.extf %15 : vector<256x128xbf16> to vector<256x128xf32>
      %c0_8 = arith.constant 0 : index
      %c0_9 = arith.constant 0 : index
      %17 = vector.load %arg8[%c0_8, %c0_9] : memref<256x128xbf16, #tpu.memory_space<vmem>>, vector<256x128xbf16>
      %18 = arith.extf %17 : vector<256x128xbf16> to vector<256x128xf32>
      %c0_10 = arith.constant 0 : index
      %c0_11 = arith.constant 0 : index
      %19 = vector.load %arg9[%c0_10, %c0_11] : memref<8x128xf32, #tpu.memory_space<vmem>>, vector<1x128xf32>
      %c1 = arith.constant 1 : index
      %c0_12 = arith.constant 0 : index
      %20 = vector.load %arg9[%c1, %c0_12] : memref<8x128xf32, #tpu.memory_space<vmem>>, vector<1x128xf32>
      %c0_13 = arith.constant 0 : index
      %c0_14 = arith.constant 0 : index
      %21 = vector.load %arg4[%c0_13, %c0_14] : memref<256x8xf32, #tpu.memory_space<vmem>>, vector<256x8xf32>
      %22 = vector.extract_strided_slice %21 {offsets = [0, 0], sizes = [256, 1], strides = [1, 1]} : vector<256x8xf32> to vector<256x1xf32>
      %23 = vector.extract_strided_slice %21 {offsets = [0, 1], sizes = [256, 1], strides = [1, 1]} : vector<256x8xf32> to vector<256x1xf32>
      %24 = vector.extract_strided_slice %21 {offsets = [0, 2], sizes = [256, 1], strides = [1, 1]} : vector<256x8xf32> to vector<256x1xf32>
      %25 = vector.extract_strided_slice %21 {offsets = [0, 3], sizes = [256, 1], strides = [1, 1]} : vector<256x8xf32> to vector<256x1xf32>
      %26 = vector.broadcast %19 : vector<1x128xf32> to vector<256x128xf32>
      %27 = arith.mulf %13, %26 : vector<256x128xf32>
      %28 = vector.broadcast %20 : vector<1x128xf32> to vector<256x128xf32>
      %29 = arith.mulf %14, %28 : vector<256x128xf32>
      %30 = arith.addf %27, %29 : vector<256x128xf32>
      %cst = arith.constant dense<0.000000e+00> : vector<256xf32>
      %31 = vector.multi_reduction <add>, %30, %cst [1] : vector<256x128xf32> to vector<256xf32>
      %32 = vector.shape_cast %31 : vector<256xf32> to vector<256x1xf32>
      %33 = arith.mulf %14, %16 : vector<256x128xf32>
      %cst_15 = arith.constant dense<0.000000e+00> : vector<256xf32>
      %34 = vector.multi_reduction <add>, %33, %cst_15 [1] : vector<256x128xf32> to vector<256xf32>
      %35 = vector.shape_cast %34 : vector<256xf32> to vector<256x1xf32>
      %36 = arith.mulf %14, %18 : vector<256x128xf32>
      %cst_16 = arith.constant dense<0.000000e+00> : vector<256xf32>
      %37 = vector.multi_reduction <add>, %36, %cst_16 [1] : vector<256x128xf32> to vector<256xf32>
      %38 = vector.shape_cast %37 : vector<256xf32> to vector<256x1xf32>
      %cst_17 = arith.constant 2.000000e+00 : f32
      %39 = vector.broadcast %cst_17 : f32 to vector<256x1xf32>
      %40 = arith.mulf %39, %35 : vector<256x1xf32>
      %41 = arith.mulf %40, %23 : vector<256x1xf32>
      %42 = arith.subf %32, %41 : vector<256x1xf32>
      %cst_18 = arith.constant 2.000000e+00 : f32
      %43 = vector.broadcast %cst_18 : f32 to vector<256x1xf32>
      %44 = arith.mulf %43, %38 : vector<256x1xf32>
      %45 = arith.mulf %44, %24 : vector<256x1xf32>
      %46 = arith.subf %42, %45 : vector<256x1xf32>
      %47 = arith.addf %46, %22 : vector<256x1xf32>
      %48 = tpu.iota {dimensions = array<i32: 1>} : vector<256x128xi32>
      %49 = arith.sitofp %48 : vector<256x128xi32> to vector<256x128xf32>
      %50 = vector.broadcast %25 : vector<256x1xf32> to vector<256x128xf32>
      %51 = arith.cmpf oeq, %50, %49 : vector<256x128xf32>
      %cst_19 = arith.constant 0xFF800000 : f32
      %52 = vector.shape_cast %47 : vector<256x1xf32> to vector<256x1xf32>
      %53 = vector.broadcast %52 : vector<256x1xf32> to vector<256x128xf32>
      %54 = vector.broadcast %cst_19 : f32 to vector<256x128xf32>
      %55 = arith.select %51, %53, %54 : vector<256x128xi1>, vector<256x128xf32>
      %c0_20 = arith.constant 0 : index
      %c0_21 = arith.constant 0 : index
      %56 = vector.load %arg11[%c0_20, %c0_21] : memref<1x128xf32, #tpu.memory_space<vmem>>, vector<1x128xf32>
      %cst_22 = arith.constant dense<0xFF800000> : vector<128xf32>
      %57 = vector.multi_reduction <maximumf>, %55, %cst_22 [0] : vector<256x128xf32> to vector<128xf32>
      %58 = vector.shape_cast %57 : vector<128xf32> to vector<1x128xf32>
      %59 = arith.maximumf %56, %58 : vector<1x128xf32>
      %60 = arith.subf %56, %59 : vector<1x128xf32>
      %61 = math.exp %60 : vector<1x128xf32>
      %cst_23 = arith.constant 0.000000e+00 : f32
      %62 = vector.shape_cast %59 : vector<1x128xf32> to vector<1x128xf32>
      %63 = vector.broadcast %62 : vector<1x128xf32> to vector<256x128xf32>
      %64 = vector.broadcast %cst_23 : f32 to vector<256x128xf32>
      %65 = arith.select %51, %63, %64 : vector<256x128xi1>, vector<256x128xf32>
      %cst_24 = arith.constant dense<0.000000e+00> : vector<256xf32>
      %66 = vector.multi_reduction <add>, %65, %cst_24 [1] : vector<256x128xf32> to vector<256xf32>
      %67 = vector.shape_cast %66 : vector<256xf32> to vector<256x1xf32>
      %68 = arith.subf %47, %67 : vector<256x1xf32>
      %69 = math.exp %68 : vector<256x1xf32>
      %cst_25 = arith.constant 0.000000e+00 : f32
      %70 = vector.shape_cast %69 : vector<256x1xf32> to vector<256x1xf32>
      %71 = vector.broadcast %70 : vector<256x1xf32> to vector<256x128xf32>
      %72 = vector.broadcast %cst_25 : f32 to vector<256x128xf32>
      %73 = arith.select %51, %71, %72 : vector<256x128xi1>, vector<256x128xf32>
      %c0_26 = arith.constant 0 : index
      %c0_27 = arith.constant 0 : index
      %74 = vector.load %arg12[%c0_26, %c0_27] : memref<1x128xf32, #tpu.memory_space<vmem>>, vector<1x128xf32>
      %75 = arith.mulf %61, %74 : vector<1x128xf32>
      %cst_28 = arith.constant dense<0.000000e+00> : vector<128xf32>
      %76 = vector.multi_reduction <add>, %73, %cst_28 [0] : vector<256x128xf32> to vector<128xf32>
      %77 = vector.shape_cast %76 : vector<128xf32> to vector<1x128xf32>
      %78 = arith.addf %75, %77 : vector<1x128xf32>
      %c0_29 = arith.constant 0 : index
      %c0_30 = arith.constant 0 : index
      %79 = vector.load %arg12[%c0_29, %c0_30] : memref<1x128xf32, #tpu.memory_space<vmem>>, vector<1x128xf32>
      tpu.vector_store %arg12[%c0_29, %c0_30], %78 {strides = array<i32>} : memref<1x128xf32, #tpu.memory_space<vmem>>, vector<1x128xf32>,
      %c0_31 = arith.constant 0 : index
      %c0_32 = arith.constant 0 : index
      %80 = vector.load %arg13[%c0_31, %c0_32] : memref<128x128xf32, #tpu.memory_space<vmem>>, vector<128x128xf32>
      %81 = vector.broadcast %61 : vector<1x128xf32> to vector<128x128xf32>
      %82 = arith.mulf %81, %80 : vector<128x128xf32>
      %83 = arith.truncf %73 : vector<256x128xf32> to vector<256x128xbf16>
      %cst_33 = arith.constant dense<0.000000e+00> : vector<128x128xf32>
      %84 = tpu.matmul %11, %83, %cst_33 {dimension_numbers = #tpu.dot_dimension_numbers<[0], [0], [1], [1], [0, 1, 1, 1], [], []>} : vector<256x128xbf16>, vector<256x128xbf16>, vector<128x128xf32> -> vector<128x128xf32>
      %85 = arith.addf %82, %84 : vector<128x128xf32>
      %c0_34 = arith.constant 0 : index
      %c0_35 = arith.constant 0 : index
      %86 = vector.load %arg13[%c0_34, %c0_35] : memref<128x128xf32, #tpu.memory_space<vmem>>, vector<128x128xf32>
      tpu.vector_store %arg13[%c0_34, %c0_35], %85 {strides = array<i32>} : memref<128x128xf32, #tpu.memory_space<vmem>>, vector<128x128xf32>,
      %c0_36 = arith.constant 0 : index
      %c0_37 = arith.constant 0 : index
      %87 = vector.load %arg11[%c0_36, %c0_37] : memref<1x128xf32, #tpu.memory_space<vmem>>, vector<1x128xf32>
      tpu.vector_store %arg11[%c0_36, %c0_37], %59 {strides = array<i32>} : memref<1x128xf32, #tpu.memory_space<vmem>>, vector<1x128xf32>,
    } else {
    }
    %c2_i32 = arith.constant 2 : i32
    %8 = arith.cmpi eq, %arg1, %c2_i32 : i32
    %9 = arith.extui %8 : i1 to i32
    %c0_i32_2 = arith.constant 0 : i32
    %10 = arith.cmpi ne, %9, %c0_i32_2 : i32
    scf.if %10 {
      %c0 = arith.constant 0 : index
      %c0_3 = arith.constant 0 : index
      %11 = vector.load %arg12[%c0, %c0_3] : memref<1x128xf32, #tpu.memory_space<vmem>>, vector<1x128xf32>
      %cst = arith.constant 1.000000e-30 : f32
      %12 = vector.broadcast %cst : f32 to vector<1x128xf32>
      %13 = arith.maximumf %11, %12 : vector<1x128xf32>
      %14 = tpu.reciprocal %13 {approx = true} : vector<1x128xf32> -> vector<1x128xf32>
      %c0_4 = arith.constant 0 : index
      %c0_5 = arith.constant 0 : index
      %15 = vector.load %arg11[%c0_4, %c0_5] : memref<1x128xf32, #tpu.memory_space<vmem>>, vector<1x128xf32>
      %cst_6 = arith.constant -1.000000e+29 : f32
      %16 = vector.broadcast %cst_6 : f32 to vector<1x128xf32>
      %17 = arith.cmpf ogt, %15, %16 : vector<1x128xf32>
      %c0_7 = arith.constant 0 : index
      %c0_8 = arith.constant 0 : index
      %18 = vector.load %arg13[%c0_7, %c0_8] : memref<128x128xf32, #tpu.memory_space<vmem>>, vector<128x128xf32>
      %19 = vector.broadcast %14 : vector<1x128xf32> to vector<128x128xf32>
      %20 = arith.mulf %18, %19 : vector<128x128xf32>
      %cst_9 = arith.constant 0.000000e+00 : f32
      %21 = vector.shape_cast %17 : vector<1x128xi1> to vector<1x128xi1>
      %22 = vector.broadcast %21 : vector<1x128xi1> to vector<128x128xi1>
      %23 = vector.broadcast %cst_9 : f32 to vector<128x128xf32>
      %24 = arith.select %22, %20, %23 : vector<128x128xi1>, vector<128x128xf32>
      %cst_10 = arith.constant 0.000000e+00 : f32
      %25 = vector.broadcast %cst_10 : f32 to vector<128x128xf32>
      %26 = arith.maximumf %24, %25 : vector<128x128xf32>
      %c0_11 = arith.constant 0 : index
      %c0_12 = arith.constant 0 : index
      %27 = vector.load %arg10[%c0_11, %c0_12] : memref<128x128xf32, #tpu.memory_space<vmem>>, vector<128x128xf32>
      tpu.vector_store %arg10[%c0_11, %c0_12], %26 {strides = array<i32>} : memref<128x128xf32, #tpu.memory_space<vmem>>, vector<128x128xf32>,
    } else {
    }
    return
  }
  func.func @transform_0(%arg0: i32, %arg1: i32, %arg2: memref<2xi32, #tpu.memory_space<smem>>, %arg3: memref<2xi32, #tpu.memory_space<smem>>) -> (i32, i32) {
    %0 = arith.index_cast %arg0 : i32 to index
    %1 = memref.load %arg3[%0] : memref<2xi32, #tpu.memory_space<smem>>
    %c1_i32 = arith.constant 1 : i32
    %2 = arith.maxsi %1, %c1_i32 : i32
    %c1_i32_0 = arith.constant 1 : i32
    %3 = arith.subi %2, %c1_i32_0 : i32
    %4 = arith.minsi %arg1, %3 : i32
    %5 = arith.index_cast %arg0 : i32 to index
    %6 = memref.load %arg2[%5] : memref<2xi32, #tpu.memory_space<smem>>
    %7 = arith.addi %6, %4 : i32
    %c0_i32 = arith.constant 0 : i32
    %c0_i32_1 = arith.constant 0 : i32
    return %7, %c0_i32 : i32, i32
  }
  func.func @transform_1(%arg0: i32, %arg1: i32, %arg2: memref<2xi32, #tpu.memory_space<smem>>, %arg3: memref<2xi32, #tpu.memory_space<smem>>) -> (i32, i32) {
    %0 = arith.index_cast %arg0 : i32 to index
    %1 = memref.load %arg3[%0] : memref<2xi32, #tpu.memory_space<smem>>
    %c1_i32 = arith.constant 1 : i32
    %2 = arith.maxsi %1, %c1_i32 : i32
    %c1_i32_0 = arith.constant 1 : i32
    %3 = arith.subi %2, %c1_i32_0 : i32
    %4 = arith.minsi %arg1, %3 : i32
    %5 = arith.index_cast %arg0 : i32 to index
    %6 = memref.load %arg2[%5] : memref<2xi32, #tpu.memory_space<smem>>
    %7 = arith.addi %6, %4 : i32
    %c0_i32 = arith.constant 0 : i32
    %c0_i32_1 = arith.constant 0 : i32
    return %7, %c0_i32 : i32, i32
  }
  func.func @transform_2(%arg0: i32, %arg1: i32, %arg2: memref<2xi32, #tpu.memory_space<smem>>, %arg3: memref<2xi32, #tpu.memory_space<smem>>) -> (i32, i32) {
    %0 = arith.index_cast %arg0 : i32 to index
    %1 = memref.load %arg3[%0] : memref<2xi32, #tpu.memory_space<smem>>
    %c1_i32 = arith.constant 1 : i32
    %2 = arith.maxsi %1, %c1_i32 : i32
    %c1_i32_0 = arith.constant 1 : i32
    %3 = arith.subi %2, %c1_i32_0 : i32
    %4 = arith.minsi %arg1, %3 : i32
    %5 = arith.index_cast %arg0 : i32 to index
    %6 = memref.load %arg2[%5] : memref<2xi32, #tpu.memory_space<smem>>
    %7 = arith.addi %6, %4 : i32
    %c0_i32 = arith.constant 0 : i32
    %c0_i32_1 = arith.constant 0 : i32
    return %7, %c0_i32 : i32, i32
  }
  func.func @transform_3(%arg0: i32, %arg1: i32, %arg2: memref<2xi32, #tpu.memory_space<smem>>, %arg3: memref<2xi32, #tpu.memory_space<smem>>) -> (i32, i32) {
    %0 = arith.index_cast %arg0 : i32 to index
    %1 = memref.load %arg3[%0] : memref<2xi32, #tpu.memory_space<smem>>
    %c1_i32 = arith.constant 1 : i32
    %2 = arith.maxsi %1, %c1_i32 : i32
    %c1_i32_0 = arith.constant 1 : i32
    %3 = arith.subi %2, %c1_i32_0 : i32
    %4 = arith.minsi %arg1, %3 : i32
    %5 = arith.index_cast %arg0 : i32 to index
    %6 = memref.load %arg2[%5] : memref<2xi32, #tpu.memory_space<smem>>
    %7 = arith.addi %6, %4 : i32
    %c0_i32 = arith.constant 0 : i32
    %c0_i32_1 = arith.constant 0 : i32
    return %7, %c0_i32 : i32, i32
  }
  func.func @transform_4(%arg0: i32, %arg1: i32, %arg2: memref<2xi32, #tpu.memory_space<smem>>, %arg3: memref<2xi32, #tpu.memory_space<smem>>) -> (i32, i32) {
    %0 = arith.index_cast %arg0 : i32 to index
    %1 = memref.load %arg3[%0] : memref<2xi32, #tpu.memory_space<smem>>
    %c1_i32 = arith.constant 1 : i32
    %2 = arith.maxsi %1, %c1_i32 : i32
    %c1_i32_0 = arith.constant 1 : i32
    %3 = arith.subi %2, %c1_i32_0 : i32
    %4 = arith.minsi %arg1, %3 : i32
    %5 = arith.index_cast %arg0 : i32 to index
    %6 = memref.load %arg2[%5] : memref<2xi32, #tpu.memory_space<smem>>
    %7 = arith.addi %6, %4 : i32
    %c0_i32 = arith.constant 0 : i32
    %c0_i32_1 = arith.constant 0 : i32
    return %7, %c0_i32 : i32, i32
  }
  func.func @transform_5(%arg0: i32, %arg1: i32, %arg2: memref<2xi32, #tpu.memory_space<smem>>, %arg3: memref<2xi32, #tpu.memory_space<smem>>) -> (i32, i32) {
    %c0_i32 = arith.constant 0 : i32
    %c0_i32_0 = arith.constant 0 : i32
    %c0_i32_1 = arith.constant 0 : i32
    return %c0_i32, %c0_i32_0 : i32, i32
  }
  func.func @transform_6(%arg0: i32, %arg1: i32, %arg2: memref<2xi32, #tpu.memory_space<smem>>, %arg3: memref<2xi32, #tpu.memory_space<smem>>) -> (i32, i32) {
    %c0_i32 = arith.constant 0 : i32
    %c0_i32_0 = arith.constant 0 : i32
    return %c0_i32, %arg0 : i32, i32
  }
}

</mosaic_0001>

<llo_original>
// kernel: tpu_custom_call.1
$region0: #{tpu_custom_call.1}
  #allocation0 [shape = 'u32[]', space=smem, size = 0x4, offset = 0x4, fixed_abs, tag = 'smem constant byte address 0x4 - core index']
  #allocation1 [shape = 'u32[72,128]{1,0:T(1,128)}', space=vmem, size = 0x9000, scoped, tag = 'internal scratch']
  #allocation2 [shape = 'f32[1,128]{1,0:T(1,128)}', space=vmem, size = 0x200, scoped, tag = 'scratch operand']
  #allocation3 [shape = 'f32[1,128]{1,0:T(1,128)}', space=vmem, size = 0x200, scoped, tag = 'scratch operand']
  #allocation4 [shape = 'f32[128,128]{1,0:T(8,128)}', space=vmem, size = 0x10000, scoped, tag = 'scratch operand']
  #allocation5 [shape = 's32[1]{0}', space=sflag, size = 0x4, scoped, tag = 'scoped memory for tpu_custom_call.1']
  #allocation6 [shape = 'u8[512]{0}', space=smem, size = 0x200, scoped, tag = 'prefetched SMEM operand 0']
  #allocation7 [shape = 'u8[512]{0}', space=smem, size = 0x200, scoped, tag = 'prefetched SMEM operand 1']
  %s0 = inlined_call_operand.vmem [shape: s32[2], index: 0, kind: input, shape index: {}]
  %s1 = inlined_call_operand.vmem [shape: s32[2], index: 1, kind: input, shape index: {}]
  %s2 = inlined_call_operand.vmem [shape: f32[1536,8], index: 2, kind: input, shape index: {}]
  %s3 = inlined_call_operand.vmem [shape: bf16[1536,128], index: 3, kind: input, shape index: {}]
  %s4 = inlined_call_operand.vmem [shape: bf16[1536,128], index: 4, kind: input, shape index: {}]
  %s5 = inlined_call_operand.hbm [shape: bf16[1536,128], index: 5, kind: input, shape index: {}]
  %s6 = inlined_call_operand.hbm [shape: bf16[1536,128], index: 6, kind: input, shape index: {}]
  %s7 = inlined_call_operand.vmem [shape: f32[8,128], index: 7, kind: input, shape index: {}]
  %s8 = inlined_call_operand.hbm [shape: f32[128,256], index: 8, kind: output, shape index: {}]
  %s9 = sld [smem:[#allocation0]]
  $region77: #{tpu_custom_call.1} parent=0
    _
  %s11 = ssub.s32 1, %s9
  %s12 = scalar_select 0, %s11, %s9
  %s14 = sshll.u32 %s0, 4
  %s15 = int_to_ptr.vmem [resolvable:$true] %s14
  %17 = dma.vmem_to_smem %s15, 16, [#allocation6], [#allocation5]
  %s19 = sshll.u32 %s1, 4
  %s20 = int_to_ptr.vmem [resolvable:$true] %s19
  %22 = dma.vmem_to_smem %s20, 16, [#allocation7], [#allocation5]
  %24 = dma.done [#allocation5], 32
  %25 = sfence
  $region1: #{tpu_custom_call.1} parent=0
    #allocation8 [shape = 'u8[131072]{0}', space=vmem, size = 0x20000, scoped, tag = 'input window, operand 5']
    #allocation9 [shape = 's32[2]{0}', space=sflag, size = 0x8, scoped, tag = 'scoped memory for tpu_custom_call.1']
    #allocation10 [shape = 's32[2]{0}', space=sflag, size = 0x8, scoped, tag = 'scoped memory for tpu_custom_call.1']
    #allocation11 [shape = 'u8[131072]{0}', space=vmem, size = 0x20000, scoped, tag = 'input window, operand 6']
    #allocation12 [shape = 's32[2]{0}', space=sflag, size = 0x8, scoped, tag = 'scoped memory for tpu_custom_call.1']
    #allocation13 [shape = 'u8[131072]{0}', space=vmem, size = 0x20000, scoped, tag = 'output window, operand 0']
    %26 = vsyncpa [#allocation9], 0
    %s27 = scalar_lea.sflag [#allocation9], 1
    %28 = vsyncpa %s27, 0
    %29 = vsyncpa [#allocation12], 0
    %s30 = scalar_lea.sflag [#allocation12], 1
    %31 = vsyncpa %s30, 0
    %32 = vsyncpa [#allocation10], 0
    %s33 = scalar_lea.sflag [#allocation10], 1
    %34 = vsyncpa %s33, 0
    loop: start=0, step=1, limit=8
    $region2: #{tpu_custom_call.1} parent=1 // loop_pre_header
      _
    $region3: #{tpu_custom_call.1} parent=1 // loop_header
      %s36 = sphi 0, %s40
      %p37 = scmp.ge.s32.totalorder %s36, 8
      %s43 = sphi 0, %s55
      %s44 = sphi 0, %s51
      %s45 = sphi 0, %s43
      %s46 = sphi 0, %s44
      %s47 = sphi 0, %s45
      %s48 = sphi 0, %s46
      %s74 = sphi 0, %s76
      %s77 = sphi 0, %s74
      %s78 = sphi 0, %s77
      %s94 = sphi 0, %s78
      %s116 = sphi 0, %s118
      %s119 = sphi 0, %s116
      %s120 = sphi 0, %s119
      %s136 = sphi 0, %s120
      %s158 = sphi 0, %s160
      %s161 = sphi 0, %s158
      %s162 = sphi 0, %s161
      %s178 = sphi 0, %s162
      %s200 = sphi 0, %s202
      %s203 = sphi 0, %s200
      %s204 = sphi 0, %s203
      %s220 = sphi 0, %s204
      %s242 = sphi 0, %s244
      %s245 = sphi 0, %s242
      %s246 = sphi 0, %s245
      %s262 = sphi 0, %s246
      %s266 = sphi 0, %s266
      %s268 = sphi 0, %s266
      %s269 = sphi 0, %s268
      %s283 = sphi 0, %s269
      %s289 = sphi 0, %s291
      %s292 = sphi 0, %s289
      %s293 = sphi 0, %s292
      %s309 = sphi 0, %s293
    $region4: #{tpu_custom_call.1} parent=1 // loop_header_branch
      %39 = sbr.rel (%p37) target = $region8
    $region5: #{tpu_custom_call.1} parent=1 // loop_body
      %s41 = ssub.s32 %s36, 1
      %s42 = ssub.s32 %s36, 2
      %s49 = sadd.s32 1, %s44
      %p50 = scmp.ge.s32.totalorder %s49, 3
      %s51 = scalar_select %p50, 0, %s49
      %s52 = sadd.s32 1, %s43
      %s53 = scalar_select %p50, %s52, %s43
      %p54 = scmp.ge.s32.totalorder %s53, 2
      %s55 = scalar_select %p54, 0, %s53
      %s56 = sld [smem:[#allocation7 + %s43]]
      %p57 = scmp.gt.s32.totalorder %s56, 1
      %s58 = scalar_select %p57, %s56, 1
      %s59 = ssub.s32 %s58, 1
      %p60 = scmp.lt.s32.totalorder %s44, %s59
      %s61 = scalar_select %p60, %s44, %s59
      %s62 = sld [smem:[#allocation6 + %s43]]
      %s63 = sadd.s32 %s62, %s61
      %s64 = sld [smem:[#allocation7 + %s55]]
      %p65 = scmp.gt.s32.totalorder %s64, 1
      %s66 = scalar_select %p65, %s64, 1
      %s67 = ssub.s32 %s66, 1
      %p68 = scmp.lt.s32.totalorder %s51, %s67
      %s69 = scalar_select %p68, %s51, %s67
      %s70 = sld [smem:[#allocation6 + %s55]]
      %s71 = sadd.s32 %s70, %s69
      %s72 = ssub.s32 %s63, %s71
      %p73 = scmp.eq.s32.totalorder %s72, 0
      %s75 = sadd.s32 %s74, 1
      %s76 = scalar_select %p73, %s74, %s75
      %p79 = pneg %p73
      %p80 = scmp.eq.s32.totalorder %s36, 5
      %p81 = por %p79, %p80
      %p82 = scmp.ne.s32.totalorder %s74, %s77
      %p83 = scmp.eq.s32.totalorder %s36, 0
      %p84 = por %p82, %p83
      %p85 = scmp.ne.s32.totalorder %s74, %s77
      %p86 = scmp.eq.s32.totalorder %s41, 5
      %p87 = por %p85, %p86
      %p88 = scmp.ne.s32.totalorder %s77, %s78
      %p89 = scmp.eq.s32.totalorder %s41, 0
      %p90 = por %p88, %p89
      %p91 = scmp.ne.s32.totalorder %s77, %s78
      %p92 = scmp.eq.s32.totalorder %s42, 5
      %p93 = por %p91, %p92
      %p95 = scmp.ne.s32.totalorder %s78, %s94
      %p96 = scmp.eq.s32.totalorder %s42, 0
      %p97 = por %p95, %p96
      %s98 = sld [smem:[#allocation7 + %s43]]
      %p99 = scmp.gt.s32.totalorder %s98, 1
      %s100 = scalar_select %p99, %s98, 1
      %s101 = ssub.s32 %s100, 1
      %p102 = scmp.lt.s32.totalorder %s44, %s101
      %s103 = scalar_select %p102, %s44, %s101
      %s104 = sld [smem:[#allocation6 + %s43]]
      %s105 = sadd.s32 %s104, %s103
      %s106 = sld [smem:[#allocation7 + %s55]]
      %p107 = scmp.gt.s32.totalorder %s106, 1
      %s108 = scalar_select %p107, %s106, 1
      %s109 = ssub.s32 %s108, 1
      %p110 = scmp.lt.s32.totalorder %s51, %s109
      %s111 = scalar_select %p110, %s51, %s109
      %s112 = sld [smem:[#allocation6 + %s55]]
      %s113 = sadd.s32 %s112, %s111
      %s114 = ssub.s32 %s105, %s113
      %p115 = scmp.eq.s32.totalorder %s114, 0
      %s117 = sadd.s32 %s116, 1
      %s118 = scalar_select %p115, %s116, %s117
      %p121 = pneg %p115
      %p122 = scmp.eq.s32.totalorder %s36, 5
      %p123 = por %p121, %p122
      %p124 = scmp.ne.s32.totalorder %s116, %s119
      %p125 = scmp.eq.s32.totalorder %s36, 0
      %p126 = por %p124, %p125
      %p127 = scmp.ne.s32.totalorder %s116, %s119
      %p128 = scmp.eq.s32.totalorder %s41, 5
      %p129 = por %p127, %p128
      %p130 = scmp.ne.s32.totalorder %s119, %s120
      %p131 = scmp.eq.s32.totalorder %s41, 0
      %p132 = por %p130, %p131
      %p133 = scmp.ne.s32.totalorder %s119, %s120
      %p134 = scmp.eq.s32.totalorder %s42, 5
      %p135 = por %p133, %p134
      %p137 = scmp.ne.s32.totalorder %s120, %s136
      %p138 = scmp.eq.s32.totalorder %s42, 0
      %p139 = por %p137, %p138
      %s140 = sld [smem:[#allocation7 + %s43]]
      %p141 = scmp.gt.s32.totalorder %s140, 1
      %s142 = scalar_select %p141, %s140, 1
      %s143 = ssub.s32 %s142, 1
      %p144 = scmp.lt.s32.totalorder %s44, %s143
      %s145 = scalar_select %p144, %s44, %s143
      %s146 = sld [smem:[#allocation6 + %s43]]
      %s147 = sadd.s32 %s146, %s145
      %s148 = sld [smem:[#allocation7 + %s55]]
      %p149 = scmp.gt.s32.totalorder %s148, 1
      %s150 = scalar_select %p149, %s148, 1
      %s151 = ssub.s32 %s150, 1
      %p152 = scmp.lt.s32.totalorder %s51, %s151
      %s153 = scalar_select %p152, %s51, %s151
      %s154 = sld [smem:[#allocation6 + %s55]]
      %s155 = sadd.s32 %s154, %s153
      %s156 = ssub.s32 %s147, %s155
      %p157 = scmp.eq.s32.totalorder %s156, 0
      %s159 = sadd.s32 %s158, 1
      %s160 = scalar_select %p157, %s158, %s159
      %p163 = pneg %p157
      %p164 = scmp.eq.s32.totalorder %s36, 5
      %p165 = por %p163, %p164
      %p166 = scmp.ne.s32.totalorder %s158, %s161
      %p167 = scmp.eq.s32.totalorder %s36, 0
      %p168 = por %p166, %p167
      %p169 = scmp.ne.s32.totalorder %s158, %s161
      %p170 = scmp.eq.s32.totalorder %s41, 5
      %p171 = por %p169, %p170
      %p172 = scmp.ne.s32.totalorder %s161, %s162
      %p173 = scmp.eq.s32.totalorder %s41, 0
      %p174 = por %p172, %p173
      %p175 = scmp.ne.s32.totalorder %s161, %s162
      %p176 = scmp.eq.s32.totalorder %s42, 5
      %p177 = por %p175, %p176
      %p179 = scmp.ne.s32.totalorder %s162, %s178
      %p180 = scmp.eq.s32.totalorder %s42, 0
      %p181 = por %p179, %p180
      %s182 = sld [smem:[#allocation7 + %s43]]
      %p183 = scmp.gt.s32.totalorder %s182, 1
      %s184 = scalar_select %p183, %s182, 1
      %s185 = ssub.s32 %s184, 1
      %p186 = scmp.lt.s32.totalorder %s44, %s185
      %s187 = scalar_select %p186, %s44, %s185
      %s188 = sld [smem:[#allocation6 + %s43]]
      %s189 = sadd.s32 %s188, %s187
      %s190 = sld [smem:[#allocation7 + %s55]]
      %p191 = scmp.gt.s32.totalorder %s190, 1
      %s192 = scalar_select %p191, %s190, 1
      %s193 = ssub.s32 %s192, 1
      %p194 = scmp.lt.s32.totalorder %s51, %s193
      %s195 = scalar_select %p194, %s51, %s193
      %s196 = sld [smem:[#allocation6 + %s55]]
      %s197 = sadd.s32 %s196, %s195
      %s198 = ssub.s32 %s189, %s197
      %p199 = scmp.eq.s32.totalorder %s198, 0
      %s201 = sadd.s32 %s200, 1
      %s202 = scalar_select %p199, %s200, %s201
      %p205 = pneg %p199
      %p206 = scmp.eq.s32.totalorder %s36, 5
      %p207 = por %p205, %p206
      %p208 = scmp.ne.s32.totalorder %s200, %s203
      %p209 = scmp.eq.s32.totalorder %s36, 0
      %p210 = por %p208, %p209
      %p211 = scmp.ne.s32.totalorder %s200, %s203
      %p212 = scmp.eq.s32.totalorder %s41, 5
      %p213 = por %p211, %p212
      %p214 = scmp.ne.s32.totalorder %s203, %s204
      %p215 = scmp.eq.s32.totalorder %s41, 0
      %p216 = por %p214, %p215
      %p217 = scmp.ne.s32.totalorder %s203, %s204
      %p218 = scmp.eq.s32.totalorder %s42, 5
      %p219 = por %p217, %p218
      %p221 = scmp.ne.s32.totalorder %s204, %s220
      %p222 = scmp.eq.s32.totalorder %s42, 0
      %p223 = por %p221, %p222
      %s224 = sld [smem:[#allocation7 + %s43]]
      %p225 = scmp.gt.s32.totalorder %s224, 1
      %s226 = scalar_select %p225, %s224, 1
      %s227 = ssub.s32 %s226, 1
      %p228 = scmp.lt.s32.totalorder %s44, %s227
      %s229 = scalar_select %p228, %s44, %s227
      %s230 = sld [smem:[#allocation6 + %s43]]
      %s231 = sadd.s32 %s230, %s229
      %s232 = sld [smem:[#allocation7 + %s55]]
      %p233 = scmp.gt.s32.totalorder %s232, 1
      %s234 = scalar_select %p233, %s232, 1
      %s235 = ssub.s32 %s234, 1
      %p236 = scmp.lt.s32.totalorder %s51, %s235
      %s237 = scalar_select %p236, %s51, %s235
      %s238 = sld [smem:[#allocation6 + %s55]]
      %s239 = sadd.s32 %s238, %s237
      %s240 = ssub.s32 %s231, %s239
      %p241 = scmp.eq.s32.totalorder %s240, 0
      %s243 = sadd.s32 %s242, 1
      %s244 = scalar_select %p241, %s242, %s243
      %p247 = pneg %p241
      %p248 = scmp.eq.s32.totalorder %s36, 5
      %p249 = por %p247, %p248
      %p250 = scmp.ne.s32.totalorder %s242, %s245
      %p251 = scmp.eq.s32.totalorder %s36, 0
      %p252 = por %p250, %p251
      %p253 = scmp.ne.s32.totalorder %s242, %s245
      %p254 = scmp.eq.s32.totalorder %s41, 5
      %p255 = por %p253, %p254
      %p256 = scmp.ne.s32.totalorder %s245, %s246
      %p257 = scmp.eq.s32.totalorder %s41, 0
      %p258 = por %p256, %p257
      %p259 = scmp.ne.s32.totalorder %s245, %s246
      %p260 = scmp.eq.s32.totalorder %s42, 5
      %p261 = por %p259, %p260
      %p263 = scmp.ne.s32.totalorder %s246, %s262
      %p264 = scmp.eq.s32.totalorder %s42, 0
      %p265 = por %p263, %p264
      %s267 = sadd.s32 %s266, 1
      %p270 = scmp.eq.s32.totalorder %s36, 5
      %p271 = scmp.ne.s32.totalorder %s266, %s268
      %p272 = scmp.eq.s32.totalorder %s36, 0
      %p273 = por %p271, %p272
      %p274 = scmp.ne.s32.totalorder %s266, %s268
      %p275 = scmp.eq.s32.totalorder %s41, 5
      %p276 = por %p274, %p275
      %p277 = scmp.ne.s32.totalorder %s268, %s269
      %p278 = scmp.eq.s32.totalorder %s41, 0
      %p279 = por %p277, %p278
      %p280 = scmp.ne.s32.totalorder %s268, %s269
      %p281 = scmp.eq.s32.totalorder %s42, 5
      %p282 = por %p280, %p281
      %p284 = scmp.ne.s32.totalorder %s269, %s283
      %p285 = scmp.eq.s32.totalorder %s42, 0
      %p286 = por %p284, %p285
      %s287 = ssub.s32 %s43, %s55
      %p288 = scmp.eq.s32.totalorder %s287, 0
      %s290 = sadd.s32 %s289, 1
      %s291 = scalar_select %p288, %s289, %s290
      %p294 = pneg %p288
      %p295 = scmp.eq.s32.totalorder %s36, 5
      %p296 = por %p294, %p295
      %p297 = scmp.ne.s32.totalorder %s289, %s292
      %p298 = scmp.eq.s32.totalorder %s36, 0
      %p299 = por %p297, %p298
      %p300 = scmp.ne.s32.totalorder %s289, %s292
      %p301 = scmp.eq.s32.totalorder %s41, 5
      %p302 = por %p300, %p301
      %p303 = scmp.ne.s32.totalorder %s292, %s293
      %p304 = scmp.eq.s32.totalorder %s41, 0
      %p305 = por %p303, %p304
      %p306 = scmp.ne.s32.totalorder %s292, %s293
      %p307 = scmp.eq.s32.totalorder %s42, 5
      %p308 = por %p306, %p307
      %p310 = scmp.ne.s32.totalorder %s293, %s309
      %p311 = scmp.eq.s32.totalorder %s42, 0
      %p312 = por %p310, %p311
      %p313 = scmp.le.s32.totalorder 1, %s36
      %p314 = scmp.lt.s32.totalorder %s36, 7
      %p315 = pnand %p313, %p314
      %p316 = pneg %p315
      // Predicated region
      $region9: #{tpu_custom_call.1} parent=5 // pred_check
        _
      $region10: #{tpu_custom_call.1} parent=5 // pred_check_branch
        %318 = sbr.rel (%p315) target = $region12
      $region11: #{tpu_custom_call.1} parent=5 // pred_region
        %s319 = ssub.s32 %s36, 1
        // Predicated region
        $region13: #{tpu_custom_call.1} parent=11 // pred_check
          %p320 = pneg %p279
        $region14: #{tpu_custom_call.1} parent=11 // pred_check_branch
          %322 = sbr.rel (%p320) target = $region16
        $region15: #{tpu_custom_call.1} parent=11 // pred_region
          _
        $region16: #{tpu_custom_call.1} parent=11 // pred_fallthru
          _
      $region12: #{tpu_custom_call.1} parent=5 // pred_fallthru
        _
      %p323 = scmp.lt.s32.totalorder %s36, 6
      // Predicated region
      $region17: #{tpu_custom_call.1} parent=5 // pred_check
        %p324 = pneg %p323
      $region18: #{tpu_custom_call.1} parent=5 // pred_check_branch
        %326 = sbr.rel (%p324) target = $region20
      $region19: #{tpu_custom_call.1} parent=5 // pred_region
        // Predicated region
        $region21: #{tpu_custom_call.1} parent=19 // pred_check
          %p327 = pneg %p84
        $region22: #{tpu_custom_call.1} parent=19 // pred_check_branch
          %329 = sbr.rel (%p327) target = $region24
        $region23: #{tpu_custom_call.1} parent=19 // pred_region
          %s330 = sld [smem:[#allocation7 + %s43]]
          %p331 = scmp.gt.s32.totalorder %s330, 1
          %s332 = scalar_select %p331, %s330, 1
          %s333 = ssub.s32 %s332, 1
          %p334 = scmp.lt.s32.totalorder %s44, %s333
          %s335 = scalar_select %p334, %s44, %s333
          %s336 = sld [smem:[#allocation6 + %s43]]
          %s337 = sadd.s32 %s336, %s335
          %s338 = smul.u32 32, %s337
          %p339 = scmp.lt.s32.totalorder %s338, 191
          %s340 = scalar_select %p339, %s338, 191
          %s341 = smul.addr %s340, 8
          %s342 = scalar_lea.vmem %s2, %s341
          %s343 = sld [smem:[#allocation7 + %s43]]
          %p344 = scmp.gt.s32.totalorder %s343, 1
          %s345 = scalar_select %p344, %s343, 1
          %s346 = ssub.s32 %s345, 1
          %p347 = scmp.lt.s32.totalorder %s44, %s346
          %s348 = scalar_select %p347, %s44, %s346
          %s349 = sld [smem:[#allocation6 + %s43]]
          %s350 = sadd.s32 %s349, %s348
          %s351 = smul.u32 32, %s350
        $region24: #{tpu_custom_call.1} parent=19 // pred_fallthru
          _
        // Predicated region
        $region25: #{tpu_custom_call.1} parent=19 // pred_check
          %p352 = pneg %p126
        $region26: #{tpu_custom_call.1} parent=19 // pred_check_branch
          %354 = sbr.rel (%p352) target = $region28
        $region27: #{tpu_custom_call.1} parent=19 // pred_region
          %s355 = sld [smem:[#allocation7 + %s43]]
          %p356 = scmp.gt.s32.totalorder %s355, 1
          %s357 = scalar_select %p356, %s355, 1
          %s358 = ssub.s32 %s357, 1
          %p359 = scmp.lt.s32.totalorder %s44, %s358
          %s360 = scalar_select %p359, %s44, %s358
          %s361 = sld [smem:[#allocation6 + %s43]]
          %s362 = sadd.s32 %s361, %s360
          %s363 = smul.u32 32, %s362
          %p364 = scmp.lt.s32.totalorder %s363, 191
          %s365 = scalar_select %p364, %s363, 191
          %s366 = smul.addr %s365, 4
          %s367 = scalar_lea.vmem %s3, %s366
          %s368 = sld [smem:[#allocation7 + %s43]]
          %p369 = scmp.gt.s32.totalorder %s368, 1
          %s370 = scalar_select %p369, %s368, 1
          %s371 = ssub.s32 %s370, 1
          %p372 = scmp.lt.s32.totalorder %s44, %s371
          %s373 = scalar_select %p372, %s44, %s371
          %s374 = sld [smem:[#allocation6 + %s43]]
          %s375 = sadd.s32 %s374, %s373
          %s376 = smul.u32 32, %s375
        $region28: #{tpu_custom_call.1} parent=19 // pred_fallthru
          _
        // Predicated region
        $region29: #{tpu_custom_call.1} parent=19 // pred_check
          %p377 = pneg %p168
        $region30: #{tpu_custom_call.1} parent=19 // pred_check_branch
          %379 = sbr.rel (%p377) target = $region32
        $region31: #{tpu_custom_call.1} parent=19 // pred_region
          %s380 = sld [smem:[#allocation7 + %s43]]
          %p381 = scmp.gt.s32.totalorder %s380, 1
          %s382 = scalar_select %p381, %s380, 1
          %s383 = ssub.s32 %s382, 1
          %p384 = scmp.lt.s32.totalorder %s44, %s383
          %s385 = scalar_select %p384, %s44, %s383
          %s386 = sld [smem:[#allocation6 + %s43]]
          %s387 = sadd.s32 %s386, %s385
          %s388 = smul.u32 32, %s387
          %p389 = scmp.lt.s32.totalorder %s388, 191
          %s390 = scalar_select %p389, %s388, 191
          %s391 = smul.addr %s390, 4
          %s392 = scalar_lea.vmem %s4, %s391
          %s393 = sld [smem:[#allocation7 + %s43]]
          %p394 = scmp.gt.s32.totalorder %s393, 1
          %s395 = scalar_select %p394, %s393, 1
          %s396 = ssub.s32 %s395, 1
          %p397 = scmp.lt.s32.totalorder %s44, %s396
          %s398 = scalar_select %p397, %s44, %s396
          %s399 = sld [smem:[#allocation6 + %s43]]
          %s400 = sadd.s32 %s399, %s398
          %s401 = smul.u32 32, %s400
        $region32: #{tpu_custom_call.1} parent=19 // pred_fallthru
          _
        // Predicated region
        $region33: #{tpu_custom_call.1} parent=19 // pred_check
          %p402 = pneg %p210
        $region34: #{tpu_custom_call.1} parent=19 // pred_check_branch
          %404 = sbr.rel (%p402) target = $region36
        $region35: #{tpu_custom_call.1} parent=19 // pred_region
          %s405 = sand.u32 %s200, 1
          %s406 = scalar_lea.sflag [#allocation9], %s405
          %s407 = sand.u32 %s200, 1
          %s408 = smul.addr %s407, 128
          %s409 = scalar_lea.vmem [#allocation8], %s408
          %s410 = sld [smem:[#allocation7 + %s43]]
          %p411 = scmp.gt.s32.totalorder %s410, 1
          %s412 = scalar_select %p411, %s410, 1
          %s413 = ssub.s32 %s412, 1
          %p414 = scmp.lt.s32.totalorder %s44, %s413
          %s415 = scalar_select %p414, %s44, %s413
          %s416 = sld [smem:[#allocation6 + %s43]]
          %s417 = sadd.s32 %s416, %s415
          %s418 = smul.u32 32, %s417
          %420 = vsyncadd %s406, 0
          %s421 = smul.addr %s418, 4
          %s422 = scalar_lea.hbm %s5, %s421
          %s423 = sshll.u32 %s422, 4
          %s424 = int_to_ptr.hbm [resolvable:$true] %s423
          %s425 = sshll.u32 %s409, 4
          %s426 = int_to_ptr.vmem [resolvable:$true] %s425
          %431 = dma.hbm_to_vmem [thread:$0]  %s424, 2048, %s426, %s406, 64, 64, 4
        $region36: #{tpu_custom_call.1} parent=19 // pred_fallthru
          _
        // Predicated region
        $region37: #{tpu_custom_call.1} parent=19 // pred_check
          %p432 = pneg %p252
        $region38: #{tpu_custom_call.1} parent=19 // pred_check_branch
          %434 = sbr.rel (%p432) target = $region40
        $region39: #{tpu_custom_call.1} parent=19 // pred_region
          %s435 = sand.u32 %s242, 1
          %s436 = scalar_lea.sflag [#allocation12], %s435
          %s437 = sand.u32 %s242, 1
          %s438 = smul.addr %s437, 128
          %s439 = scalar_lea.vmem [#allocation11], %s438
          %s440 = sld [smem:[#allocation7 + %s43]]
          %p441 = scmp.gt.s32.totalorder %s440, 1
          %s442 = scalar_select %p441, %s440, 1
          %s443 = ssub.s32 %s442, 1
          %p444 = scmp.lt.s32.totalorder %s44, %s443
          %s445 = scalar_select %p444, %s44, %s443
          %s446 = sld [smem:[#allocation6 + %s43]]
          %s447 = sadd.s32 %s446, %s445
          %s448 = smul.u32 32, %s447
          %450 = vsyncadd %s436, 0
          %s451 = smul.addr %s448, 4
          %s452 = scalar_lea.hbm %s6, %s451
          %s453 = sshll.u32 %s452, 4
          %s454 = int_to_ptr.hbm [resolvable:$true] %s453
          %s455 = sshll.u32 %s439, 4
          %s456 = int_to_ptr.vmem [resolvable:$true] %s455
          %461 = dma.hbm_to_vmem [thread:$0]  %s454, 2048, %s456, %s436, 64, 64, 4
        $region40: #{tpu_custom_call.1} parent=19 // pred_fallthru
          _
      $region20: #{tpu_custom_call.1} parent=5 // pred_fallthru
        _
      %p462 = scmp.le.s32.totalorder 1, %s36
      %p463 = scmp.lt.s32.totalorder %s36, 7
      %p464 = pnand %p462, %p463
      %p465 = pneg %p464
      // Predicated region
      $region41: #{tpu_custom_call.1} parent=5 // pred_check
        _
      $region42: #{tpu_custom_call.1} parent=5 // pred_check_branch
        %467 = sbr.rel (%p464) target = $region44
      $region43: #{tpu_custom_call.1} parent=5 // pred_region
        %s468 = ssub.s32 %s36, 1
        %s469 = sand.u32 %s203, 1
        %s470 = scalar_lea.sflag [#allocation9], %s469
        %s471 = sand.u32 %s203, 1
        %s472 = smul.addr %s471, 128
        %s473 = scalar_lea.vmem [#allocation8], %s472
        // Predicated region
        $region45: #{tpu_custom_call.1} parent=43 // pred_check
          %p474 = pneg %p216
        $region46: #{tpu_custom_call.1} parent=43 // pred_check_branch
          %476 = sbr.rel (%p474) target = $region48
        $region47: #{tpu_custom_call.1} parent=43 // pred_region
          %478 = dma.done %s470, 2048
        $region48: #{tpu_custom_call.1} parent=43 // pred_fallthru
          _
        %s479 = sand.u32 %s245, 1
        %s480 = scalar_lea.sflag [#allocation12], %s479
        %s481 = sand.u32 %s245, 1
        %s482 = smul.addr %s481, 128
        %s483 = scalar_lea.vmem [#allocation11], %s482
        // Predicated region
        $region49: #{tpu_custom_call.1} parent=43 // pred_check
          %p484 = pneg %p258
        $region50: #{tpu_custom_call.1} parent=43 // pred_check_branch
          %486 = sbr.rel (%p484) target = $region52
        $region51: #{tpu_custom_call.1} parent=43 // pred_region
          %488 = dma.done %s480, 2048
        $region52: #{tpu_custom_call.1} parent=43 // pred_fallthru
          _
        %s489 = sld [smem:[#allocation7 + %s45]]
        %p490 = scmp.gt.s32.totalorder %s489, 1
        %s491 = scalar_select %p490, %s489, 1
        %s492 = ssub.s32 %s491, 1
        %p493 = scmp.lt.s32.totalorder %s46, %s492
        %s494 = scalar_select %p493, %s46, %s492
        %s495 = sld [smem:[#allocation6 + %s45]]
        %s496 = sadd.s32 %s495, %s494
        %s497 = smul.u32 32, %s496
        %p498 = scmp.lt.s32.totalorder %s497, 191
        %s499 = scalar_select %p498, %s497, 191
        %s500 = smul.addr %s499, 8
        %s501 = scalar_lea.vmem %s2, %s500
        %p502 = pneg %p90
        %p503 = pneg %p87
        %s504 = sld [smem:[#allocation7 + %s45]]
        %p505 = scmp.gt.s32.totalorder %s504, 1
        %s506 = scalar_select %p505, %s504, 1
        %s507 = ssub.s32 %s506, 1
        %p508 = scmp.lt.s32.totalorder %s46, %s507
        %s509 = scalar_select %p508, %s46, %s507
        %s510 = sld [smem:[#allocation6 + %s45]]
        %s511 = sadd.s32 %s510, %s509
        %s512 = smul.u32 32, %s511
        %p513 = scmp.lt.s32.totalorder %s512, 191
        %s514 = scalar_select %p513, %s512, 191
        %s515 = smul.addr %s514, 4
        %s516 = scalar_lea.vmem %s3, %s515
        %p517 = pneg %p132
        %p518 = pneg %p129
        %s519 = sld [smem:[#allocation7 + %s45]]
        %p520 = scmp.gt.s32.totalorder %s519, 1
        %s521 = scalar_select %p520, %s519, 1
        %s522 = ssub.s32 %s521, 1
        %p523 = scmp.lt.s32.totalorder %s46, %s522
        %s524 = scalar_select %p523, %s46, %s522
        %s525 = sld [smem:[#allocation6 + %s45]]
        %s526 = sadd.s32 %s525, %s524
        %s527 = smul.u32 32, %s526
        %p528 = scmp.lt.s32.totalorder %s527, 191
        %s529 = scalar_select %p528, %s527, 191
        %s530 = smul.addr %s529, 4
        %s531 = scalar_lea.vmem %s4, %s530
        %p532 = pneg %p174
        %p533 = pneg %p171
        %s534 = sand.u32 %s203, 1
        %s535 = scalar_lea.sflag [#allocation9], %s534
        %s536 = sand.u32 %s203, 1
        %s537 = smul.addr %s536, 128
        %s538 = scalar_lea.vmem [#allocation8], %s537
        %p539 = pneg %p216
        %p540 = pneg %p213
        %s541 = sand.u32 %s245, 1
        %s542 = scalar_lea.sflag [#allocation12], %s541
        %s543 = sand.u32 %s245, 1
        %s544 = smul.addr %s543, 128
        %s545 = scalar_lea.vmem [#allocation11], %s544
        %p546 = pneg %p258
        %p547 = pneg %p255
        %p548 = pneg %p279
        %p549 = pneg %p276
        %p550 = pneg %p305
        %p551 = pneg %p302
        %s552 = sand.u32 %s292, 1
        %s553 = scalar_lea.sflag [#allocation10], %s552
        %s554 = sand.u32 %s292, 1
        %s555 = smul.addr %s554, 128
        %s556 = scalar_lea.vmem [#allocation13], %s555
        %s557 = sld [smem:[#allocation7 + %s45]]
        %p558 = scmp.gt.s32.totalorder %s557, 1
        %s559 = scalar_select %p558, %s557, 1
        %s560 = ssub.s32 %s559, 1
        %p561 = scmp.lt.s32.totalorder %s46, %s560
        %s562 = scalar_select %p561, %s46, %s560
        %s563 = sld [smem:[#allocation6 + %s45]]
        %s564 = sadd.s32 %s563, %s562
        %s565 = smul.u32 32, %s564
        %p566 = scmp.lt.s32.totalorder %s565, 191
        %s567 = scalar_select %p566, %s565, 191
        %s568 = smul.addr %s567, 8
        %s569 = scalar_lea.vmem %s2, %s568
        %s570 = sld [smem:[#allocation7 + %s45]]
        %p571 = scmp.gt.s32.totalorder %s570, 1
        %s572 = scalar_select %p571, %s570, 1
        %s573 = ssub.s32 %s572, 1
        %p574 = scmp.lt.s32.totalorder %s46, %s573
        %s575 = scalar_select %p574, %s46, %s573
        %s576 = sld [smem:[#allocation6 + %s45]]
        %s577 = sadd.s32 %s576, %s575
        %s578 = smul.u32 32, %s577
        %s579 = sld [smem:[#allocation7 + %s45]]
        %p580 = scmp.gt.s32.totalorder %s579, 1
        %s581 = scalar_select %p580, %s579, 1
        %s582 = ssub.s32 %s581, 1
        %p583 = scmp.lt.s32.totalorder %s46, %s582
        %s584 = scalar_select %p583, %s46, %s582
        %s585 = sld [smem:[#allocation6 + %s45]]
        %s586 = sadd.s32 %s585, %s584
        %s587 = smul.u32 32, %s586
        %p588 = scmp.lt.s32.totalorder %s587, 191
        %s589 = scalar_select %p588, %s587, 191
        %s590 = smul.addr %s589, 4
        %s591 = scalar_lea.vmem %s3, %s590
        %s592 = sld [smem:[#allocation7 + %s45]]
        %p593 = scmp.gt.s32.totalorder %s592, 1
        %s594 = scalar_select %p593, %s592, 1
        %s595 = ssub.s32 %s594, 1
        %p596 = scmp.lt.s32.totalorder %s46, %s595
        %s597 = scalar_select %p596, %s46, %s595
        %s598 = sld [smem:[#allocation6 + %s45]]
        %s599 = sadd.s32 %s598, %s597
        %s600 = smul.u32 32, %s599
        %s601 = sld [smem:[#allocation7 + %s45]]
        %p602 = scmp.gt.s32.totalorder %s601, 1
        %s603 = scalar_select %p602, %s601, 1
        %s604 = ssub.s32 %s603, 1
        %p605 = scmp.lt.s32.totalorder %s46, %s604
        %s606 = scalar_select %p605, %s46, %s604
        %s607 = sld [smem:[#allocation6 + %s45]]
        %s608 = sadd.s32 %s607, %s606
        %s609 = smul.u32 32, %s608
        %p610 = scmp.lt.s32.totalorder %s609, 191
        %s611 = scalar_select %p610, %s609, 191
        %s612 = smul.addr %s611, 4
        %s613 = scalar_lea.vmem %s4, %s612
        %s614 = sld [smem:[#allocation7 + %s45]]
        %p615 = scmp.gt.s32.totalorder %s614, 1
        %s616 = scalar_select %p615, %s614, 1
        %s617 = ssub.s32 %s616, 1
        %p618 = scmp.lt.s32.totalorder %s46, %s617
        %s619 = scalar_select %p618, %s46, %s617
        %s620 = sld [smem:[#allocation6 + %s45]]
        %s621 = sadd.s32 %s620, %s619
        %s622 = smul.u32 32, %s621
        %s623 = sld [smem:[#allocation7 + %s45]]
        %p624 = scmp.gt.s32.totalorder %s623, 1
        %s625 = scalar_select %p624, %s623, 1
        %s626 = ssub.s32 %s625, 1
        %p627 = scmp.lt.s32.totalorder %s46, %s626
        %s628 = scalar_select %p627, %s46, %s626
        %s629 = sld [smem:[#allocation6 + %s45]]
        %s630 = sadd.s32 %s629, %s628
        %s631 = smul.u32 32, %s630
        %s632 = sld [smem:[#allocation7 + %s45]]
        %p633 = scmp.gt.s32.totalorder %s632, 1
        %s634 = scalar_select %p633, %s632, 1
        %s635 = ssub.s32 %s634, 1
        %p636 = scmp.lt.s32.totalorder %s46, %s635
        %s637 = scalar_select %p636, %s46, %s635
        %s638 = sld [smem:[#allocation6 + %s45]]
        %s639 = sadd.s32 %s638, %s637
        %s640 = smul.u32 32, %s639
        %p641 = scmp.eq.s32.totalorder %s46, 0
        // Predicated region
        $region53: #{tpu_custom_call.1} parent=43 // pred_check
          %p642 = pneg %p641
        $region54: #{tpu_custom_call.1} parent=43 // pred_check_branch
          %644 = sbr.rel (%p642) target = $region56
        $region55: #{tpu_custom_call.1} parent=43 // pred_region
          %645 = vst [vmem:[#allocation2] sm:$0x1] -1e+30
          %646 = vst [vmem:[#allocation3] sm:$0x1] 0.0
          %647 = vst [vmem:[#allocation4] sm:$0xff] 0.0
          %648 = vst [vmem:[#allocation4 + $0x8] sm:$0xff] 0.0
          %649 = vst [vmem:[#allocation4 + $0x10] sm:$0xff] 0.0
          %650 = vst [vmem:[#allocation4 + $0x18] sm:$0xff] 0.0
          %651 = vst [vmem:[#allocation4 + $0x20] sm:$0xff] 0.0
          %652 = vst [vmem:[#allocation4 + $0x28] sm:$0xff] 0.0
          %653 = vst [vmem:[#allocation4 + $0x30] sm:$0xff] 0.0
          %654 = vst [vmem:[#allocation4 + $0x38] sm:$0xff] 0.0
          %655 = vst [vmem:[#allocation4 + $0x40] sm:$0xff] 0.0
          %656 = vst [vmem:[#allocation4 + $0x48] sm:$0xff] 0.0
          %657 = vst [vmem:[#allocation4 + $0x50] sm:$0xff] 0.0
          %658 = vst [vmem:[#allocation4 + $0x58] sm:$0xff] 0.0
          %659 = vst [vmem:[#allocation4 + $0x60] sm:$0xff] 0.0
          %660 = vst [vmem:[#allocation4 + $0x68] sm:$0xff] 0.0
          %661 = vst [vmem:[#allocation4 + $0x70] sm:$0xff] 0.0
          %662 = vst [vmem:[#allocation4 + $0x78] sm:$0xff] 0.0
        $region56: #{tpu_custom_call.1} parent=43 // pred_fallthru
          _
        %s663 = sld [smem:[#allocation7 + %s45]]
        %p664 = scmp.lt.s32.totalorder %s46, %s663
        // Predicated region
        $region57: #{tpu_custom_call.1} parent=43 // pred_check
          %p665 = pneg %p664
        $region58: #{tpu_custom_call.1} parent=43 // pred_check_branch
          %667 = sbr.rel (%p665) target = $region60
        $region59: #{tpu_custom_call.1} parent=43 // pred_region
          %v668 = vld [vmem:[%s613] sm:$0xf]
          %v669 = vld [vmem:[%s613 + $0x4] sm:$0xf]
          %v670 = vld [vmem:[%s613 + $0x8] sm:$0xf]
          %v671 = vld [vmem:[%s613 + $0xc] sm:$0xf]
          %v672 = vld [vmem:[%s613 + $0x10] sm:$0xf]
          %v673 = vld [vmem:[%s613 + $0x14] sm:$0xf]
          %v674 = vld [vmem:[%s613 + $0x18] sm:$0xf]
          %v675 = vld [vmem:[%s613 + $0x1c] sm:$0xf]
          %v676 = vld [vmem:[%s613 + $0x20] sm:$0xf]
          %v677 = vld [vmem:[%s613 + $0x24] sm:$0xf]
          %v678 = vld [vmem:[%s613 + $0x28] sm:$0xf]
          %v679 = vld [vmem:[%s613 + $0x2c] sm:$0xf]
          %v680 = vld [vmem:[%s613 + $0x30] sm:$0xf]
          %v681 = vld [vmem:[%s613 + $0x34] sm:$0xf]
          %v682 = vld [vmem:[%s613 + $0x38] sm:$0xf]
          %v683 = vld [vmem:[%s613 + $0x3c] sm:$0xf]
          %v684 = vld [vmem:[%s613 + $0x40] sm:$0xf]
          %v685 = vld [vmem:[%s613 + $0x44] sm:$0xf]
          %v686 = vld [vmem:[%s613 + $0x48] sm:$0xf]
          %v687 = vld [vmem:[%s613 + $0x4c] sm:$0xf]
          %v688 = vld [vmem:[%s613 + $0x50] sm:$0xf]
          %v689 = vld [vmem:[%s613 + $0x54] sm:$0xf]
          %v690 = vld [vmem:[%s613 + $0x58] sm:$0xf]
          %v691 = vld [vmem:[%s613 + $0x5c] sm:$0xf]
          %v692 = vld [vmem:[%s613 + $0x60] sm:$0xf]
          %v693 = vld [vmem:[%s613 + $0x64] sm:$0xf]
          %v694 = vld [vmem:[%s613 + $0x68] sm:$0xf]
          %v695 = vld [vmem:[%s613 + $0x6c] sm:$0xf]
          %v696 = vld [vmem:[%s613 + $0x70] sm:$0xf]
          %v697 = vld [vmem:[%s613 + $0x74] sm:$0xf]
          %v698 = vld [vmem:[%s613 + $0x78] sm:$0xf]
          %v699 = vld [vmem:[%s613 + $0x7c] sm:$0xf]
          %v700 = vld [vmem:[%s591] sm:$0xf]
          %v701 = vld [vmem:[%s591 + $0x4] sm:$0xf]
          %v702 = vld [vmem:[%s591 + $0x8] sm:$0xf]
          %v703 = vld [vmem:[%s591 + $0xc] sm:$0xf]
          %v704 = vld [vmem:[%s591 + $0x10] sm:$0xf]
          %v705 = vld [vmem:[%s591 + $0x14] sm:$0xf]
          %v706 = vld [vmem:[%s591 + $0x18] sm:$0xf]
          %v707 = vld [vmem:[%s591 + $0x1c] sm:$0xf]
          %v708 = vld [vmem:[%s591 + $0x20] sm:$0xf]
          %v709 = vld [vmem:[%s591 + $0x24] sm:$0xf]
          %v710 = vld [vmem:[%s591 + $0x28] sm:$0xf]
          %v711 = vld [vmem:[%s591 + $0x2c] sm:$0xf]
          %v712 = vld [vmem:[%s591 + $0x30] sm:$0xf]
          %v713 = vld [vmem:[%s591 + $0x34] sm:$0xf]
          %v714 = vld [vmem:[%s591 + $0x38] sm:$0xf]
          %v715 = vld [vmem:[%s591 + $0x3c] sm:$0xf]
          %v716 = vld [vmem:[%s591 + $0x40] sm:$0xf]
          %v717 = vld [vmem:[%s591 + $0x44] sm:$0xf]
          %v718 = vld [vmem:[%s591 + $0x48] sm:$0xf]
          %v719 = vld [vmem:[%s591 + $0x4c] sm:$0xf]
          %v720 = vld [vmem:[%s591 + $0x50] sm:$0xf]
          %v721 = vld [vmem:[%s591 + $0x54] sm:$0xf]
          %v722 = vld [vmem:[%s591 + $0x58] sm:$0xf]
          %v723 = vld [vmem:[%s591 + $0x5c] sm:$0xf]
          %v724 = vld [vmem:[%s591 + $0x60] sm:$0xf]
          %v725 = vld [vmem:[%s591 + $0x64] sm:$0xf]
          %v726 = vld [vmem:[%s591 + $0x68] sm:$0xf]
          %v727 = vld [vmem:[%s591 + $0x6c] sm:$0xf]
          %v728 = vld [vmem:[%s591 + $0x70] sm:$0xf]
          %v729 = vld [vmem:[%s591 + $0x74] sm:$0xf]
          %v730 = vld [vmem:[%s591 + $0x78] sm:$0xf]
          %v731 = vld [vmem:[%s591 + $0x7c] sm:$0xf]
          %v732 = vunpack.c.l.bf16 %v700
          %v733 = vunpack.c.l.bf16 %v701
          %v734 = vunpack.c.l.bf16 %v702
          %v735 = vunpack.c.l.bf16 %v703
          %v736 = vunpack.c.l.bf16 %v704
          %v737 = vunpack.c.l.bf16 %v705
          %v738 = vunpack.c.l.bf16 %v706
          %v739 = vunpack.c.l.bf16 %v707
          %v740 = vunpack.c.l.bf16 %v708
          %v741 = vunpack.c.l.bf16 %v709
          %v742 = vunpack.c.l.bf16 %v710
          %v743 = vunpack.c.l.bf16 %v711
          %v744 = vunpack.c.l.bf16 %v712
          %v745 = vunpack.c.l.bf16 %v713
          %v746 = vunpack.c.l.bf16 %v714
          %v747 = vunpack.c.l.bf16 %v715
          %v748 = vunpack.c.l.bf16 %v716
          %v749 = vunpack.c.l.bf16 %v717
          %v750 = vunpack.c.l.bf16 %v718
          %v751 = vunpack.c.l.bf16 %v719
          %v752 = vunpack.c.l.bf16 %v720
          %v753 = vunpack.c.l.bf16 %v721
          %v754 = vunpack.c.l.bf16 %v722
          %v755 = vunpack.c.l.bf16 %v723
          %v756 = vunpack.c.l.bf16 %v724
          %v757 = vunpack.c.l.bf16 %v725
          %v758 = vunpack.c.l.bf16 %v726
          %v759 = vunpack.c.l.bf16 %v727
          %v760 = vunpack.c.l.bf16 %v728
          %v761 = vunpack.c.l.bf16 %v729
          %v762 = vunpack.c.l.bf16 %v730
          %v763 = vunpack.c.l.bf16 %v731
          %v764 = vunpack.c.l.bf16 %v668
          %v765 = vunpack.c.l.bf16 %v669
          %v766 = vunpack.c.l.bf16 %v670
          %v767 = vunpack.c.l.bf16 %v671
          %v768 = vunpack.c.l.bf16 %v672
          %v769 = vunpack.c.l.bf16 %v673
          %v770 = vunpack.c.l.bf16 %v674
          %v771 = vunpack.c.l.bf16 %v675
          %v772 = vunpack.c.l.bf16 %v676
          %v773 = vunpack.c.l.bf16 %v677
          %v774 = vunpack.c.l.bf16 %v678
          %v775 = vunpack.c.l.bf16 %v679
          %v776 = vunpack.c.l.bf16 %v680
          %v777 = vunpack.c.l.bf16 %v681
          %v778 = vunpack.c.l.bf16 %v682
          %v779 = vunpack.c.l.bf16 %v683
          %v780 = vunpack.c.l.bf16 %v684
          %v781 = vunpack.c.l.bf16 %v685
          %v782 = vunpack.c.l.bf16 %v686
          %v783 = vunpack.c.l.bf16 %v687
          %v784 = vunpack.c.l.bf16 %v688
          %v785 = vunpack.c.l.bf16 %v689
          %v786 = vunpack.c.l.bf16 %v690
          %v787 = vunpack.c.l.bf16 %v691
          %v788 = vunpack.c.l.bf16 %v692
          %v789 = vunpack.c.l.bf16 %v693
          %v790 = vunpack.c.l.bf16 %v694
          %v791 = vunpack.c.l.bf16 %v695
          %v792 = vunpack.c.l.bf16 %v696
          %v793 = vunpack.c.l.bf16 %v697
          %v794 = vunpack.c.l.bf16 %v698
          %v795 = vunpack.c.l.bf16 %v699
          %v796 = vld [vmem:[%s473] sm:$0xf]
          %v797 = vld [vmem:[%s473 + $0x4] sm:$0xf]
          %v798 = vld [vmem:[%s473 + $0x8] sm:$0xf]
          %v799 = vld [vmem:[%s473 + $0xc] sm:$0xf]
          %v800 = vld [vmem:[%s473 + $0x10] sm:$0xf]
          %v801 = vld [vmem:[%s473 + $0x14] sm:$0xf]
          %v802 = vld [vmem:[%s473 + $0x18] sm:$0xf]
          %v803 = vld [vmem:[%s473 + $0x1c] sm:$0xf]
          %v804 = vld [vmem:[%s473 + $0x20] sm:$0xf]
          %v805 = vld [vmem:[%s473 + $0x24] sm:$0xf]
          %v806 = vld [vmem:[%s473 + $0x28] sm:$0xf]
          %v807 = vld [vmem:[%s473 + $0x2c] sm:$0xf]
          %v808 = vld [vmem:[%s473 + $0x30] sm:$0xf]
          %v809 = vld [vmem:[%s473 + $0x34] sm:$0xf]
          %v810 = vld [vmem:[%s473 + $0x38] sm:$0xf]
          %v811 = vld [vmem:[%s473 + $0x3c] sm:$0xf]
          %v812 = vld [vmem:[%s473 + $0x40] sm:$0xf]
          %v813 = vld [vmem:[%s473 + $0x44] sm:$0xf]
          %v814 = vld [vmem:[%s473 + $0x48] sm:$0xf]
          %v815 = vld [vmem:[%s473 + $0x4c] sm:$0xf]
          %v816 = vld [vmem:[%s473 + $0x50] sm:$0xf]
          %v817 = vld [vmem:[%s473 + $0x54] sm:$0xf]
          %v818 = vld [vmem:[%s473 + $0x58] sm:$0xf]
          %v819 = vld [vmem:[%s473 + $0x5c] sm:$0xf]
          %v820 = vld [vmem:[%s473 + $0x60] sm:$0xf]
          %v821 = vld [vmem:[%s473 + $0x64] sm:$0xf]
          %v822 = vld [vmem:[%s473 + $0x68] sm:$0xf]
          %v823 = vld [vmem:[%s473 + $0x6c] sm:$0xf]
          %v824 = vld [vmem:[%s473 + $0x70] sm:$0xf]
          %v825 = vld [vmem:[%s473 + $0x74] sm:$0xf]
          %v826 = vld [vmem:[%s473 + $0x78] sm:$0xf]
          %v827 = vld [vmem:[%s473 + $0x7c] sm:$0xf]
          %v828 = vunpack.c.l.bf16 %v796
          %v829 = vunpack.c.l.bf16 %v797
          %v830 = vunpack.c.l.bf16 %v798
          %v831 = vunpack.c.l.bf16 %v799
          %v832 = vunpack.c.l.bf16 %v800
          %v833 = vunpack.c.l.bf16 %v801
          %v834 = vunpack.c.l.bf16 %v802
          %v835 = vunpack.c.l.bf16 %v803
          %v836 = vunpack.c.l.bf16 %v804
          %v837 = vunpack.c.l.bf16 %v805
          %v838 = vunpack.c.l.bf16 %v806
          %v839 = vunpack.c.l.bf16 %v807
          %v840 = vunpack.c.l.bf16 %v808
          %v841 = vunpack.c.l.bf16 %v809
          %v842 = vunpack.c.l.bf16 %v810
          %v843 = vunpack.c.l.bf16 %v811
          %v844 = vunpack.c.l.bf16 %v812
          %v845 = vunpack.c.l.bf16 %v813
          %v846 = vunpack.c.l.bf16 %v814
          %v847 = vunpack.c.l.bf16 %v815
          %v848 = vunpack.c.l.bf16 %v816
          %v849 = vunpack.c.l.bf16 %v817
          %v850 = vunpack.c.l.bf16 %v818
          %v851 = vunpack.c.l.bf16 %v819
          %v852 = vunpack.c.l.bf16 %v820
          %v853 = vunpack.c.l.bf16 %v821
          %v854 = vunpack.c.l.bf16 %v822
          %v855 = vunpack.c.l.bf16 %v823
          %v856 = vunpack.c.l.bf16 %v824
          %v857 = vunpack.c.l.bf16 %v825
          %v858 = vunpack.c.l.bf16 %v826
          %v859 = vunpack.c.l.bf16 %v827
          %v860 = vld [vmem:[%s483] sm:$0xf]
          %v861 = vld [vmem:[%s483 + $0x4] sm:$0xf]
          %v862 = vld [vmem:[%s483 + $0x8] sm:$0xf]
          %v863 = vld [vmem:[%s483 + $0xc] sm:$0xf]
          %v864 = vld [vmem:[%s483 + $0x10] sm:$0xf]
          %v865 = vld [vmem:[%s483 + $0x14] sm:$0xf]
          %v866 = vld [vmem:[%s483 + $0x18] sm:$0xf]
          %v867 = vld [vmem:[%s483 + $0x1c] sm:$0xf]
          %v868 = vld [vmem:[%s483 + $0x20] sm:$0xf]
          %v869 = vld [vmem:[%s483 + $0x24] sm:$0xf]
          %v870 = vld [vmem:[%s483 + $0x28] sm:$0xf]
          %v871 = vld [vmem:[%s483 + $0x2c] sm:$0xf]
          %v872 = vld [vmem:[%s483 + $0x30] sm:$0xf]
          %v873 = vld [vmem:[%s483 + $0x34] sm:$0xf]
          %v874 = vld [vmem:[%s483 + $0x38] sm:$0xf]
          %v875 = vld [vmem:[%s483 + $0x3c] sm:$0xf]
          %v876 = vld [vmem:[%s483 + $0x40] sm:$0xf]
          %v877 = vld [vmem:[%s483 + $0x44] sm:$0xf]
          %v878 = vld [vmem:[%s483 + $0x48] sm:$0xf]
          %v879 = vld [vmem:[%s483 + $0x4c] sm:$0xf]
          %v880 = vld [vmem:[%s483 + $0x50] sm:$0xf]
          %v881 = vld [vmem:[%s483 + $0x54] sm:$0xf]
          %v882 = vld [vmem:[%s483 + $0x58] sm:$0xf]
          %v883 = vld [vmem:[%s483 + $0x5c] sm:$0xf]
          %v884 = vld [vmem:[%s483 + $0x60] sm:$0xf]
          %v885 = vld [vmem:[%s483 + $0x64] sm:$0xf]
          %v886 = vld [vmem:[%s483 + $0x68] sm:$0xf]
          %v887 = vld [vmem:[%s483 + $0x6c] sm:$0xf]
          %v888 = vld [vmem:[%s483 + $0x70] sm:$0xf]
          %v889 = vld [vmem:[%s483 + $0x74] sm:$0xf]
          %v890 = vld [vmem:[%s483 + $0x78] sm:$0xf]
          %v891 = vld [vmem:[%s483 + $0x7c] sm:$0xf]
          %v892 = vunpack.c.l.bf16 %v860
          %v893 = vunpack.c.l.bf16 %v861
          %v894 = vunpack.c.l.bf16 %v862
          %v895 = vunpack.c.l.bf16 %v863
          %v896 = vunpack.c.l.bf16 %v864
          %v897 = vunpack.c.l.bf16 %v865
          %v898 = vunpack.c.l.bf16 %v866
          %v899 = vunpack.c.l.bf16 %v867
          %v900 = vunpack.c.l.bf16 %v868
          %v901 = vunpack.c.l.bf16 %v869
          %v902 = vunpack.c.l.bf16 %v870
          %v903 = vunpack.c.l.bf16 %v871
          %v904 = vunpack.c.l.bf16 %v872
          %v905 = vunpack.c.l.bf16 %v873
          %v906 = vunpack.c.l.bf16 %v874
          %v907 = vunpack.c.l.bf16 %v875
          %v908 = vunpack.c.l.bf16 %v876
          %v909 = vunpack.c.l.bf16 %v877
          %v910 = vunpack.c.l.bf16 %v878
          %v911 = vunpack.c.l.bf16 %v879
          %v912 = vunpack.c.l.bf16 %v880
          %v913 = vunpack.c.l.bf16 %v881
          %v914 = vunpack.c.l.bf16 %v882
          %v915 = vunpack.c.l.bf16 %v883
          %v916 = vunpack.c.l.bf16 %v884
          %v917 = vunpack.c.l.bf16 %v885
          %v918 = vunpack.c.l.bf16 %v886
          %v919 = vunpack.c.l.bf16 %v887
          %v920 = vunpack.c.l.bf16 %v888
          %v921 = vunpack.c.l.bf16 %v889
          %v922 = vunpack.c.l.bf16 %v890
          %v923 = vunpack.c.l.bf16 %v891
          %v924 = vld [vmem:[%s7] sm:$0x1]
          %v925 = vld [vmem:[%s7 + $0x1] sm:$0x1]
          %v926 = vld [vmem:[%s569] sm:$0xff]
          %v927 = vld [vmem:[%s569 + $0x8] sm:$0xff]
          %v928 = vld [vmem:[%s569 + $0x10] sm:$0xff]
          %v929 = vld [vmem:[%s569 + $0x18] sm:$0xff]
          %v930 = vld [vmem:[%s569 + $0x20] sm:$0xff]
          %v931 = vld [vmem:[%s569 + $0x28] sm:$0xff]
          %v932 = vld [vmem:[%s569 + $0x30] sm:$0xff]
          %v933 = vld [vmem:[%s569 + $0x38] sm:$0xff]
          %v934 = vld [vmem:[%s569 + $0x40] sm:$0xff]
          %v935 = vld [vmem:[%s569 + $0x48] sm:$0xff]
          %v936 = vld [vmem:[%s569 + $0x50] sm:$0xff]
          %v937 = vld [vmem:[%s569 + $0x58] sm:$0xff]
          %v938 = vld [vmem:[%s569 + $0x60] sm:$0xff]
          %v939 = vld [vmem:[%s569 + $0x68] sm:$0xff]
          %v940 = vld [vmem:[%s569 + $0x70] sm:$0xff]
          %v941 = vld [vmem:[%s569 + $0x78] sm:$0xff]
          %v942 = vld [vmem:[%s569 + $0x80] sm:$0xff]
          %v943 = vld [vmem:[%s569 + $0x88] sm:$0xff]
          %v944 = vld [vmem:[%s569 + $0x90] sm:$0xff]
          %v945 = vld [vmem:[%s569 + $0x98] sm:$0xff]
          %v946 = vld [vmem:[%s569 + $0xa0] sm:$0xff]
          %v947 = vld [vmem:[%s569 + $0xa8] sm:$0xff]
          %v948 = vld [vmem:[%s569 + $0xb0] sm:$0xff]
          %v949 = vld [vmem:[%s569 + $0xb8] sm:$0xff]
          %v950 = vld [vmem:[%s569 + $0xc0] sm:$0xff]
          %v951 = vld [vmem:[%s569 + $0xc8] sm:$0xff]
          %v952 = vld [vmem:[%s569 + $0xd0] sm:$0xff]
          %v953 = vld [vmem:[%s569 + $0xd8] sm:$0xff]
          %v954 = vld [vmem:[%s569 + $0xe0] sm:$0xff]
          %v955 = vld [vmem:[%s569 + $0xe8] sm:$0xff]
          %v956 = vld [vmem:[%s569 + $0xf0] sm:$0xff]
          %v957 = vld [vmem:[%s569 + $0xf8] sm:$0xff]
          %v958 = vperm.slane %v924, 0
          %v959 = vmul.f32 %v732, %v958
          %v960 = vmul.f32 %v733, %v958
          %v961 = vmul.f32 %v734, %v958
          %v962 = vmul.f32 %v735, %v958
          %v963 = vmul.f32 %v736, %v958
          %v964 = vmul.f32 %v737, %v958
          %v965 = vmul.f32 %v738, %v958
          %v966 = vmul.f32 %v739, %v958
          %v967 = vmul.f32 %v740, %v958
          %v968 = vmul.f32 %v741, %v958
          %v969 = vmul.f32 %v742, %v958
          %v970 = vmul.f32 %v743, %v958
          %v971 = vmul.f32 %v744, %v958
          %v972 = vmul.f32 %v745, %v958
          %v973 = vmul.f32 %v746, %v958
          %v974 = vmul.f32 %v747, %v958
          %v975 = vmul.f32 %v748, %v958
          %v976 = vmul.f32 %v749, %v958
          %v977 = vmul.f32 %v750, %v958
          %v978 = vmul.f32 %v751, %v958
          %v979 = vmul.f32 %v752, %v958
          %v980 = vmul.f32 %v753, %v958
          %v981 = vmul.f32 %v754, %v958
          %v982 = vmul.f32 %v755, %v958
          %v983 = vmul.f32 %v756, %v958
          %v984 = vmul.f32 %v757, %v958
          %v985 = vmul.f32 %v758, %v958
          %v986 = vmul.f32 %v759, %v958
          %v987 = vmul.f32 %v760, %v958
          %v988 = vmul.f32 %v761, %v958
          %v989 = vmul.f32 %v762, %v958
          %v990 = vmul.f32 %v763, %v958
          %v991 = vperm.slane %v925, 0
          %v992 = vmul.f32 %v764, %v991
          %v993 = vmul.f32 %v765, %v991
          %v994 = vmul.f32 %v766, %v991
          %v995 = vmul.f32 %v767, %v991
          %v996 = vmul.f32 %v768, %v991
          %v997 = vmul.f32 %v769, %v991
          %v998 = vmul.f32 %v770, %v991
          %v999 = vmul.f32 %v771, %v991
          %v1000 = vmul.f32 %v772, %v991
          %v1001 = vmul.f32 %v773, %v991
          %v1002 = vmul.f32 %v774, %v991
          %v1003 = vmul.f32 %v775, %v991
          %v1004 = vmul.f32 %v776, %v991
          %v1005 = vmul.f32 %v777, %v991
          %v1006 = vmul.f32 %v778, %v991
          %v1007 = vmul.f32 %v779, %v991
          %v1008 = vmul.f32 %v780, %v991
          %v1009 = vmul.f32 %v781, %v991
          %v1010 = vmul.f32 %v782, %v991
          %v1011 = vmul.f32 %v783, %v991
          %v1012 = vmul.f32 %v784, %v991
          %v1013 = vmul.f32 %v785, %v991
          %v1014 = vmul.f32 %v786, %v991
          %v1015 = vmul.f32 %v787, %v991
          %v1016 = vmul.f32 %v788, %v991
          %v1017 = vmul.f32 %v789, %v991
          %v1018 = vmul.f32 %v790, %v991
          %v1019 = vmul.f32 %v791, %v991
          %v1020 = vmul.f32 %v792, %v991
          %v1021 = vmul.f32 %v793, %v991
          %v1022 = vmul.f32 %v794, %v991
          %v1023 = vmul.f32 %v795, %v991
          %v1024 = vadd.f32 %v959, %v992
          %v1025 = vadd.f32 %v960, %v993
          %v1026 = vadd.f32 %v961, %v994
          %v1027 = vadd.f32 %v962, %v995
          %v1028 = vadd.f32 %v963, %v996
          %v1029 = vadd.f32 %v964, %v997
          %v1030 = vadd.f32 %v965, %v998
          %v1031 = vadd.f32 %v966, %v999
          %v1032 = vadd.f32 %v967, %v1000
          %v1033 = vadd.f32 %v968, %v1001
          %v1034 = vadd.f32 %v969, %v1002
          %v1035 = vadd.f32 %v970, %v1003
          %v1036 = vadd.f32 %v971, %v1004
          %v1037 = vadd.f32 %v972, %v1005
          %v1038 = vadd.f32 %v973, %v1006
          %v1039 = vadd.f32 %v974, %v1007
          %v1040 = vadd.f32 %v975, %v1008
          %v1041 = vadd.f32 %v976, %v1009
          %v1042 = vadd.f32 %v977, %v1010
          %v1043 = vadd.f32 %v978, %v1011
          %v1044 = vadd.f32 %v979, %v1012
          %v1045 = vadd.f32 %v980, %v1013
          %v1046 = vadd.f32 %v981, %v1014
          %v1047 = vadd.f32 %v982, %v1015
          %v1048 = vadd.f32 %v983, %v1016
          %v1049 = vadd.f32 %v984, %v1017
          %v1050 = vadd.f32 %v985, %v1018
          %v1051 = vadd.f32 %v986, %v1019
          %v1052 = vadd.f32 %v987, %v1020
          %v1053 = vadd.f32 %v988, %v1021
          %v1054 = vadd.f32 %v989, %v1022
          %v1055 = vadd.f32 %v990, %v1023
          %1056 = vadd.xlane.f32.xlu0 %v1024
          %v1057 = vpop.xlane.xlu0 %1056
          %1058 = vadd.xlane.f32.xlu0 %v1025
          %v1059 = vpop.xlane.xlu0 %1058
          %1060 = vadd.xlane.f32.xlu0 %v1026
          %v1061 = vpop.xlane.xlu0 %1060
          %1062 = vadd.xlane.f32.xlu0 %v1027
          %v1063 = vpop.xlane.xlu0 %1062
          %1064 = vadd.xlane.f32.xlu0 %v1028
          %v1065 = vpop.xlane.xlu0 %1064
          %1066 = vadd.xlane.f32.xlu0 %v1029
          %v1067 = vpop.xlane.xlu0 %1066
          %1068 = vadd.xlane.f32.xlu0 %v1030
          %v1069 = vpop.xlane.xlu0 %1068
          %1070 = vadd.xlane.f32.xlu0 %v1031
          %v1071 = vpop.xlane.xlu0 %1070
          %1072 = vadd.xlane.f32.xlu0 %v1032
          %v1073 = vpop.xlane.xlu0 %1072
          %1074 = vadd.xlane.f32.xlu0 %v1033
          %v1075 = vpop.xlane.xlu0 %1074
          %1076 = vadd.xlane.f32.xlu0 %v1034
          %v1077 = vpop.xlane.xlu0 %1076
          %1078 = vadd.xlane.f32.xlu0 %v1035
          %v1079 = vpop.xlane.xlu0 %1078
          %1080 = vadd.xlane.f32.xlu0 %v1036
          %v1081 = vpop.xlane.xlu0 %1080
          %1082 = vadd.xlane.f32.xlu0 %v1037
          %v1083 = vpop.xlane.xlu0 %1082
          %1084 = vadd.xlane.f32.xlu0 %v1038
          %v1085 = vpop.xlane.xlu0 %1084
          %1086 = vadd.xlane.f32.xlu0 %v1039
          %v1087 = vpop.xlane.xlu0 %1086
          %1088 = vadd.xlane.f32.xlu0 %v1040
          %v1089 = vpop.xlane.xlu0 %1088
          %1090 = vadd.xlane.f32.xlu0 %v1041
          %v1091 = vpop.xlane.xlu0 %1090
          %1092 = vadd.xlane.f32.xlu0 %v1042
          %v1093 = vpop.xlane.xlu0 %1092
          %1094 = vadd.xlane.f32.xlu0 %v1043
          %v1095 = vpop.xlane.xlu0 %1094
          %1096 = vadd.xlane.f32.xlu0 %v1044
          %v1097 = vpop.xlane.xlu0 %1096
          %1098 = vadd.xlane.f32.xlu0 %v1045
          %v1099 = vpop.xlane.xlu0 %1098
          %1100 = vadd.xlane.f32.xlu0 %v1046
          %v1101 = vpop.xlane.xlu0 %1100
          %1102 = vadd.xlane.f32.xlu0 %v1047
          %v1103 = vpop.xlane.xlu0 %1102
          %1104 = vadd.xlane.f32.xlu0 %v1048
          %v1105 = vpop.xlane.xlu0 %1104
          %1106 = vadd.xlane.f32.xlu0 %v1049
          %v1107 = vpop.xlane.xlu0 %1106
          %1108 = vadd.xlane.f32.xlu0 %v1050
          %v1109 = vpop.xlane.xlu0 %1108
          %1110 = vadd.xlane.f32.xlu0 %v1051
          %v1111 = vpop.xlane.xlu0 %1110
          %1112 = vadd.xlane.f32.xlu0 %v1052
          %v1113 = vpop.xlane.xlu0 %1112
          %1114 = vadd.xlane.f32.xlu0 %v1053
          %v1115 = vpop.xlane.xlu0 %1114
          %1116 = vadd.xlane.f32.xlu0 %v1054
          %v1117 = vpop.xlane.xlu0 %1116
          %1118 = vadd.xlane.f32.xlu0 %v1055
          %v1119 = vpop.xlane.xlu0 %1118
          %v1120 = vmul.f32 %v764, %v828
          %v1121 = vmul.f32 %v765, %v829
          %v1122 = vmul.f32 %v766, %v830
          %v1123 = vmul.f32 %v767, %v831
          %v1124 = vmul.f32 %v768, %v832
          %v1125 = vmul.f32 %v769, %v833
          %v1126 = vmul.f32 %v770, %v834
          %v1127 = vmul.f32 %v771, %v835
          %v1128 = vmul.f32 %v772, %v836
          %v1129 = vmul.f32 %v773, %v837
          %v1130 = vmul.f32 %v774, %v838
          %v1131 = vmul.f32 %v775, %v839
          %v1132 = vmul.f32 %v776, %v840
          %v1133 = vmul.f32 %v777, %v841
          %v1134 = vmul.f32 %v778, %v842
          %v1135 = vmul.f32 %v779, %v843
          %v1136 = vmul.f32 %v780, %v844
          %v1137 = vmul.f32 %v781, %v845
          %v1138 = vmul.f32 %v782, %v846
          %v1139 = vmul.f32 %v783, %v847
          %v1140 = vmul.f32 %v784, %v848
          %v1141 = vmul.f32 %v785, %v849
          %v1142 = vmul.f32 %v786, %v850
          %v1143 = vmul.f32 %v787, %v851
          %v1144 = vmul.f32 %v788, %v852
          %v1145 = vmul.f32 %v789, %v853
          %v1146 = vmul.f32 %v790, %v854
          %v1147 = vmul.f32 %v791, %v855
          %v1148 = vmul.f32 %v792, %v856
          %v1149 = vmul.f32 %v793, %v857
          %v1150 = vmul.f32 %v794, %v858
          %v1151 = vmul.f32 %v795, %v859
          %1152 = vadd.xlane.f32.xlu0 %v1120
          %v1153 = vpop.xlane.xlu0 %1152
          %1154 = vadd.xlane.f32.xlu0 %v1121
          %v1155 = vpop.xlane.xlu0 %1154
          %1156 = vadd.xlane.f32.xlu0 %v1122
          %v1157 = vpop.xlane.xlu0 %1156
          %1158 = vadd.xlane.f32.xlu0 %v1123
          %v1159 = vpop.xlane.xlu0 %1158
          %1160 = vadd.xlane.f32.xlu0 %v1124
          %v1161 = vpop.xlane.xlu0 %1160
          %1162 = vadd.xlane.f32.xlu0 %v1125
          %v1163 = vpop.xlane.xlu0 %1162
          %1164 = vadd.xlane.f32.xlu0 %v1126
          %v1165 = vpop.xlane.xlu0 %1164
          %1166 = vadd.xlane.f32.xlu0 %v1127
          %v1167 = vpop.xlane.xlu0 %1166
          %1168 = vadd.xlane.f32.xlu0 %v1128
          %v1169 = vpop.xlane.xlu0 %1168
          %1170 = vadd.xlane.f32.xlu0 %v1129
          %v1171 = vpop.xlane.xlu0 %1170
          %1172 = vadd.xlane.f32.xlu0 %v1130
          %v1173 = vpop.xlane.xlu0 %1172
          %1174 = vadd.xlane.f32.xlu0 %v1131
          %v1175 = vpop.xlane.xlu0 %1174
          %1176 = vadd.xlane.f32.xlu0 %v1132
          %v1177 = vpop.xlane.xlu0 %1176
          %1178 = vadd.xlane.f32.xlu0 %v1133
          %v1179 = vpop.xlane.xlu0 %1178
          %1180 = vadd.xlane.f32.xlu0 %v1134
          %v1181 = vpop.xlane.xlu0 %1180
          %1182 = vadd.xlane.f32.xlu0 %v1135
          %v1183 = vpop.xlane.xlu0 %1182
          %1184 = vadd.xlane.f32.xlu0 %v1136
          %v1185 = vpop.xlane.xlu0 %1184
          %1186 = vadd.xlane.f32.xlu0 %v1137
          %v1187 = vpop.xlane.xlu0 %1186
          %1188 = vadd.xlane.f32.xlu0 %v1138
          %v1189 = vpop.xlane.xlu0 %1188
          %1190 = vadd.xlane.f32.xlu0 %v1139
          %v1191 = vpop.xlane.xlu0 %1190
          %1192 = vadd.xlane.f32.xlu0 %v1140
          %v1193 = vpop.xlane.xlu0 %1192
          %1194 = vadd.xlane.f32.xlu0 %v1141
          %v1195 = vpop.xlane.xlu0 %1194
          %1196 = vadd.xlane.f32.xlu0 %v1142
          %v1197 = vpop.xlane.xlu0 %1196
          %1198 = vadd.xlane.f32.xlu0 %v1143
          %v1199 = vpop.xlane.xlu0 %1198
          %1200 = vadd.xlane.f32.xlu0 %v1144
          %v1201 = vpop.xlane.xlu0 %1200
          %1202 = vadd.xlane.f32.xlu0 %v1145
          %v1203 = vpop.xlane.xlu0 %1202
          %1204 = vadd.xlane.f32.xlu0 %v1146
          %v1205 = vpop.xlane.xlu0 %1204
          %1206 = vadd.xlane.f32.xlu0 %v1147
          %v1207 = vpop.xlane.xlu0 %1206
          %1208 = vadd.xlane.f32.xlu0 %v1148
          %v1209 = vpop.xlane.xlu0 %1208
          %1210 = vadd.xlane.f32.xlu0 %v1149
          %v1211 = vpop.xlane.xlu0 %1210
          %1212 = vadd.xlane.f32.xlu0 %v1150
          %v1213 = vpop.xlane.xlu0 %1212
          %1214 = vadd.xlane.f32.xlu0 %v1151
          %v1215 = vpop.xlane.xlu0 %1214
          %v1216 = vmul.f32 %v764, %v892
          %v1217 = vmul.f32 %v765, %v893
          %v1218 = vmul.f32 %v766, %v894
          %v1219 = vmul.f32 %v767, %v895
          %v1220 = vmul.f32 %v768, %v896
          %v1221 = vmul.f32 %v769, %v897
          %v1222 = vmul.f32 %v770, %v898
          %v1223 = vmul.f32 %v771, %v899
          %v1224 = vmul.f32 %v772, %v900
          %v1225 = vmul.f32 %v773, %v901
          %v1226 = vmul.f32 %v774, %v902
          %v1227 = vmul.f32 %v775, %v903
          %v1228 = vmul.f32 %v776, %v904
          %v1229 = vmul.f32 %v777, %v905
          %v1230 = vmul.f32 %v778, %v906
          %v1231 = vmul.f32 %v779, %v907
          %v1232 = vmul.f32 %v780, %v908
          %v1233 = vmul.f32 %v781, %v909
          %v1234 = vmul.f32 %v782, %v910
          %v1235 = vmul.f32 %v783, %v911
          %v1236 = vmul.f32 %v784, %v912
          %v1237 = vmul.f32 %v785, %v913
          %v1238 = vmul.f32 %v786, %v914
          %v1239 = vmul.f32 %v787, %v915
          %v1240 = vmul.f32 %v788, %v916
          %v1241 = vmul.f32 %v789, %v917
          %v1242 = vmul.f32 %v790, %v918
          %v1243 = vmul.f32 %v791, %v919
          %v1244 = vmul.f32 %v792, %v920
          %v1245 = vmul.f32 %v793, %v921
          %v1246 = vmul.f32 %v794, %v922
          %v1247 = vmul.f32 %v795, %v923
          %1248 = vadd.xlane.f32.xlu0 %v1216
          %v1249 = vpop.xlane.xlu0 %1248
          %1250 = vadd.xlane.f32.xlu0 %v1217
          %v1251 = vpop.xlane.xlu0 %1250
          %1252 = vadd.xlane.f32.xlu0 %v1218
          %v1253 = vpop.xlane.xlu0 %1252
          %1254 = vadd.xlane.f32.xlu0 %v1219
          %v1255 = vpop.xlane.xlu0 %1254
          %1256 = vadd.xlane.f32.xlu0 %v1220
          %v1257 = vpop.xlane.xlu0 %1256
          %1258 = vadd.xlane.f32.xlu0 %v1221
          %v1259 = vpop.xlane.xlu0 %1258
          %1260 = vadd.xlane.f32.xlu0 %v1222
          %v1261 = vpop.xlane.xlu0 %1260
          %1262 = vadd.xlane.f32.xlu0 %v1223
          %v1263 = vpop.xlane.xlu0 %1262
          %1264 = vadd.xlane.f32.xlu0 %v1224
          %v1265 = vpop.xlane.xlu0 %1264
          %1266 = vadd.xlane.f32.xlu0 %v1225
          %v1267 = vpop.xlane.xlu0 %1266
          %1268 = vadd.xlane.f32.xlu0 %v1226
          %v1269 = vpop.xlane.xlu0 %1268
          %1270 = vadd.xlane.f32.xlu0 %v1227
          %v1271 = vpop.xlane.xlu0 %1270
          %1272 = vadd.xlane.f32.xlu0 %v1228
          %v1273 = vpop.xlane.xlu0 %1272
          %1274 = vadd.xlane.f32.xlu0 %v1229
          %v1275 = vpop.xlane.xlu0 %1274
          %1276 = vadd.xlane.f32.xlu0 %v1230
          %v1277 = vpop.xlane.xlu0 %1276
          %1278 = vadd.xlane.f32.xlu0 %v1231
          %v1279 = vpop.xlane.xlu0 %1278
          %1280 = vadd.xlane.f32.xlu0 %v1232
          %v1281 = vpop.xlane.xlu0 %1280
          %1282 = vadd.xlane.f32.xlu0 %v1233
          %v1283 = vpop.xlane.xlu0 %1282
          %1284 = vadd.xlane.f32.xlu0 %v1234
          %v1285 = vpop.xlane.xlu0 %1284
          %1286 = vadd.xlane.f32.xlu0 %v1235
          %v1287 = vpop.xlane.xlu0 %1286
          %1288 = vadd.xlane.f32.xlu0 %v1236
          %v1289 = vpop.xlane.xlu0 %1288
          %1290 = vadd.xlane.f32.xlu0 %v1237
          %v1291 = vpop.xlane.xlu0 %1290
          %1292 = vadd.xlane.f32.xlu0 %v1238
          %v1293 = vpop.xlane.xlu0 %1292
          %1294 = vadd.xlane.f32.xlu0 %v1239
          %v1295 = vpop.xlane.xlu0 %1294
          %1296 = vadd.xlane.f32.xlu0 %v1240
          %v1297 = vpop.xlane.xlu0 %1296
          %1298 = vadd.xlane.f32.xlu0 %v1241
          %v1299 = vpop.xlane.xlu0 %1298
          %1300 = vadd.xlane.f32.xlu0 %v1242
          %v1301 = vpop.xlane.xlu0 %1300
          %1302 = vadd.xlane.f32.xlu0 %v1243
          %v1303 = vpop.xlane.xlu0 %1302
          %1304 = vadd.xlane.f32.xlu0 %v1244
          %v1305 = vpop.xlane.xlu0 %1304
          %1306 = vadd.xlane.f32.xlu0 %v1245
          %v1307 = vpop.xlane.xlu0 %1306
          %1308 = vadd.xlane.f32.xlu0 %v1246
          %v1309 = vpop.xlane.xlu0 %1308
          %1310 = vadd.xlane.f32.xlu0 %v1247
          %v1311 = vpop.xlane.xlu0 %1310
          %v1312 = vmul.f32 %v1153, 2.0
          %v1313 = vmul.f32 %v1155, 2.0
          %v1314 = vmul.f32 %v1157, 2.0
          %v1315 = vmul.f32 %v1159, 2.0
          %v1316 = vmul.f32 %v1161, 2.0
          %v1317 = vmul.f32 %v1163, 2.0
          %v1318 = vmul.f32 %v1165, 2.0
          %v1319 = vmul.f32 %v1167, 2.0
          %v1320 = vmul.f32 %v1169, 2.0
          %v1321 = vmul.f32 %v1171, 2.0
          %v1322 = vmul.f32 %v1173, 2.0
          %v1323 = vmul.f32 %v1175, 2.0
          %v1324 = vmul.f32 %v1177, 2.0
          %v1325 = vmul.f32 %v1179, 2.0
          %v1326 = vmul.f32 %v1181, 2.0
          %v1327 = vmul.f32 %v1183, 2.0
          %v1328 = vmul.f32 %v1185, 2.0
          %v1329 = vmul.f32 %v1187, 2.0
          %v1330 = vmul.f32 %v1189, 2.0
          %v1331 = vmul.f32 %v1191, 2.0
          %v1332 = vmul.f32 %v1193, 2.0
          %v1333 = vmul.f32 %v1195, 2.0
          %v1334 = vmul.f32 %v1197, 2.0
          %v1335 = vmul.f32 %v1199, 2.0
          %v1336 = vmul.f32 %v1201, 2.0
          %v1337 = vmul.f32 %v1203, 2.0
          %v1338 = vmul.f32 %v1205, 2.0
          %v1339 = vmul.f32 %v1207, 2.0
          %v1340 = vmul.f32 %v1209, 2.0
          %v1341 = vmul.f32 %v1211, 2.0
          %v1342 = vmul.f32 %v1213, 2.0
          %v1343 = vmul.f32 %v1215, 2.0
          %v1344 = vmul.f32 %v1312, %v926
          %v1345 = vmul.f32 %v1313, %v927
          %v1346 = vmul.f32 %v1314, %v928
          %v1347 = vmul.f32 %v1315, %v929
          %v1348 = vmul.f32 %v1316, %v930
          %v1349 = vmul.f32 %v1317, %v931
          %v1350 = vmul.f32 %v1318, %v932
          %v1351 = vmul.f32 %v1319, %v933
          %v1352 = vmul.f32 %v1320, %v934
          %v1353 = vmul.f32 %v1321, %v935
          %v1354 = vmul.f32 %v1322, %v936
          %v1355 = vmul.f32 %v1323, %v937
          %v1356 = vmul.f32 %v1324, %v938
          %v1357 = vmul.f32 %v1325, %v939
          %v1358 = vmul.f32 %v1326, %v940
          %v1359 = vmul.f32 %v1327, %v941
          %v1360 = vmul.f32 %v1328, %v942
          %v1361 = vmul.f32 %v1329, %v943
          %v1362 = vmul.f32 %v1330, %v944
          %v1363 = vmul.f32 %v1331, %v945
          %v1364 = vmul.f32 %v1332, %v946
          %v1365 = vmul.f32 %v1333, %v947
          %v1366 = vmul.f32 %v1334, %v948
          %v1367 = vmul.f32 %v1335, %v949
          %v1368 = vmul.f32 %v1336, %v950
          %v1369 = vmul.f32 %v1337, %v951
          %v1370 = vmul.f32 %v1338, %v952
          %v1371 = vmul.f32 %v1339, %v953
          %v1372 = vmul.f32 %v1340, %v954
          %v1373 = vmul.f32 %v1341, %v955
          %v1374 = vmul.f32 %v1342, %v956
          %v1375 = vmul.f32 %v1343, %v957
          %v1376 = vsub.f32 %v1057, %v1344
          %v1377 = vsub.f32 %v1059, %v1345
          %v1378 = vsub.f32 %v1061, %v1346
          %v1379 = vsub.f32 %v1063, %v1347
          %v1380 = vsub.f32 %v1065, %v1348
          %v1381 = vsub.f32 %v1067, %v1349
          %v1382 = vsub.f32 %v1069, %v1350
          %v1383 = vsub.f32 %v1071, %v1351
          %v1384 = vsub.f32 %v1073, %v1352
          %v1385 = vsub.f32 %v1075, %v1353
          %v1386 = vsub.f32 %v1077, %v1354
          %v1387 = vsub.f32 %v1079, %v1355
          %v1388 = vsub.f32 %v1081, %v1356
          %v1389 = vsub.f32 %v1083, %v1357
          %v1390 = vsub.f32 %v1085, %v1358
          %v1391 = vsub.f32 %v1087, %v1359
          %v1392 = vsub.f32 %v1089, %v1360
          %v1393 = vsub.f32 %v1091, %v1361
          %v1394 = vsub.f32 %v1093, %v1362
          %v1395 = vsub.f32 %v1095, %v1363
          %v1396 = vsub.f32 %v1097, %v1364
          %v1397 = vsub.f32 %v1099, %v1365
          %v1398 = vsub.f32 %v1101, %v1366
          %v1399 = vsub.f32 %v1103, %v1367
          %v1400 = vsub.f32 %v1105, %v1368
          %v1401 = vsub.f32 %v1107, %v1369
          %v1402 = vsub.f32 %v1109, %v1370
          %v1403 = vsub.f32 %v1111, %v1371
          %v1404 = vsub.f32 %v1113, %v1372
          %v1405 = vsub.f32 %v1115, %v1373
          %v1406 = vsub.f32 %v1117, %v1374
          %v1407 = vsub.f32 %v1119, %v1375
          %v1408 = vmul.f32 %v1249, 2.0
          %v1409 = vmul.f32 %v1251, 2.0
          %v1410 = vmul.f32 %v1253, 2.0
          %v1411 = vmul.f32 %v1255, 2.0
          %v1412 = vmul.f32 %v1257, 2.0
          %v1413 = vmul.f32 %v1259, 2.0
          %v1414 = vmul.f32 %v1261, 2.0
          %v1415 = vmul.f32 %v1263, 2.0
          %v1416 = vmul.f32 %v1265, 2.0
          %v1417 = vmul.f32 %v1267, 2.0
          %v1418 = vmul.f32 %v1269, 2.0
          %v1419 = vmul.f32 %v1271, 2.0
          %v1420 = vmul.f32 %v1273, 2.0
          %v1421 = vmul.f32 %v1275, 2.0
          %v1422 = vmul.f32 %v1277, 2.0
          %v1423 = vmul.f32 %v1279, 2.0
          %v1424 = vmul.f32 %v1281, 2.0
          %v1425 = vmul.f32 %v1283, 2.0
          %v1426 = vmul.f32 %v1285, 2.0
          %v1427 = vmul.f32 %v1287, 2.0
          %v1428 = vmul.f32 %v1289, 2.0
          %v1429 = vmul.f32 %v1291, 2.0
          %v1430 = vmul.f32 %v1293, 2.0
          %v1431 = vmul.f32 %v1295, 2.0
          %v1432 = vmul.f32 %v1297, 2.0
          %v1433 = vmul.f32 %v1299, 2.0
          %v1434 = vmul.f32 %v1301, 2.0
          %v1435 = vmul.f32 %v1303, 2.0
          %v1436 = vmul.f32 %v1305, 2.0
          %v1437 = vmul.f32 %v1307, 2.0
          %v1438 = vmul.f32 %v1309, 2.0
          %v1439 = vmul.f32 %v1311, 2.0
          %v1440 = vmul.f32 %v1408, %v926
          %v1441 = vmul.f32 %v1409, %v927
          %v1442 = vmul.f32 %v1410, %v928
          %v1443 = vmul.f32 %v1411, %v929
          %v1444 = vmul.f32 %v1412, %v930
          %v1445 = vmul.f32 %v1413, %v931
          %v1446 = vmul.f32 %v1414, %v932
          %v1447 = vmul.f32 %v1415, %v933
          %v1448 = vmul.f32 %v1416, %v934
          %v1449 = vmul.f32 %v1417, %v935
          %v1450 = vmul.f32 %v1418, %v936
          %v1451 = vmul.f32 %v1419, %v937
          %v1452 = vmul.f32 %v1420, %v938
          %v1453 = vmul.f32 %v1421, %v939
          %v1454 = vmul.f32 %v1422, %v940
          %v1455 = vmul.f32 %v1423, %v941
          %v1456 = vmul.f32 %v1424, %v942
          %v1457 = vmul.f32 %v1425, %v943
          %v1458 = vmul.f32 %v1426, %v944
          %v1459 = vmul.f32 %v1427, %v945
          %v1460 = vmul.f32 %v1428, %v946
          %v1461 = vmul.f32 %v1429, %v947
          %v1462 = vmul.f32 %v1430, %v948
          %v1463 = vmul.f32 %v1431, %v949
          %v1464 = vmul.f32 %v1432, %v950
          %v1465 = vmul.f32 %v1433, %v951
          %v1466 = vmul.f32 %v1434, %v952
          %v1467 = vmul.f32 %v1435, %v953
          %v1468 = vmul.f32 %v1436, %v954
          %v1469 = vmul.f32 %v1437, %v955
          %v1470 = vmul.f32 %v1438, %v956
          %v1471 = vmul.f32 %v1439, %v957
          %1504 = vrot.lane.b32.xlu0 %v1440, 127
          %v1505 = vpop.permute.xlu0 %1504
          %1506 = vrot.lane.b32.xlu0 %v1441, 127
          %v1507 = vpop.permute.xlu0 %1506
          %1508 = vrot.lane.b32.xlu0 %v1442, 127
          %v1509 = vpop.permute.xlu0 %1508
          %1510 = vrot.lane.b32.xlu0 %v1443, 127
          %v1511 = vpop.permute.xlu0 %1510
          %1512 = vrot.lane.b32.xlu0 %v1444, 127
          %v1513 = vpop.permute.xlu0 %1512
          %1514 = vrot.lane.b32.xlu0 %v1445, 127
          %v1515 = vpop.permute.xlu0 %1514
          %1516 = vrot.lane.b32.xlu0 %v1446, 127
          %v1517 = vpop.permute.xlu0 %1516
          %1518 = vrot.lane.b32.xlu0 %v1447, 127
          %v1519 = vpop.permute.xlu0 %1518
          %1520 = vrot.lane.b32.xlu0 %v1448, 127
          %v1521 = vpop.permute.xlu0 %1520
          %1522 = vrot.lane.b32.xlu0 %v1449, 127
          %v1523 = vpop.permute.xlu0 %1522
          %1524 = vrot.lane.b32.xlu0 %v1450, 127
          %v1525 = vpop.permute.xlu0 %1524
          %1526 = vrot.lane.b32.xlu0 %v1451, 127
          %v1527 = vpop.permute.xlu0 %1526
          %1528 = vrot.lane.b32.xlu0 %v1452, 127
          %v1529 = vpop.permute.xlu0 %1528
          %1530 = vrot.lane.b32.xlu0 %v1453, 127
          %v1531 = vpop.permute.xlu0 %1530
          %1532 = vrot.lane.b32.xlu0 %v1454, 127
          %v1533 = vpop.permute.xlu0 %1532
          %1534 = vrot.lane.b32.xlu0 %v1455, 127
          %v1535 = vpop.permute.xlu0 %1534
          %1536 = vrot.lane.b32.xlu0 %v1456, 127
          %v1537 = vpop.permute.xlu0 %1536
          %1538 = vrot.lane.b32.xlu0 %v1457, 127
          %v1539 = vpop.permute.xlu0 %1538
          %1540 = vrot.lane.b32.xlu0 %v1458, 127
          %v1541 = vpop.permute.xlu0 %1540
          %1542 = vrot.lane.b32.xlu0 %v1459, 127
          %v1543 = vpop.permute.xlu0 %1542
          %1544 = vrot.lane.b32.xlu0 %v1460, 127
          %v1545 = vpop.permute.xlu0 %1544
          %1546 = vrot.lane.b32.xlu0 %v1461, 127
          %v1547 = vpop.permute.xlu0 %1546
          %1548 = vrot.lane.b32.xlu0 %v1462, 127
          %v1549 = vpop.permute.xlu0 %1548
          %1550 = vrot.lane.b32.xlu0 %v1463, 127
          %v1551 = vpop.permute.xlu0 %1550
          %1552 = vrot.lane.b32.xlu0 %v1464, 127
          %v1553 = vpop.permute.xlu0 %1552
          %1554 = vrot.lane.b32.xlu0 %v1465, 127
          %v1555 = vpop.permute.xlu0 %1554
          %1556 = vrot.lane.b32.xlu0 %v1466, 127
          %v1557 = vpop.permute.xlu0 %1556
          %1558 = vrot.lane.b32.xlu0 %v1467, 127
          %v1559 = vpop.permute.xlu0 %1558
          %1560 = vrot.lane.b32.xlu0 %v1468, 127
          %v1561 = vpop.permute.xlu0 %1560
          %1562 = vrot.lane.b32.xlu0 %v1469, 127
          %v1563 = vpop.permute.xlu0 %1562
          %1564 = vrot.lane.b32.xlu0 %v1470, 127
          %v1565 = vpop.permute.xlu0 %1564
          %1566 = vrot.lane.b32.xlu0 %v1471, 127
          %v1567 = vpop.permute.xlu0 %1566
          %v1600 = vsub.f32 %v1376, %v1505
          %v1601 = vsub.f32 %v1377, %v1507
          %v1602 = vsub.f32 %v1378, %v1509
          %v1603 = vsub.f32 %v1379, %v1511
          %v1604 = vsub.f32 %v1380, %v1513
          %v1605 = vsub.f32 %v1381, %v1515
          %v1606 = vsub.f32 %v1382, %v1517
          %v1607 = vsub.f32 %v1383, %v1519
          %v1608 = vsub.f32 %v1384, %v1521
          %v1609 = vsub.f32 %v1385, %v1523
          %v1610 = vsub.f32 %v1386, %v1525
          %v1611 = vsub.f32 %v1387, %v1527
          %v1612 = vsub.f32 %v1388, %v1529
          %v1613 = vsub.f32 %v1389, %v1531
          %v1614 = vsub.f32 %v1390, %v1533
          %v1615 = vsub.f32 %v1391, %v1535
          %v1616 = vsub.f32 %v1392, %v1537
          %v1617 = vsub.f32 %v1393, %v1539
          %v1618 = vsub.f32 %v1394, %v1541
          %v1619 = vsub.f32 %v1395, %v1543
          %v1620 = vsub.f32 %v1396, %v1545
          %v1621 = vsub.f32 %v1397, %v1547
          %v1622 = vsub.f32 %v1398, %v1549
          %v1623 = vsub.f32 %v1399, %v1551
          %v1624 = vsub.f32 %v1400, %v1553
          %v1625 = vsub.f32 %v1401, %v1555
          %v1626 = vsub.f32 %v1402, %v1557
          %v1627 = vsub.f32 %v1403, %v1559
          %v1628 = vsub.f32 %v1404, %v1561
          %v1629 = vsub.f32 %v1405, %v1563
          %v1630 = vsub.f32 %v1406, %v1565
          %v1631 = vsub.f32 %v1407, %v1567
          %1664 = vrot.lane.b32.xlu0 %v926, 1
          %v1665 = vpop.permute.xlu0 %1664
          %1666 = vrot.lane.b32.xlu0 %v927, 1
          %v1667 = vpop.permute.xlu0 %1666
          %1668 = vrot.lane.b32.xlu0 %v928, 1
          %v1669 = vpop.permute.xlu0 %1668
          %1670 = vrot.lane.b32.xlu0 %v929, 1
          %v1671 = vpop.permute.xlu0 %1670
          %1672 = vrot.lane.b32.xlu0 %v930, 1
          %v1673 = vpop.permute.xlu0 %1672
          %1674 = vrot.lane.b32.xlu0 %v931, 1
          %v1675 = vpop.permute.xlu0 %1674
          %1676 = vrot.lane.b32.xlu0 %v932, 1
          %v1677 = vpop.permute.xlu0 %1676
          %1678 = vrot.lane.b32.xlu0 %v933, 1
          %v1679 = vpop.permute.xlu0 %1678
          %1680 = vrot.lane.b32.xlu0 %v934, 1
          %v1681 = vpop.permute.xlu0 %1680
          %1682 = vrot.lane.b32.xlu0 %v935, 1
          %v1683 = vpop.permute.xlu0 %1682
          %1684 = vrot.lane.b32.xlu0 %v936, 1
          %v1685 = vpop.permute.xlu0 %1684
          %1686 = vrot.lane.b32.xlu0 %v937, 1
          %v1687 = vpop.permute.xlu0 %1686
          %1688 = vrot.lane.b32.xlu0 %v938, 1
          %v1689 = vpop.permute.xlu0 %1688
          %1690 = vrot.lane.b32.xlu0 %v939, 1
          %v1691 = vpop.permute.xlu0 %1690
          %1692 = vrot.lane.b32.xlu0 %v940, 1
          %v1693 = vpop.permute.xlu0 %1692
          %1694 = vrot.lane.b32.xlu0 %v941, 1
          %v1695 = vpop.permute.xlu0 %1694
          %1696 = vrot.lane.b32.xlu0 %v942, 1
          %v1697 = vpop.permute.xlu0 %1696
          %1698 = vrot.lane.b32.xlu0 %v943, 1
          %v1699 = vpop.permute.xlu0 %1698
          %1700 = vrot.lane.b32.xlu0 %v944, 1
          %v1701 = vpop.permute.xlu0 %1700
          %1702 = vrot.lane.b32.xlu0 %v945, 1
          %v1703 = vpop.permute.xlu0 %1702
          %1704 = vrot.lane.b32.xlu0 %v946, 1
          %v1705 = vpop.permute.xlu0 %1704
          %1706 = vrot.lane.b32.xlu0 %v947, 1
          %v1707 = vpop.permute.xlu0 %1706
          %1708 = vrot.lane.b32.xlu0 %v948, 1
          %v1709 = vpop.permute.xlu0 %1708
          %1710 = vrot.lane.b32.xlu0 %v949, 1
          %v1711 = vpop.permute.xlu0 %1710
          %1712 = vrot.lane.b32.xlu0 %v950, 1
          %v1713 = vpop.permute.xlu0 %1712
          %1714 = vrot.lane.b32.xlu0 %v951, 1
          %v1715 = vpop.permute.xlu0 %1714
          %1716 = vrot.lane.b32.xlu0 %v952, 1
          %v1717 = vpop.permute.xlu0 %1716
          %1718 = vrot.lane.b32.xlu0 %v953, 1
          %v1719 = vpop.permute.xlu0 %1718
          %1720 = vrot.lane.b32.xlu0 %v954, 1
          %v1721 = vpop.permute.xlu0 %1720
          %1722 = vrot.lane.b32.xlu0 %v955, 1
          %v1723 = vpop.permute.xlu0 %1722
          %1724 = vrot.lane.b32.xlu0 %v956, 1
          %v1725 = vpop.permute.xlu0 %1724
          %1726 = vrot.lane.b32.xlu0 %v957, 1
          %v1727 = vpop.permute.xlu0 %1726
          %v1760 = vadd.f32 %v1600, %v1665
          %v1761 = vadd.f32 %v1601, %v1667
          %v1762 = vadd.f32 %v1602, %v1669
          %v1763 = vadd.f32 %v1603, %v1671
          %v1764 = vadd.f32 %v1604, %v1673
          %v1765 = vadd.f32 %v1605, %v1675
          %v1766 = vadd.f32 %v1606, %v1677
          %v1767 = vadd.f32 %v1607, %v1679
          %v1768 = vadd.f32 %v1608, %v1681
          %v1769 = vadd.f32 %v1609, %v1683
          %v1770 = vadd.f32 %v1610, %v1685
          %v1771 = vadd.f32 %v1611, %v1687
          %v1772 = vadd.f32 %v1612, %v1689
          %v1773 = vadd.f32 %v1613, %v1691
          %v1774 = vadd.f32 %v1614, %v1693
          %v1775 = vadd.f32 %v1615, %v1695
          %v1776 = vadd.f32 %v1616, %v1697
          %v1777 = vadd.f32 %v1617, %v1699
          %v1778 = vadd.f32 %v1618, %v1701
          %v1779 = vadd.f32 %v1619, %v1703
          %v1780 = vadd.f32 %v1620, %v1705
          %v1781 = vadd.f32 %v1621, %v1707
          %v1782 = vadd.f32 %v1622, %v1709
          %v1783 = vadd.f32 %v1623, %v1711
          %v1784 = vadd.f32 %v1624, %v1713
          %v1785 = vadd.f32 %v1625, %v1715
          %v1786 = vadd.f32 %v1626, %v1717
          %v1787 = vadd.f32 %v1627, %v1719
          %v1788 = vadd.f32 %v1628, %v1721
          %v1789 = vadd.f32 %v1629, %v1723
          %v1790 = vadd.f32 %v1630, %v1725
          %v1791 = vadd.f32 %v1631, %v1727
          %v1792 = vlaneseq
          %v1793 = vand.u32 %v1792, 127
          %v1794 = vcvt.s32.f32 %v1793
          %1795 = vset.pattern.permute.xlu0 3
          %1796 = vperm.xlu0 %1795, %v926
          %v1797 = vpop.permute.xlu0 %1796
          %1799 = vset.pattern.permute.xlu0 3
          %1800 = vperm.xlu0 %1799, %v927
          %v1801 = vpop.permute.xlu0 %1800
          %1803 = vset.pattern.permute.xlu0 3
          %1804 = vperm.xlu0 %1803, %v928
          %v1805 = vpop.permute.xlu0 %1804
          %1807 = vset.pattern.permute.xlu0 3
          %1808 = vperm.xlu0 %1807, %v929
          %v1809 = vpop.permute.xlu0 %1808
          %1811 = vset.pattern.permute.xlu0 3
          %1812 = vperm.xlu0 %1811, %v930
          %v1813 = vpop.permute.xlu0 %1812
          %1815 = vset.pattern.permute.xlu0 3
          %1816 = vperm.xlu0 %1815, %v931
          %v1817 = vpop.permute.xlu0 %1816
          %1819 = vset.pattern.permute.xlu0 3
          %1820 = vperm.xlu0 %1819, %v932
          %v1821 = vpop.permute.xlu0 %1820
          %1823 = vset.pattern.permute.xlu0 3
          %1824 = vperm.xlu0 %1823, %v933
          %v1825 = vpop.permute.xlu0 %1824
          %1827 = vset.pattern.permute.xlu0 3
          %1828 = vperm.xlu0 %1827, %v934
          %v1829 = vpop.permute.xlu0 %1828
          %1831 = vset.pattern.permute.xlu0 3
          %1832 = vperm.xlu0 %1831, %v935
          %v1833 = vpop.permute.xlu0 %1832
          %1835 = vset.pattern.permute.xlu0 3
          %1836 = vperm.xlu0 %1835, %v936
          %v1837 = vpop.permute.xlu0 %1836
          %1839 = vset.pattern.permute.xlu0 3
          %1840 = vperm.xlu0 %1839, %v937
          %v1841 = vpop.permute.xlu0 %1840
          %1843 = vset.pattern.permute.xlu0 3
          %1844 = vperm.xlu0 %1843, %v938
          %v1845 = vpop.permute.xlu0 %1844
          %1847 = vset.pattern.permute.xlu0 3
          %1848 = vperm.xlu0 %1847, %v939
          %v1849 = vpop.permute.xlu0 %1848
          %1851 = vset.pattern.permute.xlu0 3
          %1852 = vperm.xlu0 %1851, %v940
          %v1853 = vpop.permute.xlu0 %1852
          %1855 = vset.pattern.permute.xlu0 3
          %1856 = vperm.xlu0 %1855, %v941
          %v1857 = vpop.permute.xlu0 %1856
          %1859 = vset.pattern.permute.xlu0 3
          %1860 = vperm.xlu0 %1859, %v942
          %v1861 = vpop.permute.xlu0 %1860
          %1863 = vset.pattern.permute.xlu0 3
          %1864 = vperm.xlu0 %1863, %v943
          %v1865 = vpop.permute.xlu0 %1864
          %1867 = vset.pattern.permute.xlu0 3
          %1868 = vperm.xlu0 %1867, %v944
          %v1869 = vpop.permute.xlu0 %1868
          %1871 = vset.pattern.permute.xlu0 3
          %1872 = vperm.xlu0 %1871, %v945
          %v1873 = vpop.permute.xlu0 %1872
          %1875 = vset.pattern.permute.xlu0 3
          %1876 = vperm.xlu0 %1875, %v946
          %v1877 = vpop.permute.xlu0 %1876
          %1879 = vset.pattern.permute.xlu0 3
          %1880 = vperm.xlu0 %1879, %v947
          %v1881 = vpop.permute.xlu0 %1880
          %1883 = vset.pattern.permute.xlu0 3
          %1884 = vperm.xlu0 %1883, %v948
          %v1885 = vpop.permute.xlu0 %1884
          %1887 = vset.pattern.permute.xlu0 3
          %1888 = vperm.xlu0 %1887, %v949
          %v1889 = vpop.permute.xlu0 %1888
          %1891 = vset.pattern.permute.xlu0 3
          %1892 = vperm.xlu0 %1891, %v950
          %v1893 = vpop.permute.xlu0 %1892
          %1895 = vset.pattern.permute.xlu0 3
          %1896 = vperm.xlu0 %1895, %v951
          %v1897 = vpop.permute.xlu0 %1896
          %1899 = vset.pattern.permute.xlu0 3
          %1900 = vperm.xlu0 %1899, %v952
          %v1901 = vpop.permute.xlu0 %1900
          %1903 = vset.pattern.permute.xlu0 3
          %1904 = vperm.xlu0 %1903, %v953
          %v1905 = vpop.permute.xlu0 %1904
          %1907 = vset.pattern.permute.xlu0 3
          %1908 = vperm.xlu0 %1907, %v954
          %v1909 = vpop.permute.xlu0 %1908
          %1911 = vset.pattern.permute.xlu0 3
          %1912 = vperm.xlu0 %1911, %v955
          %v1913 = vpop.permute.xlu0 %1912
          %1915 = vset.pattern.permute.xlu0 3
          %1916 = vperm.xlu0 %1915, %v956
          %v1917 = vpop.permute.xlu0 %1916
          %1919 = vset.pattern.permute.xlu0 3
          %1920 = vperm.xlu0 %1919, %v957
          %v1921 = vpop.permute.xlu0 %1920
          %vm1923 = vcmp.eq.f32.partialorder %v1797, %v1794
          %vm1924 = vcmp.eq.f32.partialorder %v1801, %v1794
          %vm1925 = vcmp.eq.f32.partialorder %v1805, %v1794
          %vm1926 = vcmp.eq.f32.partialorder %v1809, %v1794
          %vm1927 = vcmp.eq.f32.partialorder %v1813, %v1794
          %vm1928 = vcmp.eq.f32.partialorder %v1817, %v1794
          %vm1929 = vcmp.eq.f32.partialorder %v1821, %v1794
          %vm1930 = vcmp.eq.f32.partialorder %v1825, %v1794
          %vm1931 = vcmp.eq.f32.partialorder %v1829, %v1794
          %vm1932 = vcmp.eq.f32.partialorder %v1833, %v1794
          %vm1933 = vcmp.eq.f32.partialorder %v1837, %v1794
          %vm1934 = vcmp.eq.f32.partialorder %v1841, %v1794
          %vm1935 = vcmp.eq.f32.partialorder %v1845, %v1794
          %vm1936 = vcmp.eq.f32.partialorder %v1849, %v1794
          %vm1937 = vcmp.eq.f32.partialorder %v1853, %v1794
          %vm1938 = vcmp.eq.f32.partialorder %v1857, %v1794
          %vm1939 = vcmp.eq.f32.partialorder %v1861, %v1794
          %vm1940 = vcmp.eq.f32.partialorder %v1865, %v1794
          %vm1941 = vcmp.eq.f32.partialorder %v1869, %v1794
          %vm1942 = vcmp.eq.f32.partialorder %v1873, %v1794
          %vm1943 = vcmp.eq.f32.partialorder %v1877, %v1794
          %vm1944 = vcmp.eq.f32.partialorder %v1881, %v1794
          %vm1945 = vcmp.eq.f32.partialorder %v1885, %v1794
          %vm1946 = vcmp.eq.f32.partialorder %v1889, %v1794
          %vm1947 = vcmp.eq.f32.partialorder %v1893, %v1794
          %vm1948 = vcmp.eq.f32.partialorder %v1897, %v1794
          %vm1949 = vcmp.eq.f32.partialorder %v1901, %v1794
          %vm1950 = vcmp.eq.f32.partialorder %v1905, %v1794
          %vm1951 = vcmp.eq.f32.partialorder %v1909, %v1794
          %vm1952 = vcmp.eq.f32.partialorder %v1913, %v1794
          %vm1953 = vcmp.eq.f32.partialorder %v1917, %v1794
          %vm1954 = vcmp.eq.f32.partialorder %v1921, %v1794
          %1956 = vset.pattern.permute.xlu0 1
          %1957 = vperm.xlu0 %1956, %v1760
          %v1958 = vpop.permute.xlu0 %1957
          %1961 = vset.pattern.permute.xlu0 1
          %1962 = vperm.xlu0 %1961, %v1761
          %v1963 = vpop.permute.xlu0 %1962
          %1966 = vset.pattern.permute.xlu0 1
          %1967 = vperm.xlu0 %1966, %v1762
          %v1968 = vpop.permute.xlu0 %1967
          %1971 = vset.pattern.permute.xlu0 1
          %1972 = vperm.xlu0 %1971, %v1763
          %v1973 = vpop.permute.xlu0 %1972
          %1976 = vset.pattern.permute.xlu0 1
          %1977 = vperm.xlu0 %1976, %v1764
          %v1978 = vpop.permute.xlu0 %1977
          %1981 = vset.pattern.permute.xlu0 1
          %1982 = vperm.xlu0 %1981, %v1765
          %v1983 = vpop.permute.xlu0 %1982
          %1986 = vset.pattern.permute.xlu0 1
          %1987 = vperm.xlu0 %1986, %v1766
          %v1988 = vpop.permute.xlu0 %1987
          %1991 = vset.pattern.permute.xlu0 1
          %1992 = vperm.xlu0 %1991, %v1767
          %v1993 = vpop.permute.xlu0 %1992
          %1996 = vset.pattern.permute.xlu0 1
          %1997 = vperm.xlu0 %1996, %v1768
          %v1998 = vpop.permute.xlu0 %1997
          %2001 = vset.pattern.permute.xlu0 1
          %2002 = vperm.xlu0 %2001, %v1769
          %v2003 = vpop.permute.xlu0 %2002
          %2006 = vset.pattern.permute.xlu0 1
          %2007 = vperm.xlu0 %2006, %v1770
          %v2008 = vpop.permute.xlu0 %2007
          %2011 = vset.pattern.permute.xlu0 1
          %2012 = vperm.xlu0 %2011, %v1771
          %v2013 = vpop.permute.xlu0 %2012
          %2016 = vset.pattern.permute.xlu0 1
          %2017 = vperm.xlu0 %2016, %v1772
          %v2018 = vpop.permute.xlu0 %2017
          %2021 = vset.pattern.permute.xlu0 1
          %2022 = vperm.xlu0 %2021, %v1773
          %v2023 = vpop.permute.xlu0 %2022
          %2026 = vset.pattern.permute.xlu0 1
          %2027 = vperm.xlu0 %2026, %v1774
          %v2028 = vpop.permute.xlu0 %2027
          %2031 = vset.pattern.permute.xlu0 1
          %2032 = vperm.xlu0 %2031, %v1775
          %v2033 = vpop.permute.xlu0 %2032
          %2036 = vset.pattern.permute.xlu0 1
          %2037 = vperm.xlu0 %2036, %v1776
          %v2038 = vpop.permute.xlu0 %2037
          %2041 = vset.pattern.permute.xlu0 1
          %2042 = vperm.xlu0 %2041, %v1777
          %v2043 = vpop.permute.xlu0 %2042
          %2046 = vset.pattern.permute.xlu0 1
          %2047 = vperm.xlu0 %2046, %v1778
          %v2048 = vpop.permute.xlu0 %2047
          %2051 = vset.pattern.permute.xlu0 1
          %2052 = vperm.xlu0 %2051, %v1779
          %v2053 = vpop.permute.xlu0 %2052
          %2056 = vset.pattern.permute.xlu0 1
          %2057 = vperm.xlu0 %2056, %v1780
          %v2058 = vpop.permute.xlu0 %2057
          %2061 = vset.pattern.permute.xlu0 1
          %2062 = vperm.xlu0 %2061, %v1781
          %v2063 = vpop.permute.xlu0 %2062
          %2066 = vset.pattern.permute.xlu0 1
          %2067 = vperm.xlu0 %2066, %v1782
          %v2068 = vpop.permute.xlu0 %2067
          %2071 = vset.pattern.permute.xlu0 1
          %2072 = vperm.xlu0 %2071, %v1783
          %v2073 = vpop.permute.xlu0 %2072
          %2076 = vset.pattern.permute.xlu0 1
          %2077 = vperm.xlu0 %2076, %v1784
          %v2078 = vpop.permute.xlu0 %2077
          %2081 = vset.pattern.permute.xlu0 1
          %2082 = vperm.xlu0 %2081, %v1785
          %v2083 = vpop.permute.xlu0 %2082
          %2086 = vset.pattern.permute.xlu0 1
          %2087 = vperm.xlu0 %2086, %v1786
          %v2088 = vpop.permute.xlu0 %2087
          %2091 = vset.pattern.permute.xlu0 1
          %2092 = vperm.xlu0 %2091, %v1787
          %v2093 = vpop.permute.xlu0 %2092
          %2096 = vset.pattern.permute.xlu0 1
          %2097 = vperm.xlu0 %2096, %v1788
          %v2098 = vpop.permute.xlu0 %2097
          %2101 = vset.pattern.permute.xlu0 1
          %2102 = vperm.xlu0 %2101, %v1789
          %v2103 = vpop.permute.xlu0 %2102
          %2106 = vset.pattern.permute.xlu0 1
          %2107 = vperm.xlu0 %2106, %v1790
          %v2108 = vpop.permute.xlu0 %2107
          %2111 = vset.pattern.permute.xlu0 1
          %2112 = vperm.xlu0 %2111, %v1791
          %v2113 = vpop.permute.xlu0 %2112
          %v2115 = vsel %vm1923, %v1958, -inf
          %v2116 = vsel %vm1924, %v1963, -inf
          %v2117 = vsel %vm1925, %v1968, -inf
          %v2118 = vsel %vm1926, %v1973, -inf
          %v2119 = vsel %vm1927, %v1978, -inf
          %v2120 = vsel %vm1928, %v1983, -inf
          %v2121 = vsel %vm1929, %v1988, -inf
          %v2122 = vsel %vm1930, %v1993, -inf
          %v2123 = vsel %vm1931, %v1998, -inf
          %v2124 = vsel %vm1932, %v2003, -inf
          %v2125 = vsel %vm1933, %v2008, -inf
          %v2126 = vsel %vm1934, %v2013, -inf
          %v2127 = vsel %vm1935, %v2018, -inf
          %v2128 = vsel %vm1936, %v2023, -inf
          %v2129 = vsel %vm1937, %v2028, -inf
          %v2130 = vsel %vm1938, %v2033, -inf
          %v2131 = vsel %vm1939, %v2038, -inf
          %v2132 = vsel %vm1940, %v2043, -inf
          %v2133 = vsel %vm1941, %v2048, -inf
          %v2134 = vsel %vm1942, %v2053, -inf
          %v2135 = vsel %vm1943, %v2058, -inf
          %v2136 = vsel %vm1944, %v2063, -inf
          %v2137 = vsel %vm1945, %v2068, -inf
          %v2138 = vsel %vm1946, %v2073, -inf
          %v2139 = vsel %vm1947, %v2078, -inf
          %v2140 = vsel %vm1948, %v2083, -inf
          %v2141 = vsel %vm1949, %v2088, -inf
          %v2142 = vsel %vm1950, %v2093, -inf
          %v2143 = vsel %vm1951, %v2098, -inf
          %v2144 = vsel %vm1952, %v2103, -inf
          %v2145 = vsel %vm1953, %v2108, -inf
          %v2146 = vsel %vm1954, %v2113, -inf
          %v2147 = vld [vmem:[#allocation2] sm:$0x1]
          %v2148 = vmax.f32 %v2115, %v2119
          %v2149 = vmax.f32 %v2116, %v2120
          %v2150 = vmax.f32 %v2117, %v2121
          %v2151 = vmax.f32 %v2118, %v2122
          %v2152 = vmax.f32 %v2148, %v2123
          %v2153 = vmax.f32 %v2149, %v2124
          %v2154 = vmax.f32 %v2150, %v2125
          %v2155 = vmax.f32 %v2151, %v2126
          %v2156 = vmax.f32 %v2152, %v2127
          %v2157 = vmax.f32 %v2153, %v2128
          %v2158 = vmax.f32 %v2154, %v2129
          %v2159 = vmax.f32 %v2155, %v2130
          %v2160 = vmax.f32 %v2156, %v2131
          %v2161 = vmax.f32 %v2157, %v2132
          %v2162 = vmax.f32 %v2158, %v2133
          %v2163 = vmax.f32 %v2159, %v2134
          %v2164 = vmax.f32 %v2160, %v2135
          %v2165 = vmax.f32 %v2161, %v2136
          %v2166 = vmax.f32 %v2162, %v2137
          %v2167 = vmax.f32 %v2163, %v2138
          %v2168 = vmax.f32 %v2164, %v2139
          %v2169 = vmax.f32 %v2165, %v2140
          %v2170 = vmax.f32 %v2166, %v2141
          %v2171 = vmax.f32 %v2167, %v2142
          %v2172 = vmax.f32 %v2168, %v2143
          %v2173 = vmax.f32 %v2169, %v2144
          %v2174 = vmax.f32 %v2170, %v2145
          %v2175 = vmax.f32 %v2171, %v2146
          %v2176 = vmax.f32 %v2172, %v2173
          %v2177 = vmax.f32 %v2174, %v2175
          %v2178 = vmax.f32 %v2176, %v2177
          %v2179 = vrot.slane %v2178, 4
          %v2180 = vmax.f32 %v2178, %v2179
          %v2181 = vrot.slane %v2180, 2
          %v2182 = vmax.f32 %v2180, %v2181
          %v2183 = vrot.slane %v2182, 1
          %v2184 = vmax.f32 %v2182, %v2183
          %v2185 = vmax.f32 %v2147, %v2184
          %v2186 = vsub.f32 %v2147, %v2185
          %v2187 = vmul.f32 %v2186, 1.442695
          %v2188 = vpow.pop %v2187
          %v2190 = vperm.slane %v2185, 0
          %v2192 = vsel %vm1923, %v2190, 0.0
          %v2193 = vsel %vm1924, %v2190, 0.0
          %v2194 = vsel %vm1925, %v2190, 0.0
          %v2195 = vsel %vm1926, %v2190, 0.0
          %v2196 = vsel %vm1927, %v2190, 0.0
          %v2197 = vsel %vm1928, %v2190, 0.0
          %v2198 = vsel %vm1929, %v2190, 0.0
          %v2199 = vsel %vm1930, %v2190, 0.0
          %v2200 = vsel %vm1931, %v2190, 0.0
          %v2201 = vsel %vm1932, %v2190, 0.0
          %v2202 = vsel %vm1933, %v2190, 0.0
          %v2203 = vsel %vm1934, %v2190, 0.0
          %v2204 = vsel %vm1935, %v2190, 0.0
          %v2205 = vsel %vm1936, %v2190, 0.0
          %v2206 = vsel %vm1937, %v2190, 0.0
          %v2207 = vsel %vm1938, %v2190, 0.0
          %v2208 = vsel %vm1939, %v2190, 0.0
          %v2209 = vsel %vm1940, %v2190, 0.0
          %v2210 = vsel %vm1941, %v2190, 0.0
          %v2211 = vsel %vm1942, %v2190, 0.0
          %v2212 = vsel %vm1943, %v2190, 0.0
          %v2213 = vsel %vm1944, %v2190, 0.0
          %v2214 = vsel %vm1945, %v2190, 0.0
          %v2215 = vsel %vm1946, %v2190, 0.0
          %v2216 = vsel %vm1947, %v2190, 0.0
          %v2217 = vsel %vm1948, %v2190, 0.0
          %v2218 = vsel %vm1949, %v2190, 0.0
          %v2219 = vsel %vm1950, %v2190, 0.0
          %v2220 = vsel %vm1951, %v2190, 0.0
          %v2221 = vsel %vm1952, %v2190, 0.0
          %v2222 = vsel %vm1953, %v2190, 0.0
          %v2223 = vsel %vm1954, %v2190, 0.0
          %2224 = vadd.xlane.f32.xlu0 %v2192
          %v2225 = vpop.xlane.xlu0 %2224
          %2226 = vadd.xlane.f32.xlu0 %v2193
          %v2227 = vpop.xlane.xlu0 %2226
          %2228 = vadd.xlane.f32.xlu0 %v2194
          %v2229 = vpop.xlane.xlu0 %2228
          %2230 = vadd.xlane.f32.xlu0 %v2195
          %v2231 = vpop.xlane.xlu0 %2230
          %2232 = vadd.xlane.f32.xlu0 %v2196
          %v2233 = vpop.xlane.xlu0 %2232
          %2234 = vadd.xlane.f32.xlu0 %v2197
          %v2235 = vpop.xlane.xlu0 %2234
          %2236 = vadd.xlane.f32.xlu0 %v2198
          %v2237 = vpop.xlane.xlu0 %2236
          %2238 = vadd.xlane.f32.xlu0 %v2199
          %v2239 = vpop.xlane.xlu0 %2238
          %2240 = vadd.xlane.f32.xlu0 %v2200
          %v2241 = vpop.xlane.xlu0 %2240
          %2242 = vadd.xlane.f32.xlu0 %v2201
          %v2243 = vpop.xlane.xlu0 %2242
          %2244 = vadd.xlane.f32.xlu0 %v2202
          %v2245 = vpop.xlane.xlu0 %2244
          %2246 = vadd.xlane.f32.xlu0 %v2203
          %v2247 = vpop.xlane.xlu0 %2246
          %2248 = vadd.xlane.f32.xlu0 %v2204
          %v2249 = vpop.xlane.xlu0 %2248
          %2250 = vadd.xlane.f32.xlu0 %v2205
          %v2251 = vpop.xlane.xlu0 %2250
          %2252 = vadd.xlane.f32.xlu0 %v2206
          %v2253 = vpop.xlane.xlu0 %2252
          %2254 = vadd.xlane.f32.xlu0 %v2207
          %v2255 = vpop.xlane.xlu0 %2254
          %2256 = vadd.xlane.f32.xlu0 %v2208
          %v2257 = vpop.xlane.xlu0 %2256
          %2258 = vadd.xlane.f32.xlu0 %v2209
          %v2259 = vpop.xlane.xlu0 %2258
          %2260 = vadd.xlane.f32.xlu0 %v2210
          %v2261 = vpop.xlane.xlu0 %2260
          %2262 = vadd.xlane.f32.xlu0 %v2211
          %v2263 = vpop.xlane.xlu0 %2262
          %2264 = vadd.xlane.f32.xlu0 %v2212
          %v2265 = vpop.xlane.xlu0 %2264
          %2266 = vadd.xlane.f32.xlu0 %v2213
          %v2267 = vpop.xlane.xlu0 %2266
          %2268 = vadd.xlane.f32.xlu0 %v2214
          %v2269 = vpop.xlane.xlu0 %2268
          %2270 = vadd.xlane.f32.xlu0 %v2215
          %v2271 = vpop.xlane.xlu0 %2270
          %2272 = vadd.xlane.f32.xlu0 %v2216
          %v2273 = vpop.xlane.xlu0 %2272
          %2274 = vadd.xlane.f32.xlu0 %v2217
          %v2275 = vpop.xlane.xlu0 %2274
          %2276 = vadd.xlane.f32.xlu0 %v2218
          %v2277 = vpop.xlane.xlu0 %2276
          %2278 = vadd.xlane.f32.xlu0 %v2219
          %v2279 = vpop.xlane.xlu0 %2278
          %2280 = vadd.xlane.f32.xlu0 %v2220
          %v2281 = vpop.xlane.xlu0 %2280
          %2282 = vadd.xlane.f32.xlu0 %v2221
          %v2283 = vpop.xlane.xlu0 %2282
          %2284 = vadd.xlane.f32.xlu0 %v2222
          %v2285 = vpop.xlane.xlu0 %2284
          %2286 = vadd.xlane.f32.xlu0 %v2223
          %v2287 = vpop.xlane.xlu0 %2286
          %v2288 = vsub.f32 %v1760, %v2225
          %v2289 = vsub.f32 %v1761, %v2227
          %v2290 = vsub.f32 %v1762, %v2229
          %v2291 = vsub.f32 %v1763, %v2231
          %v2292 = vsub.f32 %v1764, %v2233
          %v2293 = vsub.f32 %v1765, %v2235
          %v2294 = vsub.f32 %v1766, %v2237
          %v2295 = vsub.f32 %v1767, %v2239
          %v2296 = vsub.f32 %v1768, %v2241
          %v2297 = vsub.f32 %v1769, %v2243
          %v2298 = vsub.f32 %v1770, %v2245
          %v2299 = vsub.f32 %v1771, %v2247
          %v2300 = vsub.f32 %v1772, %v2249
          %v2301 = vsub.f32 %v1773, %v2251
          %v2302 = vsub.f32 %v1774, %v2253
          %v2303 = vsub.f32 %v1775, %v2255
          %v2304 = vsub.f32 %v1776, %v2257
          %v2305 = vsub.f32 %v1777, %v2259
          %v2306 = vsub.f32 %v1778, %v2261
          %v2307 = vsub.f32 %v1779, %v2263
          %v2308 = vsub.f32 %v1780, %v2265
          %v2309 = vsub.f32 %v1781, %v2267
          %v2310 = vsub.f32 %v1782, %v2269
          %v2311 = vsub.f32 %v1783, %v2271
          %v2312 = vsub.f32 %v1784, %v2273
          %v2313 = vsub.f32 %v1785, %v2275
          %v2314 = vsub.f32 %v1786, %v2277
          %v2315 = vsub.f32 %v1787, %v2279
          %v2316 = vsub.f32 %v1788, %v2281
          %v2317 = vsub.f32 %v1789, %v2283
          %v2318 = vsub.f32 %v1790, %v2285
          %v2319 = vsub.f32 %v1791, %v2287
          %v2320 = vmul.f32 %v2288, 1.442695
          %v2321 = vpow.pop %v2320
          %v2322 = vmul.f32 %v2289, 1.442695
          %v2323 = vpow.pop %v2322
          %v2324 = vmul.f32 %v2290, 1.442695
          %v2325 = vpow.pop %v2324
          %v2326 = vmul.f32 %v2291, 1.442695
          %v2327 = vpow.pop %v2326
          %v2328 = vmul.f32 %v2292, 1.442695
          %v2329 = vpow.pop %v2328
          %v2330 = vmul.f32 %v2293, 1.442695
          %v2331 = vpow.pop %v2330
          %v2332 = vmul.f32 %v2294, 1.442695
          %v2333 = vpow.pop %v2332
          %v2334 = vmul.f32 %v2295, 1.442695
          %v2335 = vpow.pop %v2334
          %v2336 = vmul.f32 %v2296, 1.442695
          %v2337 = vpow.pop %v2336
          %v2338 = vmul.f32 %v2297, 1.442695
          %v2339 = vpow.pop %v2338
          %v2340 = vmul.f32 %v2298, 1.442695
          %v2341 = vpow.pop %v2340
          %v2342 = vmul.f32 %v2299, 1.442695
          %v2343 = vpow.pop %v2342
          %v2344 = vmul.f32 %v2300, 1.442695
          %v2345 = vpow.pop %v2344
          %v2346 = vmul.f32 %v2301, 1.442695
          %v2347 = vpow.pop %v2346
          %v2348 = vmul.f32 %v2302, 1.442695
          %v2349 = vpow.pop %v2348
          %v2350 = vmul.f32 %v2303, 1.442695
          %v2351 = vpow.pop %v2350
          %v2352 = vmul.f32 %v2304, 1.442695
          %v2353 = vpow.pop %v2352
          %v2354 = vmul.f32 %v2305, 1.442695
          %v2355 = vpow.pop %v2354
          %v2356 = vmul.f32 %v2306, 1.442695
          %v2357 = vpow.pop %v2356
          %v2358 = vmul.f32 %v2307, 1.442695
          %v2359 = vpow.pop %v2358
          %v2360 = vmul.f32 %v2308, 1.442695
          %v2361 = vpow.pop %v2360
          %v2362 = vmul.f32 %v2309, 1.442695
          %v2363 = vpow.pop %v2362
          %v2364 = vmul.f32 %v2310, 1.442695
          %v2365 = vpow.pop %v2364
          %v2366 = vmul.f32 %v2311, 1.442695
          %v2367 = vpow.pop %v2366
          %v2368 = vmul.f32 %v2312, 1.442695
          %v2369 = vpow.pop %v2368
          %v2370 = vmul.f32 %v2313, 1.442695
          %v2371 = vpow.pop %v2370
          %v2372 = vmul.f32 %v2314, 1.442695
          %v2373 = vpow.pop %v2372
          %v2374 = vmul.f32 %v2315, 1.442695
          %v2375 = vpow.pop %v2374
          %v2376 = vmul.f32 %v2316, 1.442695
          %v2377 = vpow.pop %v2376
          %v2378 = vmul.f32 %v2317, 1.442695
          %v2379 = vpow.pop %v2378
          %v2380 = vmul.f32 %v2318, 1.442695
          %v2381 = vpow.pop %v2380
          %v2382 = vmul.f32 %v2319, 1.442695
          %v2383 = vpow.pop %v2382
          %2385 = vset.pattern.permute.xlu0 1
          %2386 = vperm.xlu0 %2385, %v2321
          %v2387 = vpop.permute.xlu0 %2386
          %2390 = vset.pattern.permute.xlu0 1
          %2391 = vperm.xlu0 %2390, %v2323
          %v2392 = vpop.permute.xlu0 %2391
          %2395 = vset.pattern.permute.xlu0 1
          %2396 = vperm.xlu0 %2395, %v2325
          %v2397 = vpop.permute.xlu0 %2396
          %2400 = vset.pattern.permute.xlu0 1
          %2401 = vperm.xlu0 %2400, %v2327
          %v2402 = vpop.permute.xlu0 %2401
          %2405 = vset.pattern.permute.xlu0 1
          %2406 = vperm.xlu0 %2405, %v2329
          %v2407 = vpop.permute.xlu0 %2406
          %2410 = vset.pattern.permute.xlu0 1
          %2411 = vperm.xlu0 %2410, %v2331
          %v2412 = vpop.permute.xlu0 %2411
          %2415 = vset.pattern.permute.xlu0 1
          %2416 = vperm.xlu0 %2415, %v2333
          %v2417 = vpop.permute.xlu0 %2416
          %2420 = vset.pattern.permute.xlu0 1
          %2421 = vperm.xlu0 %2420, %v2335
          %v2422 = vpop.permute.xlu0 %2421
          %2425 = vset.pattern.permute.xlu0 1
          %2426 = vperm.xlu0 %2425, %v2337
          %v2427 = vpop.permute.xlu0 %2426
          %2430 = vset.pattern.permute.xlu0 1
          %2431 = vperm.xlu0 %2430, %v2339
          %v2432 = vpop.permute.xlu0 %2431
          %2435 = vset.pattern.permute.xlu0 1
          %2436 = vperm.xlu0 %2435, %v2341
          %v2437 = vpop.permute.xlu0 %2436
          %2440 = vset.pattern.permute.xlu0 1
          %2441 = vperm.xlu0 %2440, %v2343
          %v2442 = vpop.permute.xlu0 %2441
          %2445 = vset.pattern.permute.xlu0 1
          %2446 = vperm.xlu0 %2445, %v2345
          %v2447 = vpop.permute.xlu0 %2446
          %2450 = vset.pattern.permute.xlu0 1
          %2451 = vperm.xlu0 %2450, %v2347
          %v2452 = vpop.permute.xlu0 %2451
          %2455 = vset.pattern.permute.xlu0 1
          %2456 = vperm.xlu0 %2455, %v2349
          %v2457 = vpop.permute.xlu0 %2456
          %2460 = vset.pattern.permute.xlu0 1
          %2461 = vperm.xlu0 %2460, %v2351
          %v2462 = vpop.permute.xlu0 %2461
          %2465 = vset.pattern.permute.xlu0 1
          %2466 = vperm.xlu0 %2465, %v2353
          %v2467 = vpop.permute.xlu0 %2466
          %2470 = vset.pattern.permute.xlu0 1
          %2471 = vperm.xlu0 %2470, %v2355
          %v2472 = vpop.permute.xlu0 %2471
          %2475 = vset.pattern.permute.xlu0 1
          %2476 = vperm.xlu0 %2475, %v2357
          %v2477 = vpop.permute.xlu0 %2476
          %2480 = vset.pattern.permute.xlu0 1
          %2481 = vperm.xlu0 %2480, %v2359
          %v2482 = vpop.permute.xlu0 %2481
          %2485 = vset.pattern.permute.xlu0 1
          %2486 = vperm.xlu0 %2485, %v2361
          %v2487 = vpop.permute.xlu0 %2486
          %2490 = vset.pattern.permute.xlu0 1
          %2491 = vperm.xlu0 %2490, %v2363
          %v2492 = vpop.permute.xlu0 %2491
          %2495 = vset.pattern.permute.xlu0 1
          %2496 = vperm.xlu0 %2495, %v2365
          %v2497 = vpop.permute.xlu0 %2496
          %2500 = vset.pattern.permute.xlu0 1
          %2501 = vperm.xlu0 %2500, %v2367
          %v2502 = vpop.permute.xlu0 %2501
          %2505 = vset.pattern.permute.xlu0 1
          %2506 = vperm.xlu0 %2505, %v2369
          %v2507 = vpop.permute.xlu0 %2506
          %2510 = vset.pattern.permute.xlu0 1
          %2511 = vperm.xlu0 %2510, %v2371
          %v2512 = vpop.permute.xlu0 %2511
          %2515 = vset.pattern.permute.xlu0 1
          %2516 = vperm.xlu0 %2515, %v2373
          %v2517 = vpop.permute.xlu0 %2516
          %2520 = vset.pattern.permute.xlu0 1
          %2521 = vperm.xlu0 %2520, %v2375
          %v2522 = vpop.permute.xlu0 %2521
          %2525 = vset.pattern.permute.xlu0 1
          %2526 = vperm.xlu0 %2525, %v2377
          %v2527 = vpop.permute.xlu0 %2526
          %2530 = vset.pattern.permute.xlu0 1
          %2531 = vperm.xlu0 %2530, %v2379
          %v2532 = vpop.permute.xlu0 %2531
          %2535 = vset.pattern.permute.xlu0 1
          %2536 = vperm.xlu0 %2535, %v2381
          %v2537 = vpop.permute.xlu0 %2536
          %2540 = vset.pattern.permute.xlu0 1
          %2541 = vperm.xlu0 %2540, %v2383
          %v2542 = vpop.permute.xlu0 %2541
          %v2544 = vsel %vm1923, %v2387, 0.0
          %v2545 = vsel %vm1924, %v2392, 0.0
          %v2546 = vsel %vm1925, %v2397, 0.0
          %v2547 = vsel %vm1926, %v2402, 0.0
          %v2548 = vsel %vm1927, %v2407, 0.0
          %v2549 = vsel %vm1928, %v2412, 0.0
          %v2550 = vsel %vm1929, %v2417, 0.0
          %v2551 = vsel %vm1930, %v2422, 0.0
          %v2552 = vsel %vm1931, %v2427, 0.0
          %v2553 = vsel %vm1932, %v2432, 0.0
          %v2554 = vsel %vm1933, %v2437, 0.0
          %v2555 = vsel %vm1934, %v2442, 0.0
          %v2556 = vsel %vm1935, %v2447, 0.0
          %v2557 = vsel %vm1936, %v2452, 0.0
          %v2558 = vsel %vm1937, %v2457, 0.0
          %v2559 = vsel %vm1938, %v2462, 0.0
          %v2560 = vsel %vm1939, %v2467, 0.0
          %v2561 = vsel %vm1940, %v2472, 0.0
          %v2562 = vsel %vm1941, %v2477, 0.0
          %v2563 = vsel %vm1942, %v2482, 0.0
          %v2564 = vsel %vm1943, %v2487, 0.0
          %v2565 = vsel %vm1944, %v2492, 0.0
          %v2566 = vsel %vm1945, %v2497, 0.0
          %v2567 = vsel %vm1946, %v2502, 0.0
          %v2568 = vsel %vm1947, %v2507, 0.0
          %v2569 = vsel %vm1948, %v2512, 0.0
          %v2570 = vsel %vm1949, %v2517, 0.0
          %v2571 = vsel %vm1950, %v2522, 0.0
          %v2572 = vsel %vm1951, %v2527, 0.0
          %v2573 = vsel %vm1952, %v2532, 0.0
          %v2574 = vsel %vm1953, %v2537, 0.0
          %v2575 = vsel %vm1954, %v2542, 0.0
          %v2576 = vld [vmem:[#allocation3] sm:$0x1]
          %v2577 = vmul.f32 %v2188, %v2576
          %v2578 = vadd.f32 %v2544, %v2545
          %v2579 = vadd.f32 %v2578, %v2546
          %v2580 = vadd.f32 %v2579, %v2547
          %v2581 = vadd.f32 %v2580, %v2548
          %v2582 = vadd.f32 %v2581, %v2549
          %v2583 = vadd.f32 %v2582, %v2550
          %v2584 = vadd.f32 %v2583, %v2551
          %v2585 = vadd.f32 %v2584, %v2552
          %v2586 = vadd.f32 %v2585, %v2553
          %v2587 = vadd.f32 %v2586, %v2554
          %v2588 = vadd.f32 %v2587, %v2555
          %v2589 = vadd.f32 %v2588, %v2556
          %v2590 = vadd.f32 %v2589, %v2557
          %v2591 = vadd.f32 %v2590, %v2558
          %v2592 = vadd.f32 %v2591, %v2559
          %v2593 = vadd.f32 %v2592, %v2560
          %v2594 = vadd.f32 %v2593, %v2561
          %v2595 = vadd.f32 %v2594, %v2562
          %v2596 = vadd.f32 %v2595, %v2563
          %v2597 = vadd.f32 %v2596, %v2564
          %v2598 = vadd.f32 %v2597, %v2565
          %v2599 = vadd.f32 %v2598, %v2566
          %v2600 = vadd.f32 %v2599, %v2567
          %v2601 = vadd.f32 %v2600, %v2568
          %v2602 = vadd.f32 %v2601, %v2569
          %v2603 = vadd.f32 %v2602, %v2570
          %v2604 = vadd.f32 %v2603, %v2571
          %v2605 = vadd.f32 %v2604, %v2572
          %v2606 = vadd.f32 %v2605, %v2573
          %v2607 = vadd.f32 %v2606, %v2574
          %v2608 = vadd.f32 %v2607, %v2575
          %v2609 = vrot.slane %v2608, 4
          %v2610 = vadd.f32 %v2608, %v2609
          %v2611 = vrot.slane %v2610, 2
          %v2612 = vadd.f32 %v2610, %v2611
          %v2613 = vrot.slane %v2612, 1
          %v2614 = vadd.f32 %v2612, %v2613
          %v2615 = vadd.f32 %v2577, %v2614
          %2616 = vst [vmem:[#allocation3] sm:$0x1] %v2615
          %v2617 = vld [vmem:[#allocation4] sm:$0xff]
          %v2618 = vld [vmem:[#allocation4 + $0x8] sm:$0xff]
          %v2619 = vld [vmem:[#allocation4 + $0x10] sm:$0xff]
          %v2620 = vld [vmem:[#allocation4 + $0x18] sm:$0xff]
          %v2621 = vld [vmem:[#allocation4 + $0x20] sm:$0xff]
          %v2622 = vld [vmem:[#allocation4 + $0x28] sm:$0xff]
          %v2623 = vld [vmem:[#allocation4 + $0x30] sm:$0xff]
          %v2624 = vld [vmem:[#allocation4 + $0x38] sm:$0xff]
          %v2625 = vld [vmem:[#allocation4 + $0x40] sm:$0xff]
          %v2626 = vld [vmem:[#allocation4 + $0x48] sm:$0xff]
          %v2627 = vld [vmem:[#allocation4 + $0x50] sm:$0xff]
          %v2628 = vld [vmem:[#allocation4 + $0x58] sm:$0xff]
          %v2629 = vld [vmem:[#allocation4 + $0x60] sm:$0xff]
          %v2630 = vld [vmem:[#allocation4 + $0x68] sm:$0xff]
          %v2631 = vld [vmem:[#allocation4 + $0x70] sm:$0xff]
          %v2632 = vld [vmem:[#allocation4 + $0x78] sm:$0xff]
          %v2634 = vperm.slane %v2188, 0
          %v2636 = vmul.f32 %v2634, %v2617
          %v2637 = vmul.f32 %v2634, %v2618
          %v2638 = vmul.f32 %v2634, %v2619
          %v2639 = vmul.f32 %v2634, %v2620
          %v2640 = vmul.f32 %v2634, %v2621
          %v2641 = vmul.f32 %v2634, %v2622
          %v2642 = vmul.f32 %v2634, %v2623
          %v2643 = vmul.f32 %v2634, %v2624
          %v2644 = vmul.f32 %v2634, %v2625
          %v2645 = vmul.f32 %v2634, %v2626
          %v2646 = vmul.f32 %v2634, %v2627
          %v2647 = vmul.f32 %v2634, %v2628
          %v2648 = vmul.f32 %v2634, %v2629
          %v2649 = vmul.f32 %v2634, %v2630
          %v2650 = vmul.f32 %v2634, %v2631
          %v2651 = vmul.f32 %v2634, %v2632
          %v2652 = vpack.c.bf16 %v2545, %v2544
          %v2653 = vpack.c.bf16 %v2547, %v2546
          %v2654 = vpack.c.bf16 %v2549, %v2548
          %v2655 = vpack.c.bf16 %v2551, %v2550
          %v2656 = vpack.c.bf16 %v2553, %v2552
          %v2657 = vpack.c.bf16 %v2555, %v2554
          %v2658 = vpack.c.bf16 %v2557, %v2556
          %v2659 = vpack.c.bf16 %v2559, %v2558
          %v2660 = vpack.c.bf16 %v2561, %v2560
          %v2661 = vpack.c.bf16 %v2563, %v2562
          %v2662 = vpack.c.bf16 %v2565, %v2564
          %v2663 = vpack.c.bf16 %v2567, %v2566
          %v2664 = vpack.c.bf16 %v2569, %v2568
          %v2665 = vpack.c.bf16 %v2571, %v2570
          %v2666 = vpack.c.bf16 %v2573, %v2572
          %v2667 = vpack.c.bf16 %v2575, %v2574
          %v2700 = vunpack.c.l.b16 %v668
          %v2701 = vunpack.c.l.b16 %v669
          %v2702 = vunpack.c.l.b16 %v670
          %v2703 = vunpack.c.l.b16 %v671
          %v2704 = vunpack.c.l.b16 %v672
          %v2705 = vunpack.c.l.b16 %v673
          %v2706 = vunpack.c.l.b16 %v674
          %v2707 = vunpack.c.l.b16 %v675
          %v2708 = vunpack.c.l.b16 %v676
          %v2709 = vunpack.c.l.b16 %v677
          %v2710 = vunpack.c.l.b16 %v678
          %v2711 = vunpack.c.l.b16 %v679
          %v2712 = vunpack.c.l.b16 %v680
          %v2713 = vunpack.c.l.b16 %v681
          %v2714 = vunpack.c.l.b16 %v682
          %v2715 = vunpack.c.l.b16 %v683
          %v2716 = vunpack.c.l.b16 %v684
          %v2717 = vunpack.c.l.b16 %v685
          %v2718 = vunpack.c.l.b16 %v686
          %v2719 = vunpack.c.l.b16 %v687
          %v2720 = vunpack.c.l.b16 %v688
          %v2721 = vunpack.c.l.b16 %v689
          %v2722 = vunpack.c.l.b16 %v690
          %v2723 = vunpack.c.l.b16 %v691
          %v2724 = vunpack.c.l.b16 %v692
          %v2725 = vunpack.c.l.b16 %v693
          %v2726 = vunpack.c.l.b16 %v694
          %v2727 = vunpack.c.l.b16 %v695
          %v2728 = vunpack.c.l.b16 %v696
          %v2729 = vunpack.c.l.b16 %v697
          %v2730 = vunpack.c.l.b16 %v698
          %v2731 = vunpack.c.l.b16 %v699
          %v2732 = vpack.c.b16 %v2701, %v2700
          %v2733 = vpack.c.b16 %v2703, %v2702
          %v2734 = vpack.c.b16 %v2705, %v2704
          %v2735 = vpack.c.b16 %v2707, %v2706
          %v2736 = vpack.c.b16 %v2709, %v2708
          %v2737 = vpack.c.b16 %v2711, %v2710
          %v2738 = vpack.c.b16 %v2713, %v2712
          %v2739 = vpack.c.b16 %v2715, %v2714
          %v2740 = vpack.c.b16 %v2717, %v2716
          %v2741 = vpack.c.b16 %v2719, %v2718
          %v2742 = vpack.c.b16 %v2721, %v2720
          %v2743 = vpack.c.b16 %v2723, %v2722
          %v2744 = vpack.c.b16 %v2725, %v2724
          %v2745 = vpack.c.b16 %v2727, %v2726
          %v2746 = vpack.c.b16 %v2729, %v2728
          %v2747 = vpack.c.b16 %v2731, %v2730
          %2764 = vxpose.xlu0.c.b16.start [1/8] %v2732, 128
          %2765 = vxpose.xlu0.c.b16.cont [2/8] %v2733, 128
          %2766 = vxpose.xlu0.c.b16.cont [3/8] %v2734, 128
          %2767 = vxpose.xlu0.c.b16.cont [4/8] %v2735, 128
          %2768 = vxpose.xlu0.c.b16.cont [5/8] %v2736, 128
          %2769 = vxpose.xlu0.c.b16.cont [6/8] %v2737, 128
          %2770 = vxpose.xlu0.c.b16.cont [7/8] %v2738, 128
          %2771 = vxpose.xlu0.c.b16.end [8/8] %v2739, 128
          %v2772 = vpop.trf.xlu0
          %v2773 = vpop.trf.xlu0
          %v2774 = vpop.trf.xlu0
          %v2775 = vpop.trf.xlu0
          %v2776 = vpop.trf.xlu0
          %v2777 = vpop.trf.xlu0
          %v2778 = vpop.trf.xlu0
          %v2779 = vpop.trf.xlu0
          %2780 = vxpose.xlu0.c.b16.start [1/8] %v2740, 128
          %2781 = vxpose.xlu0.c.b16.cont [2/8] %v2741, 128
          %2782 = vxpose.xlu0.c.b16.cont [3/8] %v2742, 128
          %2783 = vxpose.xlu0.c.b16.cont [4/8] %v2743, 128
          %2784 = vxpose.xlu0.c.b16.cont [5/8] %v2744, 128
          %2785 = vxpose.xlu0.c.b16.cont [6/8] %v2745, 128
          %2786 = vxpose.xlu0.c.b16.cont [7/8] %v2746, 128
          %2787 = vxpose.xlu0.c.b16.end [8/8] %v2747, 128
          %v2788 = vpop.trf.xlu0
          %v2789 = vpop.trf.xlu0
          %v2790 = vpop.trf.xlu0
          %v2791 = vpop.trf.xlu0
          %v2792 = vpop.trf.xlu0
          %v2793 = vpop.trf.xlu0
          %v2794 = vpop.trf.xlu0
          %v2795 = vpop.trf.xlu0
          %2796 = vmatpush.bf16.msra.mxu0 %v2659
          %2797 = vmatpush.bf16.msra.mxu0 %v2658
          %2798 = vmatpush.bf16.msra.mxu0 %v2657
          %2799 = vmatpush.bf16.msra.mxu0 %v2656
          %2800 = vmatpush.bf16.msra.mxu0 %v2655
          %2801 = vmatpush.bf16.msra.mxu0 %v2654
          %2802 = vmatpush.bf16.msra.mxu0 %v2653
          %2803 = vmatpush.bf16.msra.mxu0 %v2652
          %2804 = vmatmul.bf16.gmra.mxu0 %v2772
          %v2805 = vpop.f32.mrf.mxu0
          %v2806 = vadd.f32 0.0, %v2805
          %v2807 = vpop.f32.mrf.mxu0
          %v2808 = vadd.f32 0.0, %v2807
          %2809 = vmatmul.bf16.gmra.mxu0 %v2773
          %v2810 = vpop.f32.mrf.mxu0
          %v2811 = vadd.f32 0.0, %v2810
          %v2812 = vpop.f32.mrf.mxu0
          %v2813 = vadd.f32 0.0, %v2812
          %2814 = vmatmul.bf16.gmra.mxu0 %v2774
          %v2815 = vpop.f32.mrf.mxu0
          %v2816 = vadd.f32 0.0, %v2815
          %v2817 = vpop.f32.mrf.mxu0
          %v2818 = vadd.f32 0.0, %v2817
          %2819 = vmatmul.bf16.gmra.mxu0 %v2775
          %v2820 = vpop.f32.mrf.mxu0
          %v2821 = vadd.f32 0.0, %v2820
          %v2822 = vpop.f32.mrf.mxu0
          %v2823 = vadd.f32 0.0, %v2822
          %2824 = vmatmul.bf16.gmra.mxu0 %v2776
          %v2825 = vpop.f32.mrf.mxu0
          %v2826 = vadd.f32 0.0, %v2825
          %v2827 = vpop.f32.mrf.mxu0
          %v2828 = vadd.f32 0.0, %v2827
          %2829 = vmatmul.bf16.gmra.mxu0 %v2777
          %v2830 = vpop.f32.mrf.mxu0
          %v2831 = vadd.f32 0.0, %v2830
          %v2832 = vpop.f32.mrf.mxu0
          %v2833 = vadd.f32 0.0, %v2832
          %2834 = vmatmul.bf16.gmra.mxu0 %v2778
          %v2835 = vpop.f32.mrf.mxu0
          %v2836 = vadd.f32 0.0, %v2835
          %v2837 = vpop.f32.mrf.mxu0
          %v2838 = vadd.f32 0.0, %v2837
          %2839 = vmatmul.bf16.gmra.mxu0 %v2779
          %v2840 = vpop.f32.mrf.mxu0
          %v2841 = vadd.f32 0.0, %v2840
          %v2842 = vpop.f32.mrf.mxu0
          %v2843 = vadd.f32 0.0, %v2842
          %2844 = vdwg.mxu0
          %2845 = vmatpush.bf16.msra.mxu0 %v2667
          %2846 = vmatpush.bf16.msra.mxu0 %v2666
          %2847 = vmatpush.bf16.msra.mxu0 %v2665
          %2848 = vmatpush.bf16.msra.mxu0 %v2664
          %2849 = vmatpush.bf16.msra.mxu0 %v2663
          %2850 = vmatpush.bf16.msra.mxu0 %v2662
          %2851 = vmatpush.bf16.msra.mxu0 %v2661
          %2852 = vmatpush.bf16.msra.mxu0 %v2660
          %2853 = vmatmul.bf16.gmra.mxu0 %v2788
          %v2854 = vpop.f32.mrf.mxu0
          %v2855 = vadd.f32 %v2806, %v2854
          %v2856 = vpop.f32.mrf.mxu0
          %v2857 = vadd.f32 %v2808, %v2856
          %2858 = vmatmul.bf16.gmra.mxu0 %v2789
          %v2859 = vpop.f32.mrf.mxu0
          %v2860 = vadd.f32 %v2811, %v2859
          %v2861 = vpop.f32.mrf.mxu0
          %v2862 = vadd.f32 %v2813, %v2861
          %2863 = vmatmul.bf16.gmra.mxu0 %v2790
          %v2864 = vpop.f32.mrf.mxu0
          %v2865 = vadd.f32 %v2816, %v2864
          %v2866 = vpop.f32.mrf.mxu0
          %v2867 = vadd.f32 %v2818, %v2866
          %2868 = vmatmul.bf16.gmra.mxu0 %v2791
          %v2869 = vpop.f32.mrf.mxu0
          %v2870 = vadd.f32 %v2821, %v2869
          %v2871 = vpop.f32.mrf.mxu0
          %v2872 = vadd.f32 %v2823, %v2871
          %2873 = vmatmul.bf16.gmra.mxu0 %v2792
          %v2874 = vpop.f32.mrf.mxu0
          %v2875 = vadd.f32 %v2826, %v2874
          %v2876 = vpop.f32.mrf.mxu0
          %v2877 = vadd.f32 %v2828, %v2876
          %2878 = vmatmul.bf16.gmra.mxu0 %v2793
          %v2879 = vpop.f32.mrf.mxu0
          %v2880 = vadd.f32 %v2831, %v2879
          %v2881 = vpop.f32.mrf.mxu0
          %v2882 = vadd.f32 %v2833, %v2881
          %2883 = vmatmul.bf16.gmra.mxu0 %v2794
          %v2884 = vpop.f32.mrf.mxu0
          %v2885 = vadd.f32 %v2836, %v2884
          %v2886 = vpop.f32.mrf.mxu0
          %v2887 = vadd.f32 %v2838, %v2886
          %2888 = vmatmul.bf16.gmra.mxu0 %v2795
          %v2889 = vpop.f32.mrf.mxu0
          %v2890 = vadd.f32 %v2841, %v2889
          %v2891 = vpop.f32.mrf.mxu0
          %v2892 = vadd.f32 %v2843, %v2891
          %2893 = vdwg.mxu0
          %v2894 = vadd.f32 %v2636, %v2855
          %v2895 = vadd.f32 %v2637, %v2857
          %v2896 = vadd.f32 %v2638, %v2860
          %v2897 = vadd.f32 %v2639, %v2862
          %v2898 = vadd.f32 %v2640, %v2865
          %v2899 = vadd.f32 %v2641, %v2867
          %v2900 = vadd.f32 %v2642, %v2870
          %v2901 = vadd.f32 %v2643, %v2872
          %v2902 = vadd.f32 %v2644, %v2875
          %v2903 = vadd.f32 %v2645, %v2877
          %v2904 = vadd.f32 %v2646, %v2880
          %v2905 = vadd.f32 %v2647, %v2882
          %v2906 = vadd.f32 %v2648, %v2885
          %v2907 = vadd.f32 %v2649, %v2887
          %v2908 = vadd.f32 %v2650, %v2890
          %v2909 = vadd.f32 %v2651, %v2892
          %2910 = vst [vmem:[#allocation4] sm:$0xff] %v2894
          %2911 = vst [vmem:[#allocation4 + $0x8] sm:$0xff] %v2895
          %2912 = vst [vmem:[#allocation4 + $0x10] sm:$0xff] %v2896
          %2913 = vst [vmem:[#allocation4 + $0x18] sm:$0xff] %v2897
          %2914 = vst [vmem:[#allocation4 + $0x20] sm:$0xff] %v2898
          %2915 = vst [vmem:[#allocation4 + $0x28] sm:$0xff] %v2899
          %2916 = vst [vmem:[#allocation4 + $0x30] sm:$0xff] %v2900
          %2917 = vst [vmem:[#allocation4 + $0x38] sm:$0xff] %v2901
          %2918 = vst [vmem:[#allocation4 + $0x40] sm:$0xff] %v2902
          %2919 = vst [vmem:[#allocation4 + $0x48] sm:$0xff] %v2903
          %2920 = vst [vmem:[#allocation4 + $0x50] sm:$0xff] %v2904
          %2921 = vst [vmem:[#allocation4 + $0x58] sm:$0xff] %v2905
          %2922 = vst [vmem:[#allocation4 + $0x60] sm:$0xff] %v2906
          %2923 = vst [vmem:[#allocation4 + $0x68] sm:$0xff] %v2907
          %2924 = vst [vmem:[#allocation4 + $0x70] sm:$0xff] %v2908
          %2925 = vst [vmem:[#allocation4 + $0x78] sm:$0xff] %v2909
          %2926 = vst [vmem:[#allocation2] sm:$0x1] %v2185
        $region60: #{tpu_custom_call.1} parent=43 // pred_fallthru
          _
        %p2927 = scmp.eq.s32.totalorder %s46, 2
        // Predicated region
        $region61: #{tpu_custom_call.1} parent=43 // pred_check
          %p2928 = pneg %p2927
        $region62: #{tpu_custom_call.1} parent=43 // pred_check_branch
          %2930 = sbr.rel (%p2928) target = $region64
        $region63: #{tpu_custom_call.1} parent=43 // pred_region
          %v2931 = vld [vmem:[#allocation3] sm:$0x1]
          %v2932 = vmax.f32 %v2931, 1e-30
          %v2933 = vrcp.pop %v2932
          %v2934 = vld [vmem:[#allocation2] sm:$0x1]
          %vm2935 = vcmp.gt.f32.partialorder %v2934, -1e+29
          %v2936 = vld [vmem:[#allocation4] sm:$0xff]
          %v2937 = vld [vmem:[#allocation4 + $0x8] sm:$0xff]
          %v2938 = vld [vmem:[#allocation4 + $0x10] sm:$0xff]
          %v2939 = vld [vmem:[#allocation4 + $0x18] sm:$0xff]
          %v2940 = vld [vmem:[#allocation4 + $0x20] sm:$0xff]
          %v2941 = vld [vmem:[#allocation4 + $0x28] sm:$0xff]
          %v2942 = vld [vmem:[#allocation4 + $0x30] sm:$0xff]
          %v2943 = vld [vmem:[#allocation4 + $0x38] sm:$0xff]
          %v2944 = vld [vmem:[#allocation4 + $0x40] sm:$0xff]
          %v2945 = vld [vmem:[#allocation4 + $0x48] sm:$0xff]
          %v2946 = vld [vmem:[#allocation4 + $0x50] sm:$0xff]
          %v2947 = vld [vmem:[#allocation4 + $0x58] sm:$0xff]
          %v2948 = vld [vmem:[#allocation4 + $0x60] sm:$0xff]
          %v2949 = vld [vmem:[#allocation4 + $0x68] sm:$0xff]
          %v2950 = vld [vmem:[#allocation4 + $0x70] sm:$0xff]
          %v2951 = vld [vmem:[#allocation4 + $0x78] sm:$0xff]
          %v2953 = vperm.slane %v2933, 0
          %v2955 = vmul.f32 %v2936, %v2953
          %v2956 = vmul.f32 %v2937, %v2953
          %v2957 = vmul.f32 %v2938, %v2953
          %v2958 = vmul.f32 %v2939, %v2953
          %v2959 = vmul.f32 %v2940, %v2953
          %v2960 = vmul.f32 %v2941, %v2953
          %v2961 = vmul.f32 %v2942, %v2953
          %v2962 = vmul.f32 %v2943, %v2953
          %v2963 = vmul.f32 %v2944, %v2953
          %v2964 = vmul.f32 %v2945, %v2953
          %v2965 = vmul.f32 %v2946, %v2953
          %v2966 = vmul.f32 %v2947, %v2953
          %v2967 = vmul.f32 %v2948, %v2953
          %v2968 = vmul.f32 %v2949, %v2953
          %v2969 = vmul.f32 %v2950, %v2953
          %v2970 = vmul.f32 %v2951, %v2953
          %v2971 = vsel %vm2935, 1, 0
          %v2972 = vperm.slane %v2971, 0
          %vm2973 = vcmp.eq.s32.totalorder %v2972, 1
          %v2974 = vsel %vm2973, %v2955, 0.0
          %v2975 = vsel %vm2973, %v2956, 0.0
          %v2976 = vsel %vm2973, %v2957, 0.0
          %v2977 = vsel %vm2973, %v2958, 0.0
          %v2978 = vsel %vm2973, %v2959, 0.0
          %v2979 = vsel %vm2973, %v2960, 0.0
          %v2980 = vsel %vm2973, %v2961, 0.0
          %v2981 = vsel %vm2973, %v2962, 0.0
          %v2982 = vsel %vm2973, %v2963, 0.0
          %v2983 = vsel %vm2973, %v2964, 0.0
          %v2984 = vsel %vm2973, %v2965, 0.0
          %v2985 = vsel %vm2973, %v2966, 0.0
          %v2986 = vsel %vm2973, %v2967, 0.0
          %v2987 = vsel %vm2973, %v2968, 0.0
          %v2988 = vsel %vm2973, %v2969, 0.0
          %v2989 = vsel %vm2973, %v2970, 0.0
          %v2990 = vmax.f32 %v2974, 0.0
          %v2991 = vmax.f32 %v2975, 0.0
          %v2992 = vmax.f32 %v2976, 0.0
          %v2993 = vmax.f32 %v2977, 0.0
          %v2994 = vmax.f32 %v2978, 0.0
          %v2995 = vmax.f32 %v2979, 0.0
          %v2996 = vmax.f32 %v2980, 0.0
          %v2997 = vmax.f32 %v2981, 0.0
          %v2998 = vmax.f32 %v2982, 0.0
          %v2999 = vmax.f32 %v2983, 0.0
          %v3000 = vmax.f32 %v2984, 0.0
          %v3001 = vmax.f32 %v2985, 0.0
          %v3002 = vmax.f32 %v2986, 0.0
          %v3003 = vmax.f32 %v2987, 0.0
          %v3004 = vmax.f32 %v2988, 0.0
          %v3005 = vmax.f32 %v2989, 0.0
          %3006 = vst [vmem:[%s556] sm:$0xff] %v2990
          %3007 = vst [vmem:[%s556 + $0x8] sm:$0xff] %v2991
          %3008 = vst [vmem:[%s556 + $0x10] sm:$0xff] %v2992
          %3009 = vst [vmem:[%s556 + $0x18] sm:$0xff] %v2993
          %3010 = vst [vmem:[%s556 + $0x20] sm:$0xff] %v2994
          %3011 = vst [vmem:[%s556 + $0x28] sm:$0xff] %v2995
          %3012 = vst [vmem:[%s556 + $0x30] sm:$0xff] %v2996
          %3013 = vst [vmem:[%s556 + $0x38] sm:$0xff] %v2997
          %3014 = vst [vmem:[%s556 + $0x40] sm:$0xff] %v2998
          %3015 = vst [vmem:[%s556 + $0x48] sm:$0xff] %v2999
          %3016 = vst [vmem:[%s556 + $0x50] sm:$0xff] %v3000
          %3017 = vst [vmem:[%s556 + $0x58] sm:$0xff] %v3001
          %3018 = vst [vmem:[%s556 + $0x60] sm:$0xff] %v3002
          %3019 = vst [vmem:[%s556 + $0x68] sm:$0xff] %v3003
          %3020 = vst [vmem:[%s556 + $0x70] sm:$0xff] %v3004
          %3021 = vst [vmem:[%s556 + $0x78] sm:$0xff] %v3005
        $region64: #{tpu_custom_call.1} parent=43 // pred_fallthru
          _
        %s3022 = sand.u32 %s292, 1
        %s3023 = scalar_lea.sflag [#allocation10], %s3022
        %s3024 = sand.u32 %s292, 1
        %s3025 = smul.addr %s3024, 128
        %s3026 = scalar_lea.vmem [#allocation13], %s3025
        // Predicated region
        $region65: #{tpu_custom_call.1} parent=43 // pred_check
          %p3027 = pneg %p302
        $region66: #{tpu_custom_call.1} parent=43 // pred_check_branch
          %3029 = sbr.rel (%p3027) target = $region68
        $region67: #{tpu_custom_call.1} parent=43 // pred_region
          %3031 = vsyncadd %s3023, 0
          %s3032 = smul.addr %s45, 8
          %s3033 = scalar_lea.hbm %s8, %s3032
          %s3034 = sshll.u32 %s3026, 4
          %s3035 = int_to_ptr.vmem [resolvable:$true] %s3034
          %s3036 = sshll.u32 %s3033, 4
          %s3037 = int_to_ptr.hbm [resolvable:$true] %s3036
          %3042 = dma.vmem_to_hbm [thread:$0]  %s3035, 2048, %s3037, %s3023, 128, 256, 8
        $region68: #{tpu_custom_call.1} parent=43 // pred_fallthru
          _
      $region44: #{tpu_custom_call.1} parent=5 // pred_fallthru
        _
      %p3043 = scmp.le.s32.totalorder 2, %s36
      // Predicated region
      $region69: #{tpu_custom_call.1} parent=5 // pred_check
        %p3044 = pneg %p3043
      $region70: #{tpu_custom_call.1} parent=5 // pred_check_branch
        %3046 = sbr.rel (%p3044) target = $region72
      $region71: #{tpu_custom_call.1} parent=5 // pred_region
        %s3047 = ssub.s32 %s36, 2
        // Predicated region
        $region73: #{tpu_custom_call.1} parent=71 // pred_check
          %p3048 = pneg %p308
        $region74: #{tpu_custom_call.1} parent=71 // pred_check_branch
          %3050 = sbr.rel (%p3048) target = $region76
        $region75: #{tpu_custom_call.1} parent=71 // pred_region
          %s3051 = sand.u32 %s293, 1
          %s3052 = scalar_lea.sflag [#allocation10], %s3051
          %s3053 = sand.u32 %s293, 1
          %s3054 = smul.addr %s3053, 128
          %s3055 = scalar_lea.vmem [#allocation13], %s3054
          %3057 = dma.done %s3052, 2048
        $region76: #{tpu_custom_call.1} parent=71 // pred_fallthru
          _
      $region72: #{tpu_custom_call.1} parent=5 // pred_fallthru
        _
    $region6: #{tpu_custom_call.1} parent=1 // loop_footer
      %s40 = sadd.s32 1, %s36
    $region7: #{tpu_custom_call.1} parent=1 // loop_footer_branch
      %35 = sbr.rel target = $region3
    $region8: #{tpu_custom_call.1} parent=1 // loop_exit
      _
    %3058 = vsyncpa [#allocation9], 1
    %s3059 = scalar_lea.sflag [#allocation9], 1
    %3060 = vsyncpa %s3059, 1
    %3061 = vsyncpa [#allocation12], 1
    %s3062 = scalar_lea.sflag [#allocation12], 1
    %3063 = vsyncpa %s3062, 1
    %3064 = vsyncpa [#allocation10], 1
    %s3065 = scalar_lea.sflag [#allocation10], 1
    %3066 = vsyncpa %s3065, 1

</llo_original>
